<compile_context>
chip_gen: v7x
topology: tpu7x:2x2x1
jax: 0.10.0
libtpu: 0.0.40
codegen_flags: <defaults>
</compile_context>

<pallas_src>
import functools
import math

import jax
import jax.numpy as jnp
from jax.experimental import pallas as pl
from jax.experimental.pallas import tpu as pltpu


# ---------------------------------------------------------------------------
# Kernel 1: fused recurrent core (mogrify + LSTM cell) over the whole sequence.
# grid = (batch_tiles, T); batch "parallel" (megacore), time "arbitrary".
# h/c state is carried in f32 VMEM scratch across the time axis.
# ---------------------------------------------------------------------------
def _recurrent_kernel(
    # inputs
    emb_ref,      # (tb, ninp)          bf16 - this timestep's embedded tokens
    h0_ref,       # (tb, nhid)          f32  - initial hidden (read at t == 0)
    c0_ref,       # (tb, nhid)          f32  - initial cell   (read at t == 0)
    qwT_ref,      # (R, nhid, ninp)     bf16 - mogrify Qw, [in, out] layout
    qb_ref,       # (R, 1, ninp)        f32
    rwT_ref,      # (R, ninp, nhid)     bf16 - mogrify Rw, [in, out] layout
    rb_ref,       # (R, 1, nhid)        f32
    wxhT_ref,     # (ninp+nhid, 4*nhid) bf16 - fused [W_ih^T ; W_hh^T]
    lstm_b_ref,   # (1, 4*nhid)         f32  - b_ih + b_hh
    # outputs
    hseq_ref,     # (tb, nhid)          bf16 - hidden for this timestep
    h_out_ref,    # (tb, nhid)          f32  - final hidden
    c_out_ref,    # (tb, nhid)          f32  - final cell
    # scratch (persist across the time axis of the grid)
    h_sc,         # (tb, nhid)          f32
    c_sc,         # (tb, nhid)          f32
    *,
    num_rounds,
):
    t = pl.program_id(1)

    @pl.when(t == 0)
    def _():
        h_sc[...] = h0_ref[...]
        c_sc[...] = c0_ref[...]

    nhid = h_sc.shape[-1]

    def mm(a_f32, w_bf16):
        # bf16 MXU operands, f32 accumulation; gating math stays f32.
        return jnp.dot(a_f32.astype(jnp.bfloat16), w_bf16,
                       preferred_element_type=jnp.float32)

    def sigmoid(z):
        return 0.5 * (jnp.tanh(0.5 * z) + 1.0)     # exact, uses EUP tanh

    x = emb_ref[...].astype(jnp.float32)           # (tb, ninp)
    h = h_sc[...]                                  # (tb, nhid)
    c = c_sc[...]                                  # (tb, nhid)

    # ---- Mogrify: num_rounds alternating Q/R rounds (weights VMEM-resident).
    for j in range(num_rounds):                    # small static R -> unrolled
        h_q = mm(h, qwT_ref[j]) + qb_ref[j]        # (tb, ninp)
        x = (1.0 + jnp.tanh(0.5 * h_q)) * x        # == 2*sigmoid(h_q) * x
        x_r = mm(x, rwT_ref[j]) + rb_ref[j]        # (tb, nhid)
        h = (1.0 + jnp.tanh(0.5 * x_r)) * h        # == 2*sigmoid(x_r) * h

    # ---- LSTM cell, single fused gate matmul; PyTorch gate order i, f, g, o.
    xh = jnp.concatenate([x, h], axis=-1)          # (tb, ninp+nhid), f32
    gates = mm(xh, wxhT_ref[...]) + lstm_b_ref[...]
    i_g = sigmoid(gates[:, 0 * nhid:1 * nhid])
    f_g = sigmoid(gates[:, 1 * nhid:2 * nhid])
    g_g = jnp.tanh(gates[:, 2 * nhid:3 * nhid])
    o_g = sigmoid(gates[:, 3 * nhid:4 * nhid])
    c_new = f_g * c + i_g * g_g
    h_new = o_g * jnp.tanh(c_new)

    h_sc[...] = h_new
    c_sc[...] = c_new
    hseq_ref[...] = h_new.astype(hseq_ref.dtype)   # bf16 handoff to decoder

    @pl.when(t == pl.num_programs(1) - 1)
    def _():
        h_out_ref[...] = h_new
        c_out_ref[...] = c_new


# ---------------------------------------------------------------------------
# Kernel 2: decoder — one tiled (T*B, nhid) x (nhid, ntoken) matmul + bias.
# (Dropout on output_t == identity in eval mode.)
# ---------------------------------------------------------------------------
def _decoder_kernel(h_ref, w_ref, b_ref, o_ref):
    o_ref[...] = (
        jnp.dot(h_ref[...], w_ref[...], preferred_element_type=jnp.float32)
        + b_ref[...]
    ).astype(o_ref.dtype)


# ---------------------------------------------------------------------------
# Wrapper
# ---------------------------------------------------------------------------
def _pick_tile(n, preferred):
    for t in preferred:
        if n % t == 0:
            return t
    return n


def _pick_batch_tile(B):
    # Prefer >= 2 sublane-aligned tiles so the "parallel" axis can shard
    # across v7x's two TensorCores; fall back to the whole batch.
    for tb in (256, 128, 64, 32, 16, 8):
        if B % tb == 0 and B // tb >= 2:
            return tb
    return B


def mogrifier_lstm_forward(tokens, h0, c0, kp, *, batch_tile=None):
    """tokens: (T, B) int32; h0, c0: (B, nhid) f32; kp: kernel-layout params.

    Returns (decoded (T, B, ntoken) bf16, h_T (B, nhid) f32, c_T (B, nhid) f32).
    """
    T, B = tokens.shape
    ninp = kp["emb"].shape[1]
    nhid = h0.shape[1]
    ntoken = kp["dec_wT"].shape[1]
    R = kp["mog_qwT"].shape[0]

    tb = _pick_batch_tile(B) if batch_tile is None else batch_tile
    assert B % tb == 0, "batch must be divisible by the batch tile"
    n_btiles = B // tb

    # Embedding gather in XLA (bf16 table -> bf16 activations). See TODO(synk).
    emb = jnp.take(kp["emb"], tokens, axis=0)      # (T, B, ninp) bf16

    full3 = lambda b, t: (0, 0, 0)
    full2 = lambda b, t: (0, 0)
    resident = pl.Buffered(1)   # constant-index weights: single VMEM buffer

    def wspec(shape, imap):
        return pl.BlockSpec(shape, imap, pipeline_mode=resident)

    weights = (kp["mog_qwT"], kp["mog_qb"], kp["mog_rwT"], kp["mog_rb"],
               kp["w_xhT"], kp["lstm_b"])
    weight_bytes = sum(int(w.size) * w.dtype.itemsize for w in weights)
    act_bytes = (2 * tb * ninp * 2              # emb blocks (double-buffered, bf16)
                 + 2 * tb * nhid * 2            # hseq out blocks (bf16)
                 + 4 * tb * nhid * 4 * 2        # h0/c0 in + hT/cT out (f32)
                 + 2 * tb * nhid * 4)           # carried h/c scratch (f32)
    vmem_limit = int(min(100 * 2**20,
                         max(16 * 2**20, 2 * (weight_bytes + act_bytes))))

    rec_flops = 2 * T * B * (2 * R * ninp * nhid + (ninp + nhid) * 4 * nhid)
    rec_trans = T * B * (R * (ninp + nhid) + 5 * nhid)
    rec_bytes = (int(emb.size) * 2 + T * B * nhid * 2 + 4 * B * nhid * 4
                 + n_btiles * weight_bytes)     # weights fetched once per b-tile

    hseq, h_T, c_T = pl.pallas_call(
        functools.partial(_recurrent_kernel, num_rounds=R),
        out_shape=(
            jax.ShapeDtypeStruct((T, B, nhid), jnp.bfloat16),
            jax.ShapeDtypeStruct((B, nhid), jnp.float32),
            jax.ShapeDtypeStruct((B, nhid), jnp.float32),
        ),
        grid_spec=pltpu.PrefetchScalarGridSpec(
            num_scalar_prefetch=0,
            grid=(n_btiles, T),
            in_specs=[
                # per-(batch-tile, timestep) activation blocks (pipelined)
                pl.BlockSpec((None, tb, ninp), lambda b, t: (t, b, 0)),
                pl.BlockSpec((tb, nhid), lambda b, t: (b, 0)),
                pl.BlockSpec((tb, nhid), lambda b, t: (b, 0)),
                # weights: full-array, constant index, single-buffered
                wspec(kp["mog_qwT"].shape, full3),
                wspec(kp["mog_qb"].shape, full3),
                wspec(kp["mog_rwT"].shape, full3),
                wspec(kp["mog_rb"].shape, full3),
                wspec(kp["w_xhT"].shape, full2),
                wspec(kp["lstm_b"].shape, full2),
            ],
            out_specs=(
                pl.BlockSpec((None, tb, nhid), lambda b, t: (t, b, 0)),
                pl.BlockSpec((tb, nhid), lambda b, t: (b, 0)),
                pl.BlockSpec((tb, nhid), lambda b, t: (b, 0)),
            ),
            scratch_shapes=[
                pltpu.VMEM((tb, nhid), jnp.float32),   # carried h
                pltpu.VMEM((tb, nhid), jnp.float32),   # carried c
            ],
        ),
        compiler_params=pltpu.CompilerParams(
            dimension_semantics=("parallel", "arbitrary"),
            vmem_limit_bytes=vmem_limit,
        ),
        cost_estimate=pl.CostEstimate(
            flops=rec_flops, transcendentals=rec_trans,
            bytes_accessed=rec_bytes),
    )(emb, h0, c0,
      kp["mog_qwT"], kp["mog_qb"], kp["mog_rwT"], kp["mog_rb"],
      kp["w_xhT"], kp["lstm_b"])

    # ---- Decoder as a separate tiled matmul over all timesteps at once.
    M = T * B
    h_flat = hseq.reshape(M, nhid)
    tm = _pick_tile(M, (512, 256, 128))
    tn = _pick_tile(ntoken, (1024, 512, 256, 128))

    dec_flops = 2 * M * nhid * ntoken
    dec_bytes = (M * nhid * 2 * (ntoken // tn)
                 + nhid * ntoken * 2 * (M // tm)
                 + M * ntoken * 2 + ntoken * 4)
    dec_vmem = int(min(100 * 2**20,
                       max(16 * 2**20,
                           4 * (tm * nhid * 2 + nhid * tn * 2
                                + tm * tn * 2 + tn * 4))))

    logits = pl.pallas_call(
        _decoder_kernel,
        out_shape=jax.ShapeDtypeStruct((M, ntoken), jnp.bfloat16),
        grid_spec=pltpu.PrefetchScalarGridSpec(
            num_scalar_prefetch=0,
            grid=(M // tm, ntoken // tn),
            in_specs=[
                pl.BlockSpec((tm, nhid), lambda i, j: (i, 0)),
                pl.BlockSpec((nhid, tn), lambda i, j: (0, j)),
                pl.BlockSpec((1, tn), lambda i, j: (0, j)),
            ],
            out_specs=pl.BlockSpec((tm, tn), lambda i, j: (i, j)),
        ),
        compiler_params=pltpu.CompilerParams(
            dimension_semantics=("parallel", "parallel"),
            vmem_limit_bytes=dec_vmem,
        ),
        cost_estimate=pl.CostEstimate(
            flops=dec_flops, transcendentals=0, bytes_accessed=dec_bytes),
    )(h_flat, kp["dec_wT"], kp["dec_b"])

    decoded = logits.reshape(T, B, ntoken)
    return decoded, h_T, c_T


# ---------------------------------------------------------------------------
# Parameters (PyTorch layout for the reference; repacked once for the kernel)
# ---------------------------------------------------------------------------
def make_params(key, ntoken, ninp, nhid, r):
    ks = jax.random.split(key, 10)
    u = lambda k, shape, bound: jax.random.uniform(
        k, shape, jnp.float32, -bound, bound)
    bq = 1.0 / math.sqrt(nhid)   # Qw: Linear(nhid -> ninp)
    br = 1.0 / math.sqrt(ninp)   # Rw: Linear(ninp -> nhid)
    bl = 1.0 / math.sqrt(nhid)   # LSTM default init
    return dict(
        emb=u(ks[0], (ntoken, ninp), 0.1),
        mog_qw=u(ks[1], (r, ninp, nhid), bq),
        mog_qb=u(ks[2], (r, ninp), bq),
        mog_rw=u(ks[3], (r, nhid, ninp), br),
        mog_rb=u(ks[4], (r, nhid), br),
        w_ih=u(ks[5], (4 * nhid, ninp), bl),
        w_hh=u(ks[6], (4 * nhid, nhid), bl),
        b_ih=u(ks[7], (4 * nhid,), bl),
        b_hh=u(ks[8], (4 * nhid,), bl),
        dec_w=u(ks[9], (ntoken, nhid), 0.1),
        dec_b=jnp.zeros((ntoken,), jnp.float32),
    )


def prepare_kernel_params(p, weight_dtype=jnp.bfloat16):
    """One-time 'parameter load' repack: transpose Linear weights to [in, out],
    stack mogrify rounds, fuse the two LSTM gate weights, cast matmul weights
    and the embedding table to bf16, keep biases f32."""
    return dict(
        emb=p["emb"].astype(weight_dtype),
        mog_qwT=jnp.transpose(p["mog_qw"], (0, 2, 1)).astype(weight_dtype),
        mog_qb=p["mog_qb"][:, None, :],
        mog_rwT=jnp.transpose(p["mog_rw"], (0, 2, 1)).astype(weight_dtype),
        mog_rb=p["mog_rb"][:, None, :],
        w_xhT=jnp.concatenate([p["w_ih"].T, p["w_hh"].T],
                              axis=0).astype(weight_dtype),
        lstm_b=(p["b_ih"] + p["b_hh"])[None, :],
        dec_wT=p["dec_w"].T.astype(weight_dtype),
        dec_b=p["dec_b"][None, :],
    )


# ---------------------------------------------------------------------------
# Pure-JAX f32 reference (mirrors the PyTorch module forward, nlayers=1, eval)
# ---------------------------------------------------------------------------
def mogrifier_lstm_ref(tokens, h0, c0, p):
    h, c = h0, c0
    nhid = h.shape[1]
    outs = []
    for t in range(tokens.shape[0]):
        x = p["emb"][tokens[t]]
        for j in range(p["mog_qw"].shape[0]):
            h_q = h @ p["mog_qw"][j].T + p["mog_qb"][j]
            x = 2.0 * jax.nn.sigmoid(h_q) * x
            x_r = x @ p["mog_rw"][j].T + p["mog_rb"][j]
            h = 2.0 * jax.nn.sigmoid(x_r) * h
        gates = x @ p["w_ih"].T + p["b_ih"] + h @ p["w_hh"].T + p["b_hh"]
        i_g = jax.nn.sigmoid(gates[:, 0 * nhid:1 * nhid])
        f_g = jax.nn.sigmoid(gates[:, 1 * nhid:2 * nhid])
        g_g = jnp.tanh(gates[:, 2 * nhid:3 * nhid])
        o_g = jax.nn.sigmoid(gates[:, 3 * nhid:4 * nhid])
        c = f_g * c + i_g * g_g
        h = o_g * jnp.tanh(c)
        outs.append(h @ p["dec_w"].T + p["dec_b"])
    return jnp.stack(outs, axis=0), h, c


# ---------------------------------------------------------------------------
if __name__ == "__main__":
    # Small but hardware-tile-aligned demo dims (multiples of 128 per review).
    T, B = 8, 16
    ntoken, ninp, nhid, R = 512, 128, 256, 2   # nlayers = 1

    key = jax.random.PRNGKey(0)
    kparam, ktok, kh, kc = jax.random.split(key, 4)

    params = make_params(kparam, ntoken, ninp, nhid, R)
    kparams = prepare_kernel_params(params)     # once, at "load" time

    tokens = jax.random.randint(ktok, (T, B), 0, ntoken, dtype=jnp.int32)
    h0 = 0.1 * jax.random.normal(kh, (B, nhid), dtype=jnp.float32)
    c0 = 0.1 * jax.random.normal(kc, (B, nhid), dtype=jnp.float32)

    fwd = jax.jit(mogrifier_lstm_forward)
    decoded, h_T, c_T = fwd(tokens, h0, c0, kparams)
    jax.block_until_ready((decoded, h_T, c_T))

    dec_ref, h_ref, c_ref = mogrifier_lstm_ref(tokens, h0, c0, params)

    assert decoded.shape == (T, B, ntoken)
    # Kernel uses a bf16 embedding table, bf16 MXU operands (f32 accumulation)
    # and bf16 logits vs an all-f32 reference.
    err_d = float(jnp.max(jnp.abs(decoded.astype(jnp.float32) - dec_ref)))
    err_h = float(jnp.max(jnp.abs(h_T - h_ref)))
    err_c = float(jnp.max(jnp.abs(c_T - c_ref)))
    assert err_d < 5e-2, f"decoded max abs err {err_d}"
    assert err_h < 5e-2, f"h_T max abs err {err_h}"
    assert err_c < 5e-2, f"c_T max abs err {err_c}"

    print("KERNEL_OK")
</pallas_src>

<mosaic_0001>
module attributes {stable_mosaic.version = 11 : i64} {
  func.func @_decoder_kernel(%arg0: i32, %arg1: i32, %arg2: memref<128x256xbf16, #tpu.memory_space<vmem>>, %arg3: memref<256x512xbf16, #tpu.memory_space<vmem>>, %arg4: memref<1x512xf32, #tpu.memory_space<vmem>>, %arg5: memref<128x512xbf16, #tpu.memory_space<vmem>>) attributes {dimension_semantics = [#tpu.dimension_semantics<parallel>, #tpu.dimension_semantics<parallel>], iteration_bounds = array<i64: 1, 1>, scalar_prefetch = 0 : i64, scratch_operands = 0 : i64, tpu.core_type = #tpu.core_type<tc>, window_params = [{transform_indices = @transform_0, window_bounds = array<i64: 128, 256>}, {transform_indices = @transform_1, window_bounds = array<i64: 256, 512>}, {transform_indices = @transform_2, window_bounds = array<i64: 1, 512>}, {transform_indices = @transform_3, window_bounds = array<i64: 128, 512>}]} {
    %c0 = arith.constant 0 : index
    %c0_0 = arith.constant 0 : index
    %0 = vector.load %arg2[%c0, %c0_0] : memref<128x256xbf16, #tpu.memory_space<vmem>>, vector<128x256xbf16>
    %c0_1 = arith.constant 0 : index
    %c0_2 = arith.constant 0 : index
    %1 = vector.load %arg3[%c0_1, %c0_2] : memref<256x512xbf16, #tpu.memory_space<vmem>>, vector<256x512xbf16>
    %cst = arith.constant dense<0.000000e+00> : vector<128x512xf32>
    %2 = tpu.matmul %0, %1, %cst {dimension_numbers = #tpu.dot_dimension_numbers<[1], [0], [0], [1], [0, 0, 1, 1], [], []>} : vector<128x256xbf16>, vector<256x512xbf16>, vector<128x512xf32> -> vector<128x512xf32>
    %c0_3 = arith.constant 0 : index
    %c0_4 = arith.constant 0 : index
    %3 = vector.load %arg4[%c0_3, %c0_4] : memref<1x512xf32, #tpu.memory_space<vmem>>, vector<1x512xf32>
    %4 = vector.broadcast %3 : vector<1x512xf32> to vector<128x512xf32>
    %5 = arith.addf %2, %4 : vector<128x512xf32>
    %6 = arith.truncf %5 : vector<128x512xf32> to vector<128x512xbf16>
    %c0_5 = arith.constant 0 : index
    %c0_6 = arith.constant 0 : index
    %7 = vector.load %arg5[%c0_5, %c0_6] : memref<128x512xbf16, #tpu.memory_space<vmem>>, vector<128x512xbf16>
    tpu.vector_store %arg5[%c0_5, %c0_6], %6 {strides = array<i32>} : memref<128x512xbf16, #tpu.memory_space<vmem>>, vector<128x512xbf16>,
    return
  }
  func.func @transform_0(%arg0: i32, %arg1: i32) -> (i32, i32) {
    %c0_i32 = arith.constant 0 : i32
    %c0_i32_0 = arith.constant 0 : i32
    return %arg0, %c0_i32 : i32, i32
  }
  func.func @transform_1(%arg0: i32, %arg1: i32) -> (i32, i32) {
    %c0_i32 = arith.constant 0 : i32
    %c0_i32_0 = arith.constant 0 : i32
    return %c0_i32, %arg1 : i32, i32
  }
  func.func @transform_2(%arg0: i32, %arg1: i32) -> (i32, i32) {
    %c0_i32 = arith.constant 0 : i32
    %c0_i32_0 = arith.constant 0 : i32
    return %c0_i32, %arg1 : i32, i32
  }
  func.func @transform_3(%arg0: i32, %arg1: i32) -> (i32, i32) {
    %c0_i32 = arith.constant 0 : i32
    return %arg0, %arg1 : i32, i32
  }
}

module attributes {stable_mosaic.version = 11 : i64} {
  func.func @_recurrent_kernel(%arg0: i32, %arg1: i32, %arg2: memref<1x8x128xbf16, #tpu.memory_space<vmem>>, %arg3: memref<8x256xf32, #tpu.memory_space<vmem>>, %arg4: memref<8x256xf32, #tpu.memory_space<vmem>>, %arg5: memref<2x256x128xbf16, #tpu.memory_space<vmem>>, %arg6: memref<2x1x128xf32, #tpu.memory_space<vmem>>, %arg7: memref<2x128x256xbf16, #tpu.memory_space<vmem>>, %arg8: memref<2x1x256xf32, #tpu.memory_space<vmem>>, %arg9: memref<384x1024xbf16, #tpu.memory_space<vmem>>, %arg10: memref<1x1024xf32, #tpu.memory_space<vmem>>, %arg11: memref<1x8x256xbf16, #tpu.memory_space<vmem>>, %arg12: memref<8x256xf32, #tpu.memory_space<vmem>>, %arg13: memref<8x256xf32, #tpu.memory_space<vmem>>, %arg14: memref<8x256xf32, #tpu.memory_space<vmem>>, %arg15: memref<8x256xf32, #tpu.memory_space<vmem>>) attributes {dimension_semantics = [#tpu.dimension_semantics<parallel>, #tpu.dimension_semantics<arbitrary>], iteration_bounds = array<i64: 2, 8>, scalar_prefetch = 0 : i64, scratch_operands = 2 : i64, tpu.core_type = #tpu.core_type<tc>, window_params = [{transform_indices = @transform_0, window_bounds = array<i64: 1, 8, 128>}, {transform_indices = @transform_1, window_bounds = array<i64: 8, 256>}, {transform_indices = @transform_2, window_bounds = array<i64: 8, 256>}, {pipeline_mode = #tpu.pipeline_mode<synchronous>, transform_indices = @transform_3, window_bounds = array<i64: 2, 256, 128>}, {pipeline_mode = #tpu.pipeline_mode<synchronous>, transform_indices = @transform_4, window_bounds = array<i64: 2, 1, 128>}, {pipeline_mode = #tpu.pipeline_mode<synchronous>, transform_indices = @transform_5, window_bounds = array<i64: 2, 128, 256>}, {pipeline_mode = #tpu.pipeline_mode<synchronous>, transform_indices = @transform_6, window_bounds = array<i64: 2, 1, 256>}, {pipeline_mode = #tpu.pipeline_mode<synchronous>, transform_indices = @transform_7, window_bounds = array<i64: 384, 1024>}, {pipeline_mode = #tpu.pipeline_mode<synchronous>, transform_indices = @transform_8, window_bounds = array<i64: 1, 1024>}, {transform_indices = @transform_9, window_bounds = array<i64: 1, 8, 256>}, {transform_indices = @transform_10, window_bounds = array<i64: 8, 256>}, {transform_indices = @transform_11, window_bounds = array<i64: 8, 256>}]} {
    %c0_i32 = arith.constant 0 : i32
    %0 = arith.cmpi eq, %arg1, %c0_i32 : i32
    %1 = arith.extui %0 : i1 to i32
    %c0_i32_0 = arith.constant 0 : i32
    %2 = arith.cmpi ne, %1, %c0_i32_0 : i32
    scf.if %2 {
      %c0_63 = arith.constant 0 : index
      %c0_64 = arith.constant 0 : index
      %111 = vector.load %arg3[%c0_63, %c0_64] : memref<8x256xf32, #tpu.memory_space<vmem>>, vector<8x256xf32>
      %c0_65 = arith.constant 0 : index
      %c0_66 = arith.constant 0 : index
      %112 = vector.load %arg14[%c0_65, %c0_66] : memref<8x256xf32, #tpu.memory_space<vmem>>, vector<8x256xf32>
      tpu.vector_store %arg14[%c0_65, %c0_66], %111 {strides = array<i32>} : memref<8x256xf32, #tpu.memory_space<vmem>>, vector<8x256xf32>,
      %c0_67 = arith.constant 0 : index
      %c0_68 = arith.constant 0 : index
      %113 = vector.load %arg4[%c0_67, %c0_68] : memref<8x256xf32, #tpu.memory_space<vmem>>, vector<8x256xf32>
      %c0_69 = arith.constant 0 : index
      %c0_70 = arith.constant 0 : index
      %114 = vector.load %arg15[%c0_69, %c0_70] : memref<8x256xf32, #tpu.memory_space<vmem>>, vector<8x256xf32>
      tpu.vector_store %arg15[%c0_69, %c0_70], %113 {strides = array<i32>} : memref<8x256xf32, #tpu.memory_space<vmem>>, vector<8x256xf32>,
    } else {
    }
    %c0 = arith.constant 0 : index
    %c0_1 = arith.constant 0 : index
    %c0_2 = arith.constant 0 : index
    %3 = vector.load %arg2[%c0, %c0_1, %c0_2] : memref<1x8x128xbf16, #tpu.memory_space<vmem>>, vector<1x8x128xbf16>
    %4 = vector.shape_cast %3 : vector<1x8x128xbf16> to vector<8x128xbf16>
    %5 = arith.extf %4 : vector<8x128xbf16> to vector<8x128xf32>
    %c0_3 = arith.constant 0 : index
    %c0_4 = arith.constant 0 : index
    %6 = vector.load %arg14[%c0_3, %c0_4] : memref<8x256xf32, #tpu.memory_space<vmem>>, vector<8x256xf32>
    %c0_5 = arith.constant 0 : index
    %c0_6 = arith.constant 0 : index
    %7 = vector.load %arg15[%c0_5, %c0_6] : memref<8x256xf32, #tpu.memory_space<vmem>>, vector<8x256xf32>
    %c0_7 = arith.constant 0 : index
    %c0_8 = arith.constant 0 : index
    %c0_9 = arith.constant 0 : index
    %8 = vector.load %arg5[%c0_7, %c0_8, %c0_9] : memref<2x256x128xbf16, #tpu.memory_space<vmem>>, vector<1x256x128xbf16>
    %9 = vector.shape_cast %8 : vector<1x256x128xbf16> to vector<256x128xbf16>
    %10 = arith.truncf %6 : vector<8x256xf32> to vector<8x256xbf16>
    %cst = arith.constant dense<0.000000e+00> : vector<8x128xf32>
    %11 = tpu.matmul %10, %9, %cst {dimension_numbers = #tpu.dot_dimension_numbers<[1], [0], [0], [1], [0, 0, 1, 1], [], []>} : vector<8x256xbf16>, vector<256x128xbf16>, vector<8x128xf32> -> vector<8x128xf32>
    %c0_10 = arith.constant 0 : index
    %c0_11 = arith.constant 0 : index
    %c0_12 = arith.constant 0 : index
    %12 = vector.load %arg6[%c0_10, %c0_11, %c0_12] : memref<2x1x128xf32, #tpu.memory_space<vmem>>, vector<1x1x128xf32>
    %13 = vector.shape_cast %12 : vector<1x1x128xf32> to vector<1x128xf32>
    %14 = vector.broadcast %13 : vector<1x128xf32> to vector<8x128xf32>
    %15 = arith.addf %11, %14 : vector<8x128xf32>
    %cst_13 = arith.constant 5.000000e-01 : f32
    %16 = vector.broadcast %cst_13 : f32 to vector<8x128xf32>
    %17 = arith.mulf %16, %15 : vector<8x128xf32>
    %18 = math.tanh %17 : vector<8x128xf32>
    %cst_14 = arith.constant 1.000000e+00 : f32
    %19 = vector.broadcast %cst_14 : f32 to vector<8x128xf32>
    %20 = arith.addf %19, %18 : vector<8x128xf32>
    %21 = arith.mulf %20, %5 : vector<8x128xf32>
    %c0_15 = arith.constant 0 : index
    %c0_16 = arith.constant 0 : index
    %c0_17 = arith.constant 0 : index
    %22 = vector.load %arg7[%c0_15, %c0_16, %c0_17] : memref<2x128x256xbf16, #tpu.memory_space<vmem>>, vector<1x128x256xbf16>
    %23 = vector.shape_cast %22 : vector<1x128x256xbf16> to vector<128x256xbf16>
    %24 = arith.truncf %21 : vector<8x128xf32> to vector<8x128xbf16>
    %cst_18 = arith.constant dense<0.000000e+00> : vector<8x256xf32>
    %25 = tpu.matmul %24, %23, %cst_18 {dimension_numbers = #tpu.dot_dimension_numbers<[1], [0], [0], [1], [0, 0, 1, 1], [], []>} : vector<8x128xbf16>, vector<128x256xbf16>, vector<8x256xf32> -> vector<8x256xf32>
    %c0_19 = arith.constant 0 : index
    %c0_20 = arith.constant 0 : index
    %c0_21 = arith.constant 0 : index
    %26 = vector.load %arg8[%c0_19, %c0_20, %c0_21] : memref<2x1x256xf32, #tpu.memory_space<vmem>>, vector<1x1x256xf32>
    %27 = vector.shape_cast %26 : vector<1x1x256xf32> to vector<1x256xf32>
    %28 = vector.broadcast %27 : vector<1x256xf32> to vector<8x256xf32>
    %29 = arith.addf %25, %28 : vector<8x256xf32>
    %cst_22 = arith.constant 5.000000e-01 : f32
    %30 = vector.broadcast %cst_22 : f32 to vector<8x256xf32>
    %31 = arith.mulf %30, %29 : vector<8x256xf32>
    %32 = math.tanh %31 : vector<8x256xf32>
    %cst_23 = arith.constant 1.000000e+00 : f32
    %33 = vector.broadcast %cst_23 : f32 to vector<8x256xf32>
    %34 = arith.addf %33, %32 : vector<8x256xf32>
    %35 = arith.mulf %34, %6 : vector<8x256xf32>
    %c1 = arith.constant 1 : index
    %c0_24 = arith.constant 0 : index
    %c0_25 = arith.constant 0 : index
    %36 = vector.load %arg5[%c1, %c0_24, %c0_25] : memref<2x256x128xbf16, #tpu.memory_space<vmem>>, vector<1x256x128xbf16>
    %37 = vector.shape_cast %36 : vector<1x256x128xbf16> to vector<256x128xbf16>
    %38 = arith.truncf %35 : vector<8x256xf32> to vector<8x256xbf16>
    %cst_26 = arith.constant dense<0.000000e+00> : vector<8x128xf32>
    %39 = tpu.matmul %38, %37, %cst_26 {dimension_numbers = #tpu.dot_dimension_numbers<[1], [0], [0], [1], [0, 0, 1, 1], [], []>} : vector<8x256xbf16>, vector<256x128xbf16>, vector<8x128xf32> -> vector<8x128xf32>
    %c1_27 = arith.constant 1 : index
    %c0_28 = arith.constant 0 : index
    %c0_29 = arith.constant 0 : index
    %40 = vector.load %arg6[%c1_27, %c0_28, %c0_29] : memref<2x1x128xf32, #tpu.memory_space<vmem>>, vector<1x1x128xf32>
    %41 = vector.shape_cast %40 : vector<1x1x128xf32> to vector<1x128xf32>
    %42 = vector.broadcast %41 : vector<1x128xf32> to vector<8x128xf32>
    %43 = arith.addf %39, %42 : vector<8x128xf32>
    %cst_30 = arith.constant 5.000000e-01 : f32
    %44 = vector.broadcast %cst_30 : f32 to vector<8x128xf32>
    %45 = arith.mulf %44, %43 : vector<8x128xf32>
    %46 = math.tanh %45 : vector<8x128xf32>
    %cst_31 = arith.constant 1.000000e+00 : f32
    %47 = vector.broadcast %cst_31 : f32 to vector<8x128xf32>
    %48 = arith.addf %47, %46 : vector<8x128xf32>
    %49 = arith.mulf %48, %21 : vector<8x128xf32>
    %c1_32 = arith.constant 1 : index
    %c0_33 = arith.constant 0 : index
    %c0_34 = arith.constant 0 : index
    %50 = vector.load %arg7[%c1_32, %c0_33, %c0_34] : memref<2x128x256xbf16, #tpu.memory_space<vmem>>, vector<1x128x256xbf16>
    %51 = vector.shape_cast %50 : vector<1x128x256xbf16> to vector<128x256xbf16>
    %52 = arith.truncf %49 : vector<8x128xf32> to vector<8x128xbf16>
    %cst_35 = arith.constant dense<0.000000e+00> : vector<8x256xf32>
    %53 = tpu.matmul %52, %51, %cst_35 {dimension_numbers = #tpu.dot_dimension_numbers<[1], [0], [0], [1], [0, 0, 1, 1], [], []>} : vector<8x128xbf16>, vector<128x256xbf16>, vector<8x256xf32> -> vector<8x256xf32>
    %c1_36 = arith.constant 1 : index
    %c0_37 = arith.constant 0 : index
    %c0_38 = arith.constant 0 : index
    %54 = vector.load %arg8[%c1_36, %c0_37, %c0_38] : memref<2x1x256xf32, #tpu.memory_space<vmem>>, vector<1x1x256xf32>
    %55 = vector.shape_cast %54 : vector<1x1x256xf32> to vector<1x256xf32>
    %56 = vector.broadcast %55 : vector<1x256xf32> to vector<8x256xf32>
    %57 = arith.addf %53, %56 : vector<8x256xf32>
    %cst_39 = arith.constant 5.000000e-01 : f32
    %58 = vector.broadcast %cst_39 : f32 to vector<8x256xf32>
    %59 = arith.mulf %58, %57 : vector<8x256xf32>
    %60 = math.tanh %59 : vector<8x256xf32>
    %cst_40 = arith.constant 1.000000e+00 : f32
    %61 = vector.broadcast %cst_40 : f32 to vector<8x256xf32>
    %62 = arith.addf %61, %60 : vector<8x256xf32>
    %63 = arith.mulf %62, %35 : vector<8x256xf32>
    %64 = tpu.concatenate %49, %63 in 1 : vector<8x128xf32>, vector<8x256xf32> -> vector<8x384xf32>
    %c0_41 = arith.constant 0 : index
    %c0_42 = arith.constant 0 : index
    %65 = vector.load %arg9[%c0_41, %c0_42] : memref<384x1024xbf16, #tpu.memory_space<vmem>>, vector<384x1024xbf16>
    %66 = arith.truncf %64 : vector<8x384xf32> to vector<8x384xbf16>
    %cst_43 = arith.constant dense<0.000000e+00> : vector<8x1024xf32>
    %67 = tpu.matmul %66, %65, %cst_43 {dimension_numbers = #tpu.dot_dimension_numbers<[1], [0], [0], [1], [0, 0, 1, 1], [], []>} : vector<8x384xbf16>, vector<384x1024xbf16>, vector<8x1024xf32> -> vector<8x1024xf32>
    %c0_44 = arith.constant 0 : index
    %c0_45 = arith.constant 0 : index
    %68 = vector.load %arg10[%c0_44, %c0_45] : memref<1x1024xf32, #tpu.memory_space<vmem>>, vector<1x1024xf32>
    %69 = vector.broadcast %68 : vector<1x1024xf32> to vector<8x1024xf32>
    %70 = arith.addf %67, %69 : vector<8x1024xf32>
    %71 = vector.extract_strided_slice %70 {offsets = [0, 0], sizes = [8, 256], strides = [1, 1]} : vector<8x1024xf32> to vector<8x256xf32>
    %cst_46 = arith.constant 5.000000e-01 : f32
    %72 = vector.broadcast %cst_46 : f32 to vector<8x256xf32>
    %73 = arith.mulf %72, %71 : vector<8x256xf32>
    %74 = math.tanh %73 : vector<8x256xf32>
    %cst_47 = arith.constant 1.000000e+00 : f32
    %75 = vector.broadcast %cst_47 : f32 to vector<8x256xf32>
    %76 = arith.addf %74, %75 : vector<8x256xf32>
    %cst_48 = arith.constant 5.000000e-01 : f32
    %77 = vector.broadcast %cst_48 : f32 to vector<8x256xf32>
    %78 = arith.mulf %77, %76 : vector<8x256xf32>
    %79 = vector.extract_strided_slice %70 {offsets = [0, 256], sizes = [8, 256], strides = [1, 1]} : vector<8x1024xf32> to vector<8x256xf32>
    %cst_49 = arith.constant 5.000000e-01 : f32
    %80 = vector.broadcast %cst_49 : f32 to vector<8x256xf32>
    %81 = arith.mulf %80, %79 : vector<8x256xf32>
    %82 = math.tanh %81 : vector<8x256xf32>
    %cst_50 = arith.constant 1.000000e+00 : f32
    %83 = vector.broadcast %cst_50 : f32 to vector<8x256xf32>
    %84 = arith.addf %82, %83 : vector<8x256xf32>
    %cst_51 = arith.constant 5.000000e-01 : f32
    %85 = vector.broadcast %cst_51 : f32 to vector<8x256xf32>
    %86 = arith.mulf %85, %84 : vector<8x256xf32>
    %87 = vector.extract_strided_slice %70 {offsets = [0, 512], sizes = [8, 256], strides = [1, 1]} : vector<8x1024xf32> to vector<8x256xf32>
    %88 = math.tanh %87 : vector<8x256xf32>
    %89 = vector.extract_strided_slice %70 {offsets = [0, 768], sizes = [8, 256], strides = [1, 1]} : vector<8x1024xf32> to vector<8x256xf32>
    %cst_52 = arith.constant 5.000000e-01 : f32
    %90 = vector.broadcast %cst_52 : f32 to vector<8x256xf32>
    %91 = arith.mulf %90, %89 : vector<8x256xf32>
    %92 = math.tanh %91 : vector<8x256xf32>
    %cst_53 = arith.constant 1.000000e+00 : f32
    %93 = vector.broadcast %cst_53 : f32 to vector<8x256xf32>
    %94 = arith.addf %92, %93 : vector<8x256xf32>
    %cst_54 = arith.constant 5.000000e-01 : f32
    %95 = vector.broadcast %cst_54 : f32 to vector<8x256xf32>
    %96 = arith.mulf %95, %94 : vector<8x256xf32>
    %97 = arith.mulf %86, %7 : vector<8x256xf32>
    %98 = arith.mulf %78, %88 : vector<8x256xf32>
    %99 = arith.addf %97, %98 : vector<8x256xf32>
    %100 = math.tanh %99 : vector<8x256xf32>
    %101 = arith.mulf %96, %100 : vector<8x256xf32>
    %c0_55 = arith.constant 0 : index
    %c0_56 = arith.constant 0 : index
    %102 = vector.load %arg14[%c0_55, %c0_56] : memref<8x256xf32, #tpu.memory_space<vmem>>, vector<8x256xf32>
    tpu.vector_store %arg14[%c0_55, %c0_56], %101 {strides = array<i32>} : memref<8x256xf32, #tpu.memory_space<vmem>>, vector<8x256xf32>,
    %c0_57 = arith.constant 0 : index
    %c0_58 = arith.constant 0 : index
    %103 = vector.load %arg15[%c0_57, %c0_58] : memref<8x256xf32, #tpu.memory_space<vmem>>, vector<8x256xf32>
    tpu.vector_store %arg15[%c0_57, %c0_58], %99 {strides = array<i32>} : memref<8x256xf32, #tpu.memory_space<vmem>>, vector<8x256xf32>,
    %104 = arith.truncf %101 : vector<8x256xf32> to vector<8x256xbf16>
    %c0_59 = arith.constant 0 : index
    %c0_60 = arith.constant 0 : index
    %c0_61 = arith.constant 0 : index
    %105 = vector.load %arg11[%c0_59, %c0_60, %c0_61] : memref<1x8x256xbf16, #tpu.memory_space<vmem>>, vector<1x8x256xbf16>
    %106 = vector.shape_cast %105 : vector<1x8x256xbf16> to vector<8x256xbf16>
    %107 = vector.shape_cast %104 : vector<8x256xbf16> to vector<1x8x256xbf16>
    tpu.vector_store %arg11[%c0_59, %c0_60, %c0_61], %107 {strides = array<i32>} : memref<1x8x256xbf16, #tpu.memory_space<vmem>>, vector<1x8x256xbf16>,
    %c7_i32 = arith.constant 7 : i32
    %108 = arith.cmpi eq, %arg1, %c7_i32 : i32
    %109 = arith.extui %108 : i1 to i32
    %c0_i32_62 = arith.constant 0 : i32
    %110 = arith.cmpi ne, %109, %c0_i32_62 : i32
    scf.if %110 {
      %c0_63 = arith.constant 0 : index
      %c0_64 = arith.constant 0 : index
      %111 = vector.load %arg12[%c0_63, %c0_64] : memref<8x256xf32, #tpu.memory_space<vmem>>, vector<8x256xf32>
      tpu.vector_store %arg12[%c0_63, %c0_64], %101 {strides = array<i32>} : memref<8x256xf32, #tpu.memory_space<vmem>>, vector<8x256xf32>,
      %c0_65 = arith.constant 0 : index
      %c0_66 = arith.constant 0 : index
      %112 = vector.load %arg13[%c0_65, %c0_66] : memref<8x256xf32, #tpu.memory_space<vmem>>, vector<8x256xf32>
      tpu.vector_store %arg13[%c0_65, %c0_66], %99 {strides = array<i32>} : memref<8x256xf32, #tpu.memory_space<vmem>>, vector<8x256xf32>,
    } else {
    }
    return
  }
  func.func @transform_0(%arg0: i32, %arg1: i32) -> (i32, i32, i32) {
    %c0_i32 = arith.constant 0 : i32
    %c0_i32_0 = arith.constant 0 : i32
    return %arg1, %arg0, %c0_i32 : i32, i32, i32
  }
  func.func @transform_1(%arg0: i32, %arg1: i32) -> (i32, i32) {
    %c0_i32 = arith.constant 0 : i32
    %c0_i32_0 = arith.constant 0 : i32
    return %arg0, %c0_i32 : i32, i32
  }
  func.func @transform_2(%arg0: i32, %arg1: i32) -> (i32, i32) {
    %c0_i32 = arith.constant 0 : i32
    %c0_i32_0 = arith.constant 0 : i32
    return %arg0, %c0_i32 : i32, i32
  }
  func.func @transform_3(%arg0: i32, %arg1: i32) -> (i32, i32, i32) {
    %c0_i32 = arith.constant 0 : i32
    %c0_i32_0 = arith.constant 0 : i32
    %c0_i32_1 = arith.constant 0 : i32
    %c0_i32_2 = arith.constant 0 : i32
    return %c0_i32, %c0_i32_0, %c0_i32_1 : i32, i32, i32
  }
  func.func @transform_4(%arg0: i32, %arg1: i32) -> (i32, i32, i32) {
    %c0_i32 = arith.constant 0 : i32
    %c0_i32_0 = arith.constant 0 : i32
    %c0_i32_1 = arith.constant 0 : i32
    %c0_i32_2 = arith.constant 0 : i32
    return %c0_i32, %c0_i32_0, %c0_i32_1 : i32, i32, i32
  }
  func.func @transform_5(%arg0: i32, %arg1: i32) -> (i32, i32, i32) {
    %c0_i32 = arith.constant 0 : i32
    %c0_i32_0 = arith.constant 0 : i32
    %c0_i32_1 = arith.constant 0 : i32
    %c0_i32_2 = arith.constant 0 : i32
    return %c0_i32, %c0_i32_0, %c0_i32_1 : i32, i32, i32
  }
  func.func @transform_6(%arg0: i32, %arg1: i32) -> (i32, i32, i32) {
    %c0_i32 = arith.constant 0 : i32
    %c0_i32_0 = arith.constant 0 : i32
    %c0_i32_1 = arith.constant 0 : i32
    %c0_i32_2 = arith.constant 0 : i32
    return %c0_i32, %c0_i32_0, %c0_i32_1 : i32, i32, i32
  }
  func.func @transform_7(%arg0: i32, %arg1: i32) -> (i32, i32) {
    %c0_i32 = arith.constant 0 : i32
    %c0_i32_0 = arith.constant 0 : i32
    %c0_i32_1 = arith.constant 0 : i32
    return %c0_i32, %c0_i32_0 : i32, i32
  }
  func.func @transform_8(%arg0: i32, %arg1: i32) -> (i32, i32) {
    %c0_i32 = arith.constant 0 : i32
    %c0_i32_0 = arith.constant 0 : i32
    %c0_i32_1 = arith.constant 0 : i32
    return %c0_i32, %c0_i32_0 : i32, i32
  }
  func.func @transform_9(%arg0: i32, %arg1: i32) -> (i32, i32, i32) {
    %c0_i32 = arith.constant 0 : i32
    %c0_i32_0 = arith.constant 0 : i32
    return %arg1, %arg0, %c0_i32 : i32, i32, i32
  }
  func.func @transform_10(%arg0: i32, %arg1: i32) -> (i32, i32) {
    %c0_i32 = arith.constant 0 : i32
    %c0_i32_0 = arith.constant 0 : i32
    return %arg0, %c0_i32 : i32, i32
  }
  func.func @transform_11(%arg0: i32, %arg1: i32) -> (i32, i32) {
    %c0_i32 = arith.constant 0 : i32
    %c0_i32_0 = arith.constant 0 : i32
    return %arg0, %c0_i32 : i32, i32
  }
}

</mosaic_0001>

<llo_original>
// kernel: mogrifier_lstm_forward.3
$region0: #{mogrifier_lstm_forward.3}
  #allocation0 [shape = 'u32[]', space=smem, size = 0x4, offset = 0x4, fixed_abs, tag = 'smem constant byte address 0x4 - core index']
  #allocation1 [shape = 'u32[144,128]{1,0:T(1,128)}', space=vmem, size = 0x12000, scoped, tag = 'internal scratch']
  %s0 = inlined_call_operand.vmem [shape: bf16[128,256], index: 0, kind: input, shape index: {}]
  %s1 = inlined_call_operand.vmem [shape: bf16[256,512], index: 1, kind: input, shape index: {}]
  %s2 = inlined_call_operand.vmem [shape: f32[1,512], index: 2, kind: input, shape index: {}]
  %s3 = inlined_call_operand.hbm [shape: bf16[128,512], index: 3, kind: output, shape index: {}]
  %s4 = sld [smem:[#allocation0]]
  $region22: #{mogrifier_lstm_forward.3} parent=0
    _
  %s6 = ssub.s32 1, %s4
  %s7 = scalar_select 0, %s6, %s4
  $region1: #{mogrifier_lstm_forward.3} parent=0
    #allocation2 [shape = 'u8[131072]{0}', space=vmem, size = 0x20000, scoped, tag = 'output window, operand 0, single buffered']
    #allocation3 [shape = 's32[1]{0}', space=sflag, size = 0x4, scoped, tag = 'scoped memory for mogrifier_lstm_forward.3']
    %8 = vsyncpa [#allocation3], 0
    // Predicated region
    $region2: #{mogrifier_lstm_forward.3} parent=1 // pred_check
      _
    $region3: #{mogrifier_lstm_forward.3} parent=1 // pred_check_branch
      %10 = sbr.rel (0) target = $region5
    $region4: #{mogrifier_lstm_forward.3} parent=1 // pred_region
      _
    $region5: #{mogrifier_lstm_forward.3} parent=1 // pred_fallthru
      _
    // Predicated region
    $region6: #{mogrifier_lstm_forward.3} parent=1 // pred_check
      _
    $region7: #{mogrifier_lstm_forward.3} parent=1 // pred_check_branch
      %12 = sbr.rel (0) target = $region9
    $region8: #{mogrifier_lstm_forward.3} parent=1 // pred_region
      _
    $region9: #{mogrifier_lstm_forward.3} parent=1 // pred_fallthru
      _
    // Predicated region
    $region10: #{mogrifier_lstm_forward.3} parent=1 // pred_check
      _
    $region11: #{mogrifier_lstm_forward.3} parent=1 // pred_check_branch
      %14 = sbr.rel (0) target = $region13
    $region12: #{mogrifier_lstm_forward.3} parent=1 // pred_region
      _
    $region13: #{mogrifier_lstm_forward.3} parent=1 // pred_fallthru
      _
    %v15 = vld [vmem:[%s0] sm:$0xff]
    %v16 = vld [vmem:[%s0 + $0x8] sm:$0xff]
    %v17 = vld [vmem:[%s0 + $0x10] sm:$0xff]
    %v18 = vld [vmem:[%s0 + $0x18] sm:$0xff]
    %v19 = vld [vmem:[%s0 + $0x20] sm:$0xff]
    %v20 = vld [vmem:[%s0 + $0x28] sm:$0xff]
    %v21 = vld [vmem:[%s0 + $0x30] sm:$0xff]
    %v22 = vld [vmem:[%s0 + $0x38] sm:$0xff]
    %v23 = vld [vmem:[%s0 + $0x40] sm:$0xff]
    %v24 = vld [vmem:[%s0 + $0x48] sm:$0xff]
    %v25 = vld [vmem:[%s0 + $0x50] sm:$0xff]
    %v26 = vld [vmem:[%s0 + $0x58] sm:$0xff]
    %v27 = vld [vmem:[%s0 + $0x60] sm:$0xff]
    %v28 = vld [vmem:[%s0 + $0x68] sm:$0xff]
    %v29 = vld [vmem:[%s0 + $0x70] sm:$0xff]
    %v30 = vld [vmem:[%s0 + $0x78] sm:$0xff]
    %v31 = vld [vmem:[%s1] sm:$0xff]
    %v32 = vld [vmem:[%s1 + $0x8] sm:$0xff]
    %v33 = vld [vmem:[%s1 + $0x10] sm:$0xff]
    %v34 = vld [vmem:[%s1 + $0x18] sm:$0xff]
    %v35 = vld [vmem:[%s1 + $0x20] sm:$0xff]
    %v36 = vld [vmem:[%s1 + $0x28] sm:$0xff]
    %v37 = vld [vmem:[%s1 + $0x30] sm:$0xff]
    %v38 = vld [vmem:[%s1 + $0x38] sm:$0xff]
    %v39 = vld [vmem:[%s1 + $0x40] sm:$0xff]
    %v40 = vld [vmem:[%s1 + $0x48] sm:$0xff]
    %v41 = vld [vmem:[%s1 + $0x50] sm:$0xff]
    %v42 = vld [vmem:[%s1 + $0x58] sm:$0xff]
    %v43 = vld [vmem:[%s1 + $0x60] sm:$0xff]
    %v44 = vld [vmem:[%s1 + $0x68] sm:$0xff]
    %v45 = vld [vmem:[%s1 + $0x70] sm:$0xff]
    %v46 = vld [vmem:[%s1 + $0x78] sm:$0xff]
    %v47 = vld [vmem:[%s1 + $0x80] sm:$0xff]
    %v48 = vld [vmem:[%s1 + $0x88] sm:$0xff]
    %v49 = vld [vmem:[%s1 + $0x90] sm:$0xff]
    %v50 = vld [vmem:[%s1 + $0x98] sm:$0xff]
    %v51 = vld [vmem:[%s1 + $0xa0] sm:$0xff]
    %v52 = vld [vmem:[%s1 + $0xa8] sm:$0xff]
    %v53 = vld [vmem:[%s1 + $0xb0] sm:$0xff]
    %v54 = vld [vmem:[%s1 + $0xb8] sm:$0xff]
    %v55 = vld [vmem:[%s1 + $0xc0] sm:$0xff]
    %v56 = vld [vmem:[%s1 + $0xc8] sm:$0xff]
    %v57 = vld [vmem:[%s1 + $0xd0] sm:$0xff]
    %v58 = vld [vmem:[%s1 + $0xd8] sm:$0xff]
    %v59 = vld [vmem:[%s1 + $0xe0] sm:$0xff]
    %v60 = vld [vmem:[%s1 + $0xe8] sm:$0xff]
    %v61 = vld [vmem:[%s1 + $0xf0] sm:$0xff]
    %v62 = vld [vmem:[%s1 + $0xf8] sm:$0xff]
    %v63 = vld [vmem:[%s1 + $0x100] sm:$0xff]
    %v64 = vld [vmem:[%s1 + $0x108] sm:$0xff]
    %v65 = vld [vmem:[%s1 + $0x110] sm:$0xff]
    %v66 = vld [vmem:[%s1 + $0x118] sm:$0xff]
    %v67 = vld [vmem:[%s1 + $0x120] sm:$0xff]
    %v68 = vld [vmem:[%s1 + $0x128] sm:$0xff]
    %v69 = vld [vmem:[%s1 + $0x130] sm:$0xff]
    %v70 = vld [vmem:[%s1 + $0x138] sm:$0xff]
    %v71 = vld [vmem:[%s1 + $0x140] sm:$0xff]
    %v72 = vld [vmem:[%s1 + $0x148] sm:$0xff]
    %v73 = vld [vmem:[%s1 + $0x150] sm:$0xff]
    %v74 = vld [vmem:[%s1 + $0x158] sm:$0xff]
    %v75 = vld [vmem:[%s1 + $0x160] sm:$0xff]
    %v76 = vld [vmem:[%s1 + $0x168] sm:$0xff]
    %v77 = vld [vmem:[%s1 + $0x170] sm:$0xff]
    %v78 = vld [vmem:[%s1 + $0x178] sm:$0xff]
    %v79 = vld [vmem:[%s1 + $0x180] sm:$0xff]
    %v80 = vld [vmem:[%s1 + $0x188] sm:$0xff]
    %v81 = vld [vmem:[%s1 + $0x190] sm:$0xff]
    %v82 = vld [vmem:[%s1 + $0x198] sm:$0xff]
    %v83 = vld [vmem:[%s1 + $0x1a0] sm:$0xff]
    %v84 = vld [vmem:[%s1 + $0x1a8] sm:$0xff]
    %v85 = vld [vmem:[%s1 + $0x1b0] sm:$0xff]
    %v86 = vld [vmem:[%s1 + $0x1b8] sm:$0xff]
    %v87 = vld [vmem:[%s1 + $0x1c0] sm:$0xff]
    %v88 = vld [vmem:[%s1 + $0x1c8] sm:$0xff]
    %v89 = vld [vmem:[%s1 + $0x1d0] sm:$0xff]
    %v90 = vld [vmem:[%s1 + $0x1d8] sm:$0xff]
    %v91 = vld [vmem:[%s1 + $0x1e0] sm:$0xff]
    %v92 = vld [vmem:[%s1 + $0x1e8] sm:$0xff]
    %v93 = vld [vmem:[%s1 + $0x1f0] sm:$0xff]
    %v94 = vld [vmem:[%s1 + $0x1f8] sm:$0xff]
    %v95 = vld [vmem:[%s2] sm:$0xf]
    %v97 = vlaneseq
    %v98 = vshrl.u32 %v97, 7
    %v99 = vsub.s32 0, %v98
    %v100 = vrot.slane %v95, %v99
    %v101 = vlaneseq
    %v102 = vshrl.u32 %v101, 7
    %v103 = vsub.s32 1, %v102
    %v104 = vrot.slane %v95, %v103
    %v105 = vlaneseq
    %v106 = vshrl.u32 %v105, 7
    %v107 = vsub.s32 2, %v106
    %v108 = vrot.slane %v95, %v107
    %v109 = vlaneseq
    %v110 = vshrl.u32 %v109, 7
    %v111 = vsub.s32 3, %v110
    %v112 = vrot.slane %v95, %v111
    %v133 = vunpack.c.l.b16 %v15
    %v134 = vunpack.c.h.b16 %v15
    %v135 = vunpack.c.l.b16 %v16
    %v136 = vunpack.c.h.b16 %v16
    %v137 = vunpack.c.l.b16 %v17
    %v138 = vunpack.c.h.b16 %v17
    %v139 = vunpack.c.l.b16 %v18
    %v140 = vunpack.c.h.b16 %v18
    %v141 = vunpack.c.l.b16 %v19
    %v142 = vunpack.c.h.b16 %v19
    %v143 = vunpack.c.l.b16 %v20
    %v144 = vunpack.c.h.b16 %v20
    %v145 = vunpack.c.l.b16 %v21
    %v146 = vunpack.c.h.b16 %v21
    %v147 = vunpack.c.l.b16 %v22
    %v148 = vunpack.c.h.b16 %v22
    %v149 = vunpack.c.l.b16 %v23
    %v150 = vunpack.c.h.b16 %v23
    %v151 = vunpack.c.l.b16 %v24
    %v152 = vunpack.c.h.b16 %v24
    %v153 = vunpack.c.l.b16 %v25
    %v154 = vunpack.c.h.b16 %v25
    %v155 = vunpack.c.l.b16 %v26
    %v156 = vunpack.c.h.b16 %v26
    %v157 = vunpack.c.l.b16 %v27
    %v158 = vunpack.c.h.b16 %v27
    %v159 = vunpack.c.l.b16 %v28
    %v160 = vunpack.c.h.b16 %v28
    %v161 = vunpack.c.l.b16 %v29
    %v162 = vunpack.c.h.b16 %v29
    %v163 = vunpack.c.l.b16 %v30
    %v164 = vunpack.c.h.b16 %v30
    %v165 = vpack.c.b16 %v135, %v133
    %v166 = vpack.c.b16 %v136, %v134
    %v167 = vpack.c.b16 %v139, %v137
    %v168 = vpack.c.b16 %v140, %v138
    %v169 = vpack.c.b16 %v143, %v141
    %v170 = vpack.c.b16 %v144, %v142
    %v171 = vpack.c.b16 %v147, %v145
    %v172 = vpack.c.b16 %v148, %v146
    %v173 = vpack.c.b16 %v151, %v149
    %v174 = vpack.c.b16 %v152, %v150
    %v175 = vpack.c.b16 %v155, %v153
    %v176 = vpack.c.b16 %v156, %v154
    %v177 = vpack.c.b16 %v159, %v157
    %v178 = vpack.c.b16 %v160, %v158
    %v179 = vpack.c.b16 %v163, %v161
    %v180 = vpack.c.b16 %v164, %v162
    %v261 = vunpack.c.l.b16 %v31
    %v262 = vunpack.c.h.b16 %v31
    %v263 = vunpack.c.l.b16 %v32
    %v264 = vunpack.c.h.b16 %v32
    %v265 = vunpack.c.l.b16 %v33
    %v266 = vunpack.c.h.b16 %v33
    %v267 = vunpack.c.l.b16 %v34
    %v268 = vunpack.c.h.b16 %v34
    %v269 = vunpack.c.l.b16 %v35
    %v270 = vunpack.c.h.b16 %v35
    %v271 = vunpack.c.l.b16 %v36
    %v272 = vunpack.c.h.b16 %v36
    %v273 = vunpack.c.l.b16 %v37
    %v274 = vunpack.c.h.b16 %v37
    %v275 = vunpack.c.l.b16 %v38
    %v276 = vunpack.c.h.b16 %v38
    %v277 = vunpack.c.l.b16 %v39
    %v278 = vunpack.c.h.b16 %v39
    %v279 = vunpack.c.l.b16 %v40
    %v280 = vunpack.c.h.b16 %v40
    %v281 = vunpack.c.l.b16 %v41
    %v282 = vunpack.c.h.b16 %v41
    %v283 = vunpack.c.l.b16 %v42
    %v284 = vunpack.c.h.b16 %v42
    %v285 = vunpack.c.l.b16 %v43
    %v286 = vunpack.c.h.b16 %v43
    %v287 = vunpack.c.l.b16 %v44
    %v288 = vunpack.c.h.b16 %v44
    %v289 = vunpack.c.l.b16 %v45
    %v290 = vunpack.c.h.b16 %v45
    %v291 = vunpack.c.l.b16 %v46
    %v292 = vunpack.c.h.b16 %v46
    %v293 = vunpack.c.l.b16 %v47
    %v294 = vunpack.c.h.b16 %v47
    %v295 = vunpack.c.l.b16 %v48
    %v296 = vunpack.c.h.b16 %v48
    %v297 = vunpack.c.l.b16 %v49
    %v298 = vunpack.c.h.b16 %v49
    %v299 = vunpack.c.l.b16 %v50
    %v300 = vunpack.c.h.b16 %v50
    %v301 = vunpack.c.l.b16 %v51
    %v302 = vunpack.c.h.b16 %v51
    %v303 = vunpack.c.l.b16 %v52
    %v304 = vunpack.c.h.b16 %v52
    %v305 = vunpack.c.l.b16 %v53
    %v306 = vunpack.c.h.b16 %v53
    %v307 = vunpack.c.l.b16 %v54
    %v308 = vunpack.c.h.b16 %v54
    %v309 = vunpack.c.l.b16 %v55
    %v310 = vunpack.c.h.b16 %v55
    %v311 = vunpack.c.l.b16 %v56
    %v312 = vunpack.c.h.b16 %v56
    %v313 = vunpack.c.l.b16 %v57
    %v314 = vunpack.c.h.b16 %v57
    %v315 = vunpack.c.l.b16 %v58
    %v316 = vunpack.c.h.b16 %v58
    %v317 = vunpack.c.l.b16 %v59
    %v318 = vunpack.c.h.b16 %v59
    %v319 = vunpack.c.l.b16 %v60
    %v320 = vunpack.c.h.b16 %v60
    %v321 = vunpack.c.l.b16 %v61
    %v322 = vunpack.c.h.b16 %v61
    %v323 = vunpack.c.l.b16 %v62
    %v324 = vunpack.c.h.b16 %v62
    %v325 = vunpack.c.l.b16 %v63
    %v326 = vunpack.c.h.b16 %v63
    %v327 = vunpack.c.l.b16 %v64
    %v328 = vunpack.c.h.b16 %v64
    %v329 = vunpack.c.l.b16 %v65
    %v330 = vunpack.c.h.b16 %v65
    %v331 = vunpack.c.l.b16 %v66
    %v332 = vunpack.c.h.b16 %v66
    %v333 = vunpack.c.l.b16 %v67
    %v334 = vunpack.c.h.b16 %v67
    %v335 = vunpack.c.l.b16 %v68
    %v336 = vunpack.c.h.b16 %v68
    %v337 = vunpack.c.l.b16 %v69
    %v338 = vunpack.c.h.b16 %v69
    %v339 = vunpack.c.l.b16 %v70
    %v340 = vunpack.c.h.b16 %v70
    %v341 = vunpack.c.l.b16 %v71
    %v342 = vunpack.c.h.b16 %v71
    %v343 = vunpack.c.l.b16 %v72
    %v344 = vunpack.c.h.b16 %v72
    %v345 = vunpack.c.l.b16 %v73
    %v346 = vunpack.c.h.b16 %v73
    %v347 = vunpack.c.l.b16 %v74
    %v348 = vunpack.c.h.b16 %v74
    %v349 = vunpack.c.l.b16 %v75
    %v350 = vunpack.c.h.b16 %v75
    %v351 = vunpack.c.l.b16 %v76
    %v352 = vunpack.c.h.b16 %v76
    %v353 = vunpack.c.l.b16 %v77
    %v354 = vunpack.c.h.b16 %v77
    %v355 = vunpack.c.l.b16 %v78
    %v356 = vunpack.c.h.b16 %v78
    %v357 = vunpack.c.l.b16 %v79
    %v358 = vunpack.c.h.b16 %v79
    %v359 = vunpack.c.l.b16 %v80
    %v360 = vunpack.c.h.b16 %v80
    %v361 = vunpack.c.l.b16 %v81
    %v362 = vunpack.c.h.b16 %v81
    %v363 = vunpack.c.l.b16 %v82
    %v364 = vunpack.c.h.b16 %v82
    %v365 = vunpack.c.l.b16 %v83
    %v366 = vunpack.c.h.b16 %v83
    %v367 = vunpack.c.l.b16 %v84
    %v368 = vunpack.c.h.b16 %v84
    %v369 = vunpack.c.l.b16 %v85
    %v370 = vunpack.c.h.b16 %v85
    %v371 = vunpack.c.l.b16 %v86
    %v372 = vunpack.c.h.b16 %v86
    %v373 = vunpack.c.l.b16 %v87
    %v374 = vunpack.c.h.b16 %v87
    %v375 = vunpack.c.l.b16 %v88
    %v376 = vunpack.c.h.b16 %v88
    %v377 = vunpack.c.l.b16 %v89
    %v378 = vunpack.c.h.b16 %v89
    %v379 = vunpack.c.l.b16 %v90
    %v380 = vunpack.c.h.b16 %v90
    %v381 = vunpack.c.l.b16 %v91
    %v382 = vunpack.c.h.b16 %v91
    %v383 = vunpack.c.l.b16 %v92
    %v384 = vunpack.c.h.b16 %v92
    %v385 = vunpack.c.l.b16 %v93
    %v386 = vunpack.c.h.b16 %v93
    %v387 = vunpack.c.l.b16 %v94
    %v388 = vunpack.c.h.b16 %v94
    %v389 = vpack.c.b16 %v265, %v261
    %v390 = vpack.c.b16 %v266, %v262
    %v391 = vpack.c.b16 %v267, %v263
    %v392 = vpack.c.b16 %v268, %v264
    %v393 = vpack.c.b16 %v273, %v269
    %v394 = vpack.c.b16 %v274, %v270
    %v395 = vpack.c.b16 %v275, %v271
    %v396 = vpack.c.b16 %v276, %v272
    %v397 = vpack.c.b16 %v281, %v277
    %v398 = vpack.c.b16 %v282, %v278
    %v399 = vpack.c.b16 %v283, %v279
    %v400 = vpack.c.b16 %v284, %v280
    %v401 = vpack.c.b16 %v289, %v285
    %v402 = vpack.c.b16 %v290, %v286
    %v403 = vpack.c.b16 %v291, %v287
    %v404 = vpack.c.b16 %v292, %v288
    %v405 = vpack.c.b16 %v297, %v293
    %v406 = vpack.c.b16 %v298, %v294
    %v407 = vpack.c.b16 %v299, %v295
    %v408 = vpack.c.b16 %v300, %v296
    %v409 = vpack.c.b16 %v305, %v301
    %v410 = vpack.c.b16 %v306, %v302
    %v411 = vpack.c.b16 %v307, %v303
    %v412 = vpack.c.b16 %v308, %v304
    %v413 = vpack.c.b16 %v313, %v309
    %v414 = vpack.c.b16 %v314, %v310
    %v415 = vpack.c.b16 %v315, %v311
    %v416 = vpack.c.b16 %v316, %v312
    %v417 = vpack.c.b16 %v321, %v317
    %v418 = vpack.c.b16 %v322, %v318
    %v419 = vpack.c.b16 %v323, %v319
    %v420 = vpack.c.b16 %v324, %v320
    %v421 = vpack.c.b16 %v329, %v325
    %v422 = vpack.c.b16 %v330, %v326
    %v423 = vpack.c.b16 %v331, %v327
    %v424 = vpack.c.b16 %v332, %v328
    %v425 = vpack.c.b16 %v337, %v333
    %v426 = vpack.c.b16 %v338, %v334
    %v427 = vpack.c.b16 %v339, %v335
    %v428 = vpack.c.b16 %v340, %v336
    %v429 = vpack.c.b16 %v345, %v341
    %v430 = vpack.c.b16 %v346, %v342
    %v431 = vpack.c.b16 %v347, %v343
    %v432 = vpack.c.b16 %v348, %v344
    %v433 = vpack.c.b16 %v353, %v349
    %v434 = vpack.c.b16 %v354, %v350
    %v435 = vpack.c.b16 %v355, %v351
    %v436 = vpack.c.b16 %v356, %v352
    %v437 = vpack.c.b16 %v361, %v357
    %v438 = vpack.c.b16 %v362, %v358
    %v439 = vpack.c.b16 %v363, %v359
    %v440 = vpack.c.b16 %v364, %v360
    %v441 = vpack.c.b16 %v369, %v365
    %v442 = vpack.c.b16 %v370, %v366
    %v443 = vpack.c.b16 %v371, %v367
    %v444 = vpack.c.b16 %v372, %v368
    %v445 = vpack.c.b16 %v377, %v373
    %v446 = vpack.c.b16 %v378, %v374
    %v447 = vpack.c.b16 %v379, %v375
    %v448 = vpack.c.b16 %v380, %v376
    %v449 = vpack.c.b16 %v385, %v381
    %v450 = vpack.c.b16 %v386, %v382
    %v451 = vpack.c.b16 %v387, %v383
    %v452 = vpack.c.b16 %v388, %v384
    %517 = vmatprep.subr.bf16.mxu0 %v390
    %518 = vmatpush1.bf16.msra.mxu0 %v389
    %519 = vmatprep.subr.bf16.mxu0 %v394
    %520 = vmatpush1.bf16.msra.mxu0 %v393
    %521 = vmatprep.subr.bf16.mxu0 %v398
    %522 = vmatpush1.bf16.msra.mxu0 %v397
    %523 = vmatprep.subr.bf16.mxu0 %v402
    %524 = vmatpush1.bf16.msra.mxu0 %v401
    %525 = vmatprep.subr.bf16.mxu0 %v406
    %526 = vmatpush1.bf16.msra.mxu0 %v405
    %527 = vmatprep.subr.bf16.mxu0 %v410
    %528 = vmatpush1.bf16.msra.mxu0 %v409
    %529 = vmatprep.subr.bf16.mxu0 %v414
    %530 = vmatpush1.bf16.msra.mxu0 %v413
    %531 = vmatprep.subr.bf16.mxu0 %v418
    %532 = vmatpush1.bf16.msra.mxu0 %v417
    %533 = vmatprep.subr.bf16.mxu0 %v422
    %534 = vmatpush1.bf16.msra.mxu0 %v421
    %535 = vmatprep.subr.bf16.mxu0 %v426
    %536 = vmatpush1.bf16.msra.mxu0 %v425
    %537 = vmatprep.subr.bf16.mxu0 %v430
    %538 = vmatpush1.bf16.msra.mxu0 %v429
    %539 = vmatprep.subr.bf16.mxu0 %v434
    %540 = vmatpush1.bf16.msra.mxu0 %v433
    %541 = vmatprep.subr.bf16.mxu0 %v438
    %542 = vmatpush1.bf16.msra.mxu0 %v437
    %543 = vmatprep.subr.bf16.mxu0 %v442
    %544 = vmatpush1.bf16.msra.mxu0 %v441
    %545 = vmatprep.subr.bf16.mxu0 %v446
    %546 = vmatpush1.bf16.msra.mxu0 %v445
    %547 = vmatprep.subr.bf16.mxu0 %v450
    %548 = vmatpush1.bf16.msra.mxu0 %v449
    %549 = vmatprep.mubr.bf16.mxu0 %v166
    %550 = vmatmul.mubr.bf16.gmra.mrb[0].mxu0 %v165
    %v551 = vpop.f32.mrb[0].mxu0
    %v552 = vadd.f32 %v100, %v551
    %v553 = vpop.f32.mrb[0].mxu0
    %v554 = vadd.f32 %v104, %v553
    %v555 = vpop.f32.mrb[0].mxu0
    %v556 = vadd.f32 %v100, %v555
    %v557 = vpop.f32.mrb[0].mxu0
    %v558 = vadd.f32 %v104, %v557
    %559 = vmatprep.mubr.bf16.mxu0 %v168
    %560 = vmatmul.mubr.bf16.gmra.mrb[0].mxu0 %v167
    %v561 = vpop.f32.mrb[0].mxu0
    %v562 = vadd.f32 %v100, %v561
    %v563 = vpop.f32.mrb[0].mxu0
    %v564 = vadd.f32 %v104, %v563
    %v565 = vpop.f32.mrb[0].mxu0
    %v566 = vadd.f32 %v100, %v565
    %v567 = vpop.f32.mrb[0].mxu0
    %v568 = vadd.f32 %v104, %v567
    %569 = vmatprep.mubr.bf16.mxu0 %v170
    %570 = vmatmul.mubr.bf16.gmra.mrb[0].mxu0 %v169
    %v571 = vpop.f32.mrb[0].mxu0
    %v572 = vadd.f32 %v100, %v571
    %v573 = vpop.f32.mrb[0].mxu0
    %v574 = vadd.f32 %v104, %v573
    %v575 = vpop.f32.mrb[0].mxu0
    %v576 = vadd.f32 %v100, %v575
    %v577 = vpop.f32.mrb[0].mxu0
    %v578 = vadd.f32 %v104, %v577
    %579 = vmatprep.mubr.bf16.mxu0 %v172
    %580 = vmatmul.mubr.bf16.gmra.mrb[0].mxu0 %v171
    %v581 = vpop.f32.mrb[0].mxu0
    %v582 = vadd.f32 %v100, %v581
    %v583 = vpop.f32.mrb[0].mxu0
    %v584 = vadd.f32 %v104, %v583
    %v585 = vpop.f32.mrb[0].mxu0
    %v586 = vadd.f32 %v100, %v585
    %v587 = vpop.f32.mrb[0].mxu0
    %v588 = vadd.f32 %v104, %v587
    %589 = vmatprep.mubr.bf16.mxu0 %v174
    %590 = vmatmul.mubr.bf16.gmra.mrb[0].mxu0 %v173
    %v591 = vpop.f32.mrb[0].mxu0
    %v592 = vadd.f32 %v100, %v591
    %v593 = vpop.f32.mrb[0].mxu0
    %v594 = vadd.f32 %v104, %v593
    %v595 = vpop.f32.mrb[0].mxu0
    %v596 = vadd.f32 %v100, %v595
    %v597 = vpop.f32.mrb[0].mxu0
    %v598 = vadd.f32 %v104, %v597
    %599 = vmatprep.mubr.bf16.mxu0 %v176
    %600 = vmatmul.mubr.bf16.gmra.mrb[0].mxu0 %v175
    %v601 = vpop.f32.mrb[0].mxu0
    %v602 = vadd.f32 %v100, %v601
    %v603 = vpop.f32.mrb[0].mxu0
    %v604 = vadd.f32 %v104, %v603
    %v605 = vpop.f32.mrb[0].mxu0
    %v606 = vadd.f32 %v100, %v605
    %v607 = vpop.f32.mrb[0].mxu0
    %v608 = vadd.f32 %v104, %v607
    %609 = vmatprep.mubr.bf16.mxu0 %v178
    %610 = vmatmul.mubr.bf16.gmra.mrb[0].mxu0 %v177
    %v611 = vpop.f32.mrb[0].mxu0
    %v612 = vadd.f32 %v100, %v611
    %v613 = vpop.f32.mrb[0].mxu0
    %v614 = vadd.f32 %v104, %v613
    %v615 = vpop.f32.mrb[0].mxu0
    %v616 = vadd.f32 %v100, %v615
    %v617 = vpop.f32.mrb[0].mxu0
    %v618 = vadd.f32 %v104, %v617
    %619 = vmatprep.mubr.bf16.mxu0 %v180
    %620 = vmatmul.mubr.bf16.gmra.mrb[0].mxu0 %v179
    %v621 = vpop.f32.mrb[0].mxu0
    %v622 = vadd.f32 %v100, %v621
    %v623 = vpop.f32.mrb[0].mxu0
    %v624 = vadd.f32 %v104, %v623
    %v625 = vpop.f32.mrb[0].mxu0
    %v626 = vadd.f32 %v100, %v625
    %v627 = vpop.f32.mrb[0].mxu0
    %v628 = vadd.f32 %v104, %v627
    %629 = vdwg.mxu0
    %630 = vmatprep.subr.bf16.mxu0 %v392
    %631 = vmatpush1.bf16.msra.mxu0 %v391
    %632 = vmatprep.subr.bf16.mxu0 %v396
    %633 = vmatpush1.bf16.msra.mxu0 %v395
    %634 = vmatprep.subr.bf16.mxu0 %v400
    %635 = vmatpush1.bf16.msra.mxu0 %v399
    %636 = vmatprep.subr.bf16.mxu0 %v404
    %637 = vmatpush1.bf16.msra.mxu0 %v403
    %638 = vmatprep.subr.bf16.mxu0 %v408
    %639 = vmatpush1.bf16.msra.mxu0 %v407
    %640 = vmatprep.subr.bf16.mxu0 %v412
    %641 = vmatpush1.bf16.msra.mxu0 %v411
    %642 = vmatprep.subr.bf16.mxu0 %v416
    %643 = vmatpush1.bf16.msra.mxu0 %v415
    %644 = vmatprep.subr.bf16.mxu0 %v420
    %645 = vmatpush1.bf16.msra.mxu0 %v419
    %646 = vmatprep.subr.bf16.mxu0 %v424
    %647 = vmatpush1.bf16.msra.mxu0 %v423
    %648 = vmatprep.subr.bf16.mxu0 %v428
    %649 = vmatpush1.bf16.msra.mxu0 %v427
    %650 = vmatprep.subr.bf16.mxu0 %v432
    %651 = vmatpush1.bf16.msra.mxu0 %v431
    %652 = vmatprep.subr.bf16.mxu0 %v436
    %653 = vmatpush1.bf16.msra.mxu0 %v435
    %654 = vmatprep.subr.bf16.mxu0 %v440
    %655 = vmatpush1.bf16.msra.mxu0 %v439
    %656 = vmatprep.subr.bf16.mxu0 %v444
    %657 = vmatpush1.bf16.msra.mxu0 %v443
    %658 = vmatprep.subr.bf16.mxu0 %v448
    %659 = vmatpush1.bf16.msra.mxu0 %v447
    %660 = vmatprep.subr.bf16.mxu0 %v452
    %661 = vmatpush1.bf16.msra.mxu0 %v451
    %662 = vmatprep.mubr.bf16.mxu0 %v166
    %663 = vmatmul.mubr.bf16.gmra.mrb[0].mxu0 %v165
    %v664 = vpop.f32.mrb[0].mxu0
    %v665 = vadd.f32 %v108, %v664
    %v666 = vpop.f32.mrb[0].mxu0
    %v667 = vadd.f32 %v112, %v666
    %v668 = vpop.f32.mrb[0].mxu0
    %v669 = vadd.f32 %v108, %v668
    %v670 = vpop.f32.mrb[0].mxu0
    %v671 = vadd.f32 %v112, %v670
    %672 = vmatprep.mubr.bf16.mxu0 %v168
    %673 = vmatmul.mubr.bf16.gmra.mrb[0].mxu0 %v167
    %v674 = vpop.f32.mrb[0].mxu0
    %v675 = vadd.f32 %v108, %v674
    %v676 = vpop.f32.mrb[0].mxu0
    %v677 = vadd.f32 %v112, %v676
    %v678 = vpop.f32.mrb[0].mxu0
    %v679 = vadd.f32 %v108, %v678
    %v680 = vpop.f32.mrb[0].mxu0
    %v681 = vadd.f32 %v112, %v680
    %682 = vmatprep.mubr.bf16.mxu0 %v170
    %683 = vmatmul.mubr.bf16.gmra.mrb[0].mxu0 %v169
    %v684 = vpop.f32.mrb[0].mxu0
    %v685 = vadd.f32 %v108, %v684
    %v686 = vpop.f32.mrb[0].mxu0
    %v687 = vadd.f32 %v112, %v686
    %v688 = vpop.f32.mrb[0].mxu0
    %v689 = vadd.f32 %v108, %v688
    %v690 = vpop.f32.mrb[0].mxu0
    %v691 = vadd.f32 %v112, %v690
    %692 = vmatprep.mubr.bf16.mxu0 %v172
    %693 = vmatmul.mubr.bf16.gmra.mrb[0].mxu0 %v171
    %v694 = vpop.f32.mrb[0].mxu0
    %v695 = vadd.f32 %v108, %v694
    %v696 = vpop.f32.mrb[0].mxu0
    %v697 = vadd.f32 %v112, %v696
    %v698 = vpop.f32.mrb[0].mxu0
    %v699 = vadd.f32 %v108, %v698
    %v700 = vpop.f32.mrb[0].mxu0
    %v701 = vadd.f32 %v112, %v700
    %702 = vmatprep.mubr.bf16.mxu0 %v174
    %703 = vmatmul.mubr.bf16.gmra.mrb[0].mxu0 %v173
    %v704 = vpop.f32.mrb[0].mxu0
    %v705 = vadd.f32 %v108, %v704
    %v706 = vpop.f32.mrb[0].mxu0
    %v707 = vadd.f32 %v112, %v706
    %v708 = vpop.f32.mrb[0].mxu0
    %v709 = vadd.f32 %v108, %v708
    %v710 = vpop.f32.mrb[0].mxu0
    %v711 = vadd.f32 %v112, %v710
    %712 = vmatprep.mubr.bf16.mxu0 %v176
    %713 = vmatmul.mubr.bf16.gmra.mrb[0].mxu0 %v175
    %v714 = vpop.f32.mrb[0].mxu0
    %v715 = vadd.f32 %v108, %v714
    %v716 = vpop.f32.mrb[0].mxu0
    %v717 = vadd.f32 %v112, %v716
    %v718 = vpop.f32.mrb[0].mxu0
    %v719 = vadd.f32 %v108, %v718
    %v720 = vpop.f32.mrb[0].mxu0
    %v721 = vadd.f32 %v112, %v720
    %722 = vmatprep.mubr.bf16.mxu0 %v178
    %723 = vmatmul.mubr.bf16.gmra.mrb[0].mxu0 %v177
    %v724 = vpop.f32.mrb[0].mxu0
    %v725 = vadd.f32 %v108, %v724
    %v726 = vpop.f32.mrb[0].mxu0
    %v727 = vadd.f32 %v112, %v726
    %v728 = vpop.f32.mrb[0].mxu0
    %v729 = vadd.f32 %v108, %v728
    %v730 = vpop.f32.mrb[0].mxu0
    %v731 = vadd.f32 %v112, %v730
    %732 = vmatprep.mubr.bf16.mxu0 %v180
    %733 = vmatmul.mubr.bf16.gmra.mrb[0].mxu0 %v179
    %v734 = vpop.f32.mrb[0].mxu0
    %v735 = vadd.f32 %v108, %v734
    %v736 = vpop.f32.mrb[0].mxu0
    %v737 = vadd.f32 %v112, %v736
    %v738 = vpop.f32.mrb[0].mxu0
    %v739 = vadd.f32 %v108, %v738
    %v740 = vpop.f32.mrb[0].mxu0
    %v741 = vadd.f32 %v112, %v740
    %742 = vdwg.mxu0
    %v743 = vpack.c.bf16 %v556, %v552
    %v744 = vpack.c.bf16 %v558, %v554
    %v745 = vpack.c.bf16 %v669, %v665
    %v746 = vpack.c.bf16 %v671, %v667
    %v747 = vpack.c.bf16 %v566, %v562
    %v748 = vpack.c.bf16 %v568, %v564
    %v749 = vpack.c.bf16 %v679, %v675
    %v750 = vpack.c.bf16 %v681, %v677
    %v751 = vpack.c.bf16 %v576, %v572
    %v752 = vpack.c.bf16 %v578, %v574
    %v753 = vpack.c.bf16 %v689, %v685
    %v754 = vpack.c.bf16 %v691, %v687
    %v755 = vpack.c.bf16 %v586, %v582
    %v756 = vpack.c.bf16 %v588, %v584
    %v757 = vpack.c.bf16 %v699, %v695
    %v758 = vpack.c.bf16 %v701, %v697
    %v759 = vpack.c.bf16 %v596, %v592
    %v760 = vpack.c.bf16 %v598, %v594
    %v761 = vpack.c.bf16 %v709, %v705
    %v762 = vpack.c.bf16 %v711, %v707
    %v763 = vpack.c.bf16 %v606, %v602
    %v764 = vpack.c.bf16 %v608, %v604
    %v765 = vpack.c.bf16 %v719, %v715
    %v766 = vpack.c.bf16 %v721, %v717
    %v767 = vpack.c.bf16 %v616, %v612
    %v768 = vpack.c.bf16 %v618, %v614
    %v769 = vpack.c.bf16 %v729, %v725
    %v770 = vpack.c.bf16 %v731, %v727
    %v771 = vpack.c.bf16 %v626, %v622
    %v772 = vpack.c.bf16 %v628, %v624
    %v773 = vpack.c.bf16 %v739, %v735
    %v774 = vpack.c.bf16 %v741, %v737
    %v807 = vunpack.c.l.b16 %v743
    %v808 = vunpack.c.l.b16 %v744
    %v809 = vunpack.c.l.b16 %v745
    %v810 = vunpack.c.l.b16 %v746
    %v811 = vunpack.c.h.b16 %v743
    %v812 = vunpack.c.h.b16 %v744
    %v813 = vunpack.c.h.b16 %v745
    %v814 = vunpack.c.h.b16 %v746
    %v815 = vunpack.c.l.b16 %v747
    %v816 = vunpack.c.l.b16 %v748
    %v817 = vunpack.c.l.b16 %v749
    %v818 = vunpack.c.l.b16 %v750
    %v819 = vunpack.c.h.b16 %v747
    %v820 = vunpack.c.h.b16 %v748
    %v821 = vunpack.c.h.b16 %v749
    %v822 = vunpack.c.h.b16 %v750
    %v823 = vunpack.c.l.b16 %v751
    %v824 = vunpack.c.l.b16 %v752
    %v825 = vunpack.c.l.b16 %v753
    %v826 = vunpack.c.l.b16 %v754
    %v827 = vunpack.c.h.b16 %v751
    %v828 = vunpack.c.h.b16 %v752
    %v829 = vunpack.c.h.b16 %v753
    %v830 = vunpack.c.h.b16 %v754
    %v831 = vunpack.c.l.b16 %v755
    %v832 = vunpack.c.l.b16 %v756
    %v833 = vunpack.c.l.b16 %v757
    %v834 = vunpack.c.l.b16 %v758
    %v835 = vunpack.c.h.b16 %v755
    %v836 = vunpack.c.h.b16 %v756
    %v837 = vunpack.c.h.b16 %v757
    %v838 = vunpack.c.h.b16 %v758
    %v839 = vunpack.c.l.b16 %v759
    %v840 = vunpack.c.l.b16 %v760
    %v841 = vunpack.c.l.b16 %v761
    %v842 = vunpack.c.l.b16 %v762
    %v843 = vunpack.c.h.b16 %v759
    %v844 = vunpack.c.h.b16 %v760
    %v845 = vunpack.c.h.b16 %v761
    %v846 = vunpack.c.h.b16 %v762
    %v847 = vunpack.c.l.b16 %v763
    %v848 = vunpack.c.l.b16 %v764
    %v849 = vunpack.c.l.b16 %v765
    %v850 = vunpack.c.l.b16 %v766
    %v851 = vunpack.c.h.b16 %v763
    %v852 = vunpack.c.h.b16 %v764
    %v853 = vunpack.c.h.b16 %v765
    %v854 = vunpack.c.h.b16 %v766
    %v855 = vunpack.c.l.b16 %v767
    %v856 = vunpack.c.l.b16 %v768
    %v857 = vunpack.c.l.b16 %v769
    %v858 = vunpack.c.l.b16 %v770
    %v859 = vunpack.c.h.b16 %v767
    %v860 = vunpack.c.h.b16 %v768
    %v861 = vunpack.c.h.b16 %v769
    %v862 = vunpack.c.h.b16 %v770
    %v863 = vunpack.c.l.b16 %v771
    %v864 = vunpack.c.l.b16 %v772
    %v865 = vunpack.c.l.b16 %v773
    %v866 = vunpack.c.l.b16 %v774
    %v867 = vunpack.c.h.b16 %v771
    %v868 = vunpack.c.h.b16 %v772
    %v869 = vunpack.c.h.b16 %v773
    %v870 = vunpack.c.h.b16 %v774
    %v871 = vpack.c.b16 %v808, %v807
    %v872 = vpack.c.b16 %v810, %v809
    %v873 = vpack.c.b16 %v812, %v811
    %v874 = vpack.c.b16 %v814, %v813
    %v875 = vpack.c.b16 %v816, %v815
    %v876 = vpack.c.b16 %v818, %v817
    %v877 = vpack.c.b16 %v820, %v819
    %v878 = vpack.c.b16 %v822, %v821
    %v879 = vpack.c.b16 %v824, %v823
    %v880 = vpack.c.b16 %v826, %v825
    %v881 = vpack.c.b16 %v828, %v827
    %v882 = vpack.c.b16 %v830, %v829
    %v883 = vpack.c.b16 %v832, %v831
    %v884 = vpack.c.b16 %v834, %v833
    %v885 = vpack.c.b16 %v836, %v835
    %v886 = vpack.c.b16 %v838, %v837
    %v887 = vpack.c.b16 %v840, %v839
    %v888 = vpack.c.b16 %v842, %v841
    %v889 = vpack.c.b16 %v844, %v843
    %v890 = vpack.c.b16 %v846, %v845
    %v891 = vpack.c.b16 %v848, %v847
    %v892 = vpack.c.b16 %v850, %v849
    %v893 = vpack.c.b16 %v852, %v851
    %v894 = vpack.c.b16 %v854, %v853
    %v895 = vpack.c.b16 %v856, %v855
    %v896 = vpack.c.b16 %v858, %v857
    %v897 = vpack.c.b16 %v860, %v859
    %v898 = vpack.c.b16 %v862, %v861
    %v899 = vpack.c.b16 %v864, %v863
    %v900 = vpack.c.b16 %v866, %v865
    %v901 = vpack.c.b16 %v868, %v867
    %v902 = vpack.c.b16 %v870, %v869
    %935 = vst [vmem:[#allocation2] sm:$0xff] %v871
    %936 = vst [vmem:[#allocation2 + $0x8] sm:$0xff] %v872
    %937 = vst [vmem:[#allocation2 + $0x10] sm:$0xff] %v873
    %938 = vst [vmem:[#allocation2 + $0x18] sm:$0xff] %v874
    %939 = vst [vmem:[#allocation2 + $0x20] sm:$0xff] %v875
    %940 = vst [vmem:[#allocation2 + $0x28] sm:$0xff] %v876
    %941 = vst [vmem:[#allocation2 + $0x30] sm:$0xff] %v877
    %942 = vst [vmem:[#allocation2 + $0x38] sm:$0xff] %v878
    %943 = vst [vmem:[#allocation2 + $0x40] sm:$0xff] %v879
    %944 = vst [vmem:[#allocation2 + $0x48] sm:$0xff] %v880
    %945 = vst [vmem:[#allocation2 + $0x50] sm:$0xff] %v881
    %946 = vst [vmem:[#allocation2 + $0x58] sm:$0xff] %v882
    %947 = vst [vmem:[#allocation2 + $0x60] sm:$0xff] %v883
    %948 = vst [vmem:[#allocation2 + $0x68] sm:$0xff] %v884
    %949 = vst [vmem:[#allocation2 + $0x70] sm:$0xff] %v885
    %950 = vst [vmem:[#allocation2 + $0x78] sm:$0xff] %v886
    %951 = vst [vmem:[#allocation2 + $0x80] sm:$0xff] %v887
    %952 = vst [vmem:[#allocation2 + $0x88] sm:$0xff] %v888
    %953 = vst [vmem:[#allocation2 + $0x90] sm:$0xff] %v889
    %954 = vst [vmem:[#allocation2 + $0x98] sm:$0xff] %v890
    %955 = vst [vmem:[#allocation2 + $0xa0] sm:$0xff] %v891
    %956 = vst [vmem:[#allocation2 + $0xa8] sm:$0xff] %v892
    %957 = vst [vmem:[#allocation2 + $0xb0] sm:$0xff] %v893
    %958 = vst [vmem:[#allocation2 + $0xb8] sm:$0xff] %v894
    %959 = vst [vmem:[#allocation2 + $0xc0] sm:$0xff] %v895
    %960 = vst [vmem:[#allocation2 + $0xc8] sm:$0xff] %v896
    %961 = vst [vmem:[#allocation2 + $0xd0] sm:$0xff] %v897
    %962 = vst [vmem:[#allocation2 + $0xd8] sm:$0xff] %v898
    %963 = vst [vmem:[#allocation2 + $0xe0] sm:$0xff] %v899
    %964 = vst [vmem:[#allocation2 + $0xe8] sm:$0xff] %v900
    %965 = vst [vmem:[#allocation2 + $0xf0] sm:$0xff] %v901
    %966 = vst [vmem:[#allocation2 + $0xf8] sm:$0xff] %v902
    // Predicated region
    $region14: #{mogrifier_lstm_forward.3} parent=1 // pred_check
      _
    $region15: #{mogrifier_lstm_forward.3} parent=1 // pred_check_branch
      %968 = sbr.rel (0) target = $region17
    $region16: #{mogrifier_lstm_forward.3} parent=1 // pred_region
      %s970 = ssub.s32 4096, 4096
      %971 = vsyncadd [#allocation3], %s970
      %s972 = sshll.u32 [#allocation2], 4
      %s973 = int_to_ptr.vmem [resolvable:$true] %s972
      %978 = dma.vmem_to_hbm [thread:$0]  %s973, 4096, %s3, [#allocation3], 256, 256, 16
    $region17: #{mogrifier_lstm_forward.3} parent=1 // pred_fallthru
      _
    // Predicated region
    $region18: #{mogrifier_lstm_forward.3} parent=1 // pred_check
      _
    $region19: #{mogrifier_lstm_forward.3} parent=1 // pred_check_branch
      %980 = sbr.rel (0) target = $region21
    $region20: #{mogrifier_lstm_forward.3} parent=1 // pred_region
      %981 = dma.done [#allocation3], 4096
    $region21: #{mogrifier_lstm_forward.3} parent=1 // pred_fallthru
      _
    %982 = vsyncpa [#allocation3], 1

// kernel: mogrifier_lstm_forward.2
$region0: #{mogrifier_lstm_forward.2}
  #allocation0 [shape = 'u32[]', space=smem, size = 0x4, offset = 0x4, fixed_abs, tag = 'smem constant byte address 0x4 - core index']
  #allocation1 [shape = 'u32[144,128]{1,0:T(1,128)}', space=vmem, size = 0x12000, scoped, tag = 'internal scratch']
  #allocation2 [shape = 'f32[8,256]{1,0:T(8,128)}', space=vmem, size = 0x2000, scoped, tag = 'scratch operand']
  #allocation3 [shape = 'f32[8,256]{1,0:T(8,128)}', space=vmem, size = 0x2000, scoped, tag = 'scratch operand']
  %s0 = inlined_call_operand.vmem [shape: bf16[8,16,128], index: 0, kind: input, shape index: {}]
  %s1 = inlined_call_operand.vmem [shape: f32[16,256], index: 1, kind: input, shape index: {}]
  %s2 = inlined_call_operand.vmem [shape: f32[16,256], index: 2, kind: input, shape index: {}]
  %s3 = inlined_call_operand.vmem [shape: bf16[2,256,128], index: 3, kind: input, shape index: {}]
  %s4 = inlined_call_operand.vmem [shape: f32[2,1,128], index: 4, kind: input, shape index: {}]
  %s5 = inlined_call_operand.vmem [shape: bf16[2,128,256], index: 5, kind: input, shape index: {}]
  %s6 = inlined_call_operand.vmem [shape: f32[2,1,256], index: 6, kind: input, shape index: {}]
  %s7 = inlined_call_operand.hbm [shape: bf16[384,1024], index: 7, kind: input, shape index: {}]
  %s8 = inlined_call_operand.vmem [shape: f32[1,1024], index: 8, kind: input, shape index: {}]
  %s9 = inlined_call_operand.vmem [shape: bf16[8,16,256], index: 9, kind: output, shape index: {0}]
  %s10 = inlined_call_operand.hbm [shape: f32[16,256], index: 10, kind: output, shape index: {1}]
  %s11 = inlined_call_operand.hbm [shape: f32[16,256], index: 11, kind: output, shape index: {2}]
  %12 = xla_tuple %s9, %s10, %s11
  %s13 = sld [smem:[#allocation0]]
  $region97: #{mogrifier_lstm_forward.2} parent=0
    _
  %s15 = ssub.s32 1, %s13
  %s16 = scalar_select 0, %s15, %s13
  $region1: #{mogrifier_lstm_forward.2} parent=0
    #allocation4 [shape = 'u8[786432]{0}', space=vmem, size = 0xc0000, scoped, tag = 'input window, operand 7, single buffered']
    #allocation5 [shape = 's32[2]{0}', space=sflag, size = 0x8, scoped, tag = 'scoped memory for mogrifier_lstm_forward.2']
    #allocation6 [shape = 's32[2]{0}', space=sflag, size = 0x8, scoped, tag = 'scoped memory for mogrifier_lstm_forward.2']
    #allocation7 [shape = 'u8[16384]{0}', space=vmem, size = 0x4000, scoped, tag = 'output window, operand 1']
    #allocation8 [shape = 'u8[16384]{0}', space=vmem, size = 0x4000, scoped, tag = 'output window, operand 2']
    #allocation9 [shape = 's32[2]{0}', space=sflag, size = 0x8, scoped, tag = 'scoped memory for mogrifier_lstm_forward.2']
    %17 = vsyncpa [#allocation5], 0
    %18 = vsyncpa [#allocation6], 0
    %s19 = scalar_lea.sflag [#allocation6], 1
    %20 = vsyncpa %s19, 0
    %21 = vsyncpa [#allocation9], 0
    %s22 = scalar_lea.sflag [#allocation9], 1
    %23 = vsyncpa %s22, 0
    loop: start=0, step=1, limit=18
    $region2: #{mogrifier_lstm_forward.2} parent=1 // loop_pre_header
      _
    $region3: #{mogrifier_lstm_forward.2} parent=1 // loop_header
      %s25 = sphi 0, %s29
      %p26 = scmp.ge.s32.totalorder %s25, 18
      %s32 = sphi 0, %s44
      %s33 = sphi 0, %s40
      %s34 = sphi 0, %s32
      %s35 = sphi 0, %s33
      %s36 = sphi 0, %s34
      %s37 = sphi 0, %s35
      %s49 = sphi 0, %s51
      %s52 = sphi 0, %s49
      %s53 = sphi 0, %s52
      %s69 = sphi 0, %s53
      %s75 = sphi 0, %s77
      %s78 = sphi 0, %s75
      %s79 = sphi 0, %s78
      %s95 = sphi 0, %s79
      %s101 = sphi 0, %s103
      %s104 = sphi 0, %s101
      %s105 = sphi 0, %s104
      %s121 = sphi 0, %s105
      %s125 = sphi 0, %s125
      %s127 = sphi 0, %s125
      %s128 = sphi 0, %s127
      %s142 = sphi 0, %s128
      %s146 = sphi 0, %s146
      %s148 = sphi 0, %s146
      %s149 = sphi 0, %s148
      %s163 = sphi 0, %s149
      %s167 = sphi 0, %s167
      %s169 = sphi 0, %s167
      %s170 = sphi 0, %s169
      %s184 = sphi 0, %s170
      %s188 = sphi 0, %s188
      %s190 = sphi 0, %s188
      %s191 = sphi 0, %s190
      %s205 = sphi 0, %s191
      %s209 = sphi 0, %s209
      %s211 = sphi 0, %s209
      %s212 = sphi 0, %s211
      %s226 = sphi 0, %s212
      %s230 = sphi 0, %s230
      %s232 = sphi 0, %s230
      %s233 = sphi 0, %s232
      %s247 = sphi 0, %s233
      %s255 = sphi 0, %s257
      %s258 = sphi 0, %s255
      %s259 = sphi 0, %s258
      %s275 = sphi 0, %s259
      %s281 = sphi 0, %s283
      %s284 = sphi 0, %s281
      %s285 = sphi 0, %s284
      %s301 = sphi 0, %s285
      %s307 = sphi 0, %s309
      %s310 = sphi 0, %s307
      %s311 = sphi 0, %s310
      %s327 = sphi 0, %s311
    $region4: #{mogrifier_lstm_forward.2} parent=1 // loop_header_branch
      %28 = sbr.rel (%p26) target = $region8
    $region5: #{mogrifier_lstm_forward.2} parent=1 // loop_body
      %s30 = ssub.s32 %s25, 1
      %s31 = ssub.s32 %s25, 2
      %s38 = sadd.s32 1, %s33
      %p39 = scmp.ge.s32.totalorder %s38, 8
      %s40 = scalar_select %p39, 0, %s38
      %s41 = sadd.s32 1, %s32
      %s42 = scalar_select %p39, %s41, %s32
      %p43 = scmp.ge.s32.totalorder %s42, 2
      %s44 = scalar_select %p43, 0, %s42
      %s45 = ssub.s32 %s33, %s40
      %s46 = ssub.s32 %s32, %s44
      %s47 = sor.u32 %s45, %s46
      %p48 = scmp.eq.s32.totalorder %s47, 0
      %s50 = sadd.s32 %s49, 1
      %s51 = scalar_select %p48, %s49, %s50
      %p54 = pneg %p48
      %p55 = scmp.eq.s32.totalorder %s25, 15
      %p56 = por %p54, %p55
      %p57 = scmp.ne.s32.totalorder %s49, %s52
      %p58 = scmp.eq.s32.totalorder %s25, 0
      %p59 = por %p57, %p58
      %p60 = scmp.ne.s32.totalorder %s49, %s52
      %p61 = scmp.eq.s32.totalorder %s30, 15
      %p62 = por %p60, %p61
      %p63 = scmp.ne.s32.totalorder %s52, %s53
      %p64 = scmp.eq.s32.totalorder %s30, 0
      %p65 = por %p63, %p64
      %p66 = scmp.ne.s32.totalorder %s52, %s53
      %p67 = scmp.eq.s32.totalorder %s31, 15
      %p68 = por %p66, %p67
      %p70 = scmp.ne.s32.totalorder %s53, %s69
      %p71 = scmp.eq.s32.totalorder %s31, 0
      %p72 = por %p70, %p71
      %s73 = ssub.s32 %s32, %s44
      %p74 = scmp.eq.s32.totalorder %s73, 0
      %s76 = sadd.s32 %s75, 1
      %s77 = scalar_select %p74, %s75, %s76
      %p80 = pneg %p74
      %p81 = scmp.eq.s32.totalorder %s25, 15
      %p82 = por %p80, %p81
      %p83 = scmp.ne.s32.totalorder %s75, %s78
      %p84 = scmp.eq.s32.totalorder %s25, 0
      %p85 = por %p83, %p84
      %p86 = scmp.ne.s32.totalorder %s75, %s78
      %p87 = scmp.eq.s32.totalorder %s30, 15
      %p88 = por %p86, %p87
      %p89 = scmp.ne.s32.totalorder %s78, %s79
      %p90 = scmp.eq.s32.totalorder %s30, 0
      %p91 = por %p89, %p90
      %p92 = scmp.ne.s32.totalorder %s78, %s79
      %p93 = scmp.eq.s32.totalorder %s31, 15
      %p94 = por %p92, %p93
      %p96 = scmp.ne.s32.totalorder %s79, %s95
      %p97 = scmp.eq.s32.totalorder %s31, 0
      %p98 = por %p96, %p97
      %s99 = ssub.s32 %s32, %s44
      %p100 = scmp.eq.s32.totalorder %s99, 0
      %s102 = sadd.s32 %s101, 1
      %s103 = scalar_select %p100, %s101, %s102
      %p106 = pneg %p100
      %p107 = scmp.eq.s32.totalorder %s25, 15
      %p108 = por %p106, %p107
      %p109 = scmp.ne.s32.totalorder %s101, %s104
      %p110 = scmp.eq.s32.totalorder %s25, 0
      %p111 = por %p109, %p110
      %p112 = scmp.ne.s32.totalorder %s101, %s104
      %p113 = scmp.eq.s32.totalorder %s30, 15
      %p114 = por %p112, %p113
      %p115 = scmp.ne.s32.totalorder %s104, %s105
      %p116 = scmp.eq.s32.totalorder %s30, 0
      %p117 = por %p115, %p116
      %p118 = scmp.ne.s32.totalorder %s104, %s105
      %p119 = scmp.eq.s32.totalorder %s31, 15
      %p120 = por %p118, %p119
      %p122 = scmp.ne.s32.totalorder %s105, %s121
      %p123 = scmp.eq.s32.totalorder %s31, 0
      %p124 = por %p122, %p123
      %s126 = sadd.s32 %s125, 1
      %p129 = scmp.eq.s32.totalorder %s25, 15
      %p130 = scmp.ne.s32.totalorder %s125, %s127
      %p131 = scmp.eq.s32.totalorder %s25, 0
      %p132 = por %p130, %p131
      %p133 = scmp.ne.s32.totalorder %s125, %s127
      %p134 = scmp.eq.s32.totalorder %s30, 15
      %p135 = por %p133, %p134
      %p136 = scmp.ne.s32.totalorder %s127, %s128
      %p137 = scmp.eq.s32.totalorder %s30, 0
      %p138 = por %p136, %p137
      %p139 = scmp.ne.s32.totalorder %s127, %s128
      %p140 = scmp.eq.s32.totalorder %s31, 15
      %p141 = por %p139, %p140
      %p143 = scmp.ne.s32.totalorder %s128, %s142
      %p144 = scmp.eq.s32.totalorder %s31, 0
      %p145 = por %p143, %p144
      %s147 = sadd.s32 %s146, 1
      %p150 = scmp.eq.s32.totalorder %s25, 15
      %p151 = scmp.ne.s32.totalorder %s146, %s148
      %p152 = scmp.eq.s32.totalorder %s25, 0
      %p153 = por %p151, %p152
      %p154 = scmp.ne.s32.totalorder %s146, %s148
      %p155 = scmp.eq.s32.totalorder %s30, 15
      %p156 = por %p154, %p155
      %p157 = scmp.ne.s32.totalorder %s148, %s149
      %p158 = scmp.eq.s32.totalorder %s30, 0
      %p159 = por %p157, %p158
      %p160 = scmp.ne.s32.totalorder %s148, %s149
      %p161 = scmp.eq.s32.totalorder %s31, 15
      %p162 = por %p160, %p161
      %p164 = scmp.ne.s32.totalorder %s149, %s163
      %p165 = scmp.eq.s32.totalorder %s31, 0
      %p166 = por %p164, %p165
      %s168 = sadd.s32 %s167, 1
      %p171 = scmp.eq.s32.totalorder %s25, 15
      %p172 = scmp.ne.s32.totalorder %s167, %s169
      %p173 = scmp.eq.s32.totalorder %s25, 0
      %p174 = por %p172, %p173
      %p175 = scmp.ne.s32.totalorder %s167, %s169
      %p176 = scmp.eq.s32.totalorder %s30, 15
      %p177 = por %p175, %p176
      %p178 = scmp.ne.s32.totalorder %s169, %s170
      %p179 = scmp.eq.s32.totalorder %s30, 0
      %p180 = por %p178, %p179
      %p181 = scmp.ne.s32.totalorder %s169, %s170
      %p182 = scmp.eq.s32.totalorder %s31, 15
      %p183 = por %p181, %p182
      %p185 = scmp.ne.s32.totalorder %s170, %s184
      %p186 = scmp.eq.s32.totalorder %s31, 0
      %p187 = por %p185, %p186
      %s189 = sadd.s32 %s188, 1
      %p192 = scmp.eq.s32.totalorder %s25, 15
      %p193 = scmp.ne.s32.totalorder %s188, %s190
      %p194 = scmp.eq.s32.totalorder %s25, 0
      %p195 = por %p193, %p194
      %p196 = scmp.ne.s32.totalorder %s188, %s190
      %p197 = scmp.eq.s32.totalorder %s30, 15
      %p198 = por %p196, %p197
      %p199 = scmp.ne.s32.totalorder %s190, %s191
      %p200 = scmp.eq.s32.totalorder %s30, 0
      %p201 = por %p199, %p200
      %p202 = scmp.ne.s32.totalorder %s190, %s191
      %p203 = scmp.eq.s32.totalorder %s31, 15
      %p204 = por %p202, %p203
      %p206 = scmp.ne.s32.totalorder %s191, %s205
      %p207 = scmp.eq.s32.totalorder %s31, 0
      %p208 = por %p206, %p207
      %s210 = sadd.s32 %s209, 1
      %p213 = scmp.eq.s32.totalorder %s25, 15
      %p214 = scmp.ne.s32.totalorder %s209, %s211
      %p215 = scmp.eq.s32.totalorder %s25, 0
      %p216 = por %p214, %p215
      %p217 = scmp.ne.s32.totalorder %s209, %s211
      %p218 = scmp.eq.s32.totalorder %s30, 15
      %p219 = por %p217, %p218
      %p220 = scmp.ne.s32.totalorder %s211, %s212
      %p221 = scmp.eq.s32.totalorder %s30, 0
      %p222 = por %p220, %p221
      %p223 = scmp.ne.s32.totalorder %s211, %s212
      %p224 = scmp.eq.s32.totalorder %s31, 15
      %p225 = por %p223, %p224
      %p227 = scmp.ne.s32.totalorder %s212, %s226
      %p228 = scmp.eq.s32.totalorder %s31, 0
      %p229 = por %p227, %p228
      %s231 = sadd.s32 %s230, 1
      %p234 = scmp.eq.s32.totalorder %s25, 15
      %p235 = scmp.ne.s32.totalorder %s230, %s232
      %p236 = scmp.eq.s32.totalorder %s25, 0
      %p237 = por %p235, %p236
      %p238 = scmp.ne.s32.totalorder %s230, %s232
      %p239 = scmp.eq.s32.totalorder %s30, 15
      %p240 = por %p238, %p239
      %p241 = scmp.ne.s32.totalorder %s232, %s233
      %p242 = scmp.eq.s32.totalorder %s30, 0
      %p243 = por %p241, %p242
      %p244 = scmp.ne.s32.totalorder %s232, %s233
      %p245 = scmp.eq.s32.totalorder %s31, 15
      %p246 = por %p244, %p245
      %p248 = scmp.ne.s32.totalorder %s233, %s247
      %p249 = scmp.eq.s32.totalorder %s31, 0
      %p250 = por %p248, %p249
      %s251 = ssub.s32 %s33, %s40
      %s252 = ssub.s32 %s32, %s44
      %s253 = sor.u32 %s251, %s252
      %p254 = scmp.eq.s32.totalorder %s253, 0
      %s256 = sadd.s32 %s255, 1
      %s257 = scalar_select %p254, %s255, %s256
      %p260 = pneg %p254
      %p261 = scmp.eq.s32.totalorder %s25, 15
      %p262 = por %p260, %p261
      %p263 = scmp.ne.s32.totalorder %s255, %s258
      %p264 = scmp.eq.s32.totalorder %s25, 0
      %p265 = por %p263, %p264
      %p266 = scmp.ne.s32.totalorder %s255, %s258
      %p267 = scmp.eq.s32.totalorder %s30, 15
      %p268 = por %p266, %p267
      %p269 = scmp.ne.s32.totalorder %s258, %s259
      %p270 = scmp.eq.s32.totalorder %s30, 0
      %p271 = por %p269, %p270
      %p272 = scmp.ne.s32.totalorder %s258, %s259
      %p273 = scmp.eq.s32.totalorder %s31, 15
      %p274 = por %p272, %p273
      %p276 = scmp.ne.s32.totalorder %s259, %s275
      %p277 = scmp.eq.s32.totalorder %s31, 0
      %p278 = por %p276, %p277
      %s279 = ssub.s32 %s32, %s44
      %p280 = scmp.eq.s32.totalorder %s279, 0
      %s282 = sadd.s32 %s281, 1
      %s283 = scalar_select %p280, %s281, %s282
      %p286 = pneg %p280
      %p287 = scmp.eq.s32.totalorder %s25, 15
      %p288 = por %p286, %p287
      %p289 = scmp.ne.s32.totalorder %s281, %s284
      %p290 = scmp.eq.s32.totalorder %s25, 0
      %p291 = por %p289, %p290
      %p292 = scmp.ne.s32.totalorder %s281, %s284
      %p293 = scmp.eq.s32.totalorder %s30, 15
      %p294 = por %p292, %p293
      %p295 = scmp.ne.s32.totalorder %s284, %s285
      %p296 = scmp.eq.s32.totalorder %s30, 0
      %p297 = por %p295, %p296
      %p298 = scmp.ne.s32.totalorder %s284, %s285
      %p299 = scmp.eq.s32.totalorder %s31, 15
      %p300 = por %p298, %p299
      %p302 = scmp.ne.s32.totalorder %s285, %s301
      %p303 = scmp.eq.s32.totalorder %s31, 0
      %p304 = por %p302, %p303
      %s305 = ssub.s32 %s32, %s44
      %p306 = scmp.eq.s32.totalorder %s305, 0
      %s308 = sadd.s32 %s307, 1
      %s309 = scalar_select %p306, %s307, %s308
      %p312 = pneg %p306
      %p313 = scmp.eq.s32.totalorder %s25, 15
      %p314 = por %p312, %p313
      %p315 = scmp.ne.s32.totalorder %s307, %s310
      %p316 = scmp.eq.s32.totalorder %s25, 0
      %p317 = por %p315, %p316
      %p318 = scmp.ne.s32.totalorder %s307, %s310
      %p319 = scmp.eq.s32.totalorder %s30, 15
      %p320 = por %p318, %p319
      %p321 = scmp.ne.s32.totalorder %s310, %s311
      %p322 = scmp.eq.s32.totalorder %s30, 0
      %p323 = por %p321, %p322
      %p324 = scmp.ne.s32.totalorder %s310, %s311
      %p325 = scmp.eq.s32.totalorder %s31, 15
      %p326 = por %p324, %p325
      %p328 = scmp.ne.s32.totalorder %s311, %s327
      %p329 = scmp.eq.s32.totalorder %s31, 0
      %p330 = por %p328, %p329
      %p331 = scmp.le.s32.totalorder 1, %s25
      %p332 = scmp.lt.s32.totalorder %s25, 17
      %p333 = pnand %p331, %p332
      %p334 = pneg %p333
      // Predicated region
      $region9: #{mogrifier_lstm_forward.2} parent=5 // pred_check
        _
      $region10: #{mogrifier_lstm_forward.2} parent=5 // pred_check_branch
        %336 = sbr.rel (%p333) target = $region12
      $region11: #{mogrifier_lstm_forward.2} parent=5 // pred_region
        %s337 = ssub.s32 %s25, 1
        // Predicated region
        $region13: #{mogrifier_lstm_forward.2} parent=11 // pred_check
          %p338 = pneg %p138
        $region14: #{mogrifier_lstm_forward.2} parent=11 // pred_check_branch
          %340 = sbr.rel (%p338) target = $region16
        $region15: #{mogrifier_lstm_forward.2} parent=11 // pred_region
          _
        $region16: #{mogrifier_lstm_forward.2} parent=11 // pred_fallthru
          _
        // Predicated region
        $region17: #{mogrifier_lstm_forward.2} parent=11 // pred_check
          %p341 = pneg %p159
        $region18: #{mogrifier_lstm_forward.2} parent=11 // pred_check_branch
          %343 = sbr.rel (%p341) target = $region20
        $region19: #{mogrifier_lstm_forward.2} parent=11 // pred_region
          _
        $region20: #{mogrifier_lstm_forward.2} parent=11 // pred_fallthru
          _
        // Predicated region
        $region21: #{mogrifier_lstm_forward.2} parent=11 // pred_check
          %p344 = pneg %p180
        $region22: #{mogrifier_lstm_forward.2} parent=11 // pred_check_branch
          %346 = sbr.rel (%p344) target = $region24
        $region23: #{mogrifier_lstm_forward.2} parent=11 // pred_region
          _
        $region24: #{mogrifier_lstm_forward.2} parent=11 // pred_fallthru
          _
        // Predicated region
        $region25: #{mogrifier_lstm_forward.2} parent=11 // pred_check
          %p347 = pneg %p201
        $region26: #{mogrifier_lstm_forward.2} parent=11 // pred_check_branch
          %349 = sbr.rel (%p347) target = $region28
        $region27: #{mogrifier_lstm_forward.2} parent=11 // pred_region
          _
        $region28: #{mogrifier_lstm_forward.2} parent=11 // pred_fallthru
          _
        // Predicated region
        $region29: #{mogrifier_lstm_forward.2} parent=11 // pred_check
          %p350 = pneg %p222
        $region30: #{mogrifier_lstm_forward.2} parent=11 // pred_check_branch
          %352 = sbr.rel (%p350) target = $region32
        $region31: #{mogrifier_lstm_forward.2} parent=11 // pred_region
          %s354 = ssub.s32 24576, 24576
          %355 = vsyncadd [#allocation5], %s354
          %s356 = sshll.u32 [#allocation4], 4
          %s357 = int_to_ptr.vmem [resolvable:$true] %s356
          %362 = dma.hbm_to_vmem [thread:$0]  %s7, 24576, %s357, [#allocation5], 512, 512, 32
        $region32: #{mogrifier_lstm_forward.2} parent=11 // pred_fallthru
          _
        // Predicated region
        $region33: #{mogrifier_lstm_forward.2} parent=11 // pred_check
          %p363 = pneg %p243
        $region34: #{mogrifier_lstm_forward.2} parent=11 // pred_check_branch
          %365 = sbr.rel (%p363) target = $region36
        $region35: #{mogrifier_lstm_forward.2} parent=11 // pred_region
          _
        $region36: #{mogrifier_lstm_forward.2} parent=11 // pred_fallthru
          _
      $region12: #{mogrifier_lstm_forward.2} parent=5 // pred_fallthru
        _
      %p366 = scmp.lt.s32.totalorder %s25, 16
      // Predicated region
      $region37: #{mogrifier_lstm_forward.2} parent=5 // pred_check
        %p367 = pneg %p366
      $region38: #{mogrifier_lstm_forward.2} parent=5 // pred_check_branch
        %369 = sbr.rel (%p367) target = $region40
      $region39: #{mogrifier_lstm_forward.2} parent=5 // pred_region
        // Predicated region
        $region41: #{mogrifier_lstm_forward.2} parent=39 // pred_check
          %p370 = pneg %p59
        $region42: #{mogrifier_lstm_forward.2} parent=39 // pred_check_branch
          %372 = sbr.rel (%p370) target = $region44
        $region43: #{mogrifier_lstm_forward.2} parent=39 // pred_region
          %p373 = scmp.lt.s32.totalorder %s33, 7
          %s374 = scalar_select %p373, %s33, 7
          %p375 = scmp.lt.s32.totalorder %s32, 1
          %s376 = scalar_select %p375, %s32, 1
          %s377 = smul.addr %s374, 2
          %s378 = sadd.s32 %s376, %s377
          %s379 = smul.addr %s378, 4
          %s380 = scalar_lea.vmem %s0, %s379
        $region44: #{mogrifier_lstm_forward.2} parent=39 // pred_fallthru
          _
        // Predicated region
        $region45: #{mogrifier_lstm_forward.2} parent=39 // pred_check
          %p381 = pneg %p85
        $region46: #{mogrifier_lstm_forward.2} parent=39 // pred_check_branch
          %383 = sbr.rel (%p381) target = $region48
        $region47: #{mogrifier_lstm_forward.2} parent=39 // pred_region
          %p384 = scmp.lt.s32.totalorder %s32, 1
          %s385 = scalar_select %p384, %s32, 1
          %s386 = smul.addr %s385, 2
          %s387 = smul.addr %s386, 8
          %s388 = scalar_lea.vmem %s1, %s387
        $region48: #{mogrifier_lstm_forward.2} parent=39 // pred_fallthru
          _
        // Predicated region
        $region49: #{mogrifier_lstm_forward.2} parent=39 // pred_check
          %p389 = pneg %p111
        $region50: #{mogrifier_lstm_forward.2} parent=39 // pred_check_branch
          %391 = sbr.rel (%p389) target = $region52
        $region51: #{mogrifier_lstm_forward.2} parent=39 // pred_region
          %p392 = scmp.lt.s32.totalorder %s32, 1
          %s393 = scalar_select %p392, %s32, 1
          %s394 = smul.addr %s393, 2
          %s395 = smul.addr %s394, 8
          %s396 = scalar_lea.vmem %s2, %s395
        $region52: #{mogrifier_lstm_forward.2} parent=39 // pred_fallthru
          _
      $region40: #{mogrifier_lstm_forward.2} parent=5 // pred_fallthru
        _
      %p397 = scmp.le.s32.totalorder 1, %s25
      %p398 = scmp.lt.s32.totalorder %s25, 17
      %p399 = pnand %p397, %p398
      %p400 = pneg %p399
      // Predicated region
      $region53: #{mogrifier_lstm_forward.2} parent=5 // pred_check
        _
      $region54: #{mogrifier_lstm_forward.2} parent=5 // pred_check_branch
        %402 = sbr.rel (%p399) target = $region56
      $region55: #{mogrifier_lstm_forward.2} parent=5 // pred_region
        %s403 = ssub.s32 %s25, 1
        // Predicated region
        $region57: #{mogrifier_lstm_forward.2} parent=55 // pred_check
          %p404 = pneg %p222
        $region58: #{mogrifier_lstm_forward.2} parent=55 // pred_check_branch
          %406 = sbr.rel (%p404) target = $region60
        $region59: #{mogrifier_lstm_forward.2} parent=55 // pred_region
          %407 = dma.done [#allocation5], 24576
        $region60: #{mogrifier_lstm_forward.2} parent=55 // pred_fallthru
          _
        %p408 = scmp.lt.s32.totalorder %s35, 7
        %s409 = scalar_select %p408, %s35, 7
        %p410 = scmp.lt.s32.totalorder %s34, 1
        %s411 = scalar_select %p410, %s34, 1
        %s412 = smul.addr %s409, 2
        %s413 = sadd.s32 %s411, %s412
        %s414 = smul.addr %s413, 4
        %s415 = scalar_lea.vmem %s0, %s414
        %p416 = pneg %p65
        %p417 = pneg %p62
        %p418 = scmp.lt.s32.totalorder %s34, 1
        %s419 = scalar_select %p418, %s34, 1
        %s420 = smul.addr %s419, 2
        %s421 = smul.addr %s420, 8
        %s422 = scalar_lea.vmem %s1, %s421
        %p423 = pneg %p91
        %p424 = pneg %p88
        %p425 = scmp.lt.s32.totalorder %s34, 1
        %s426 = scalar_select %p425, %s34, 1
        %s427 = smul.addr %s426, 2
        %s428 = smul.addr %s427, 8
        %s429 = scalar_lea.vmem %s2, %s428
        %p430 = pneg %p117
        %p431 = pneg %p114
        %p432 = pneg %p138
        %p433 = pneg %p135
        %p434 = pneg %p159
        %p435 = pneg %p156
        %p436 = pneg %p180
        %p437 = pneg %p177
        %p438 = pneg %p201
        %p439 = pneg %p198
        %p440 = pneg %p222
        %p441 = pneg %p219
        %p442 = pneg %p243
        %p443 = pneg %p240
        %p444 = pneg %p271
        %p445 = pneg %p268
        %p446 = scmp.lt.s32.totalorder %s35, 7
        %s447 = scalar_select %p446, %s35, 7
        %p448 = scmp.lt.s32.totalorder %s34, 1
        %s449 = scalar_select %p448, %s34, 1
        %s450 = smul.addr %s449, 2
        %s451 = smul.addr %s447, 4
        %s452 = sadd.s32 %s450, %s451
        %s453 = smul.addr %s452, 4
        %s454 = scalar_lea.vmem %s9, %s453
        %p455 = pneg %p297
        %p456 = pneg %p294
        %s457 = sand.u32 %s284, 1
        %s458 = scalar_lea.sflag [#allocation6], %s457
        %s459 = sand.u32 %s284, 1
        %s460 = smul.addr %s459, 16
        %s461 = scalar_lea.vmem [#allocation7], %s460
        %p462 = pneg %p323
        %p463 = pneg %p320
        %s464 = sand.u32 %s310, 1
        %s465 = scalar_lea.sflag [#allocation9], %s464
        %s466 = sand.u32 %s310, 1
        %s467 = smul.addr %s466, 16
        %s468 = scalar_lea.vmem [#allocation8], %s467
        %p469 = scmp.lt.s32.totalorder %s35, 7
        %s470 = scalar_select %p469, %s35, 7
        %p471 = scmp.lt.s32.totalorder %s34, 1
        %s472 = scalar_select %p471, %s34, 1
        %s473 = smul.addr %s470, 2
        %s474 = sadd.s32 %s472, %s473
        %s475 = smul.addr %s474, 4
        %s476 = scalar_lea.vmem %s0, %s475
        %p477 = scmp.lt.s32.totalorder %s34, 1
        %s478 = scalar_select %p477, %s34, 1
        %s479 = smul.addr %s478, 2
        %s480 = smul.addr %s479, 8
        %s481 = scalar_lea.vmem %s1, %s480
        %p482 = scmp.lt.s32.totalorder %s34, 1
        %s483 = scalar_select %p482, %s34, 1
        %s484 = smul.addr %s483, 2
        %s485 = smul.addr %s484, 8
        %s486 = scalar_lea.vmem %s2, %s485
        %p487 = scmp.lt.s32.totalorder %s35, 7
        %s488 = scalar_select %p487, %s35, 7
        %p489 = scmp.lt.s32.totalorder %s34, 1
        %s490 = scalar_select %p489, %s34, 1
        %s491 = smul.addr %s490, 2
        %s492 = smul.addr %s488, 4
        %s493 = sadd.s32 %s491, %s492
        %s494 = smul.addr %s493, 4
        %s495 = scalar_lea.vmem %s9, %s494
        %p497 = scmp.eq.s32.totalorder %s35, 0
        // Predicated region
        $region61: #{mogrifier_lstm_forward.2} parent=55 // pred_check
          %p498 = pneg %p497
        $region62: #{mogrifier_lstm_forward.2} parent=55 // pred_check_branch
          %500 = sbr.rel (%p498) target = $region64
        $region63: #{mogrifier_lstm_forward.2} parent=55 // pred_region
          %v501 = vld [vmem:[%s481] sm:$0xff]
          %v502 = vld [vmem:[%s481 + $0x8] sm:$0xff]
          %503 = vst [vmem:[#allocation2] sm:$0xff] %v501
          %504 = vst [vmem:[#allocation2 + $0x8] sm:$0xff] %v502
          %v505 = vld [vmem:[%s486] sm:$0xff]
          %v506 = vld [vmem:[%s486 + $0x8] sm:$0xff]
          %507 = vst [vmem:[#allocation3] sm:$0xff] %v505
          %508 = vst [vmem:[#allocation3 + $0x8] sm:$0xff] %v506
        $region64: #{mogrifier_lstm_forward.2} parent=55 // pred_fallthru
          _
        %v509 = vld [vmem:[%s476] sm:$0xf]
        %v510 = vunpack.c.l.bf16 %v509
        %v511 = vld [vmem:[#allocation2] sm:$0xff]
        %v512 = vld [vmem:[#allocation2 + $0x8] sm:$0xff]
        %v513 = vld [vmem:[#allocation3] sm:$0xff]
        %v514 = vld [vmem:[#allocation3 + $0x8] sm:$0xff]
        %v515 = vld [vmem:[%s3] sm:$0xf]
        %v516 = vld [vmem:[%s3 + $0x4] sm:$0xf]
        %v517 = vld [vmem:[%s3 + $0x8] sm:$0xf]
        %v518 = vld [vmem:[%s3 + $0xc] sm:$0xf]
        %v519 = vld [vmem:[%s3 + $0x10] sm:$0xf]
        %v520 = vld [vmem:[%s3 + $0x14] sm:$0xf]
        %v521 = vld [vmem:[%s3 + $0x18] sm:$0xf]
        %v522 = vld [vmem:[%s3 + $0x1c] sm:$0xf]
        %v523 = vld [vmem:[%s3 + $0x20] sm:$0xf]
        %v524 = vld [vmem:[%s3 + $0x24] sm:$0xf]
        %v525 = vld [vmem:[%s3 + $0x28] sm:$0xf]
        %v526 = vld [vmem:[%s3 + $0x2c] sm:$0xf]
        %v527 = vld [vmem:[%s3 + $0x30] sm:$0xf]
        %v528 = vld [vmem:[%s3 + $0x34] sm:$0xf]
        %v529 = vld [vmem:[%s3 + $0x38] sm:$0xf]
        %v530 = vld [vmem:[%s3 + $0x3c] sm:$0xf]
        %v531 = vld [vmem:[%s3 + $0x40] sm:$0xf]
        %v532 = vld [vmem:[%s3 + $0x44] sm:$0xf]
        %v533 = vld [vmem:[%s3 + $0x48] sm:$0xf]
        %v534 = vld [vmem:[%s3 + $0x4c] sm:$0xf]
        %v535 = vld [vmem:[%s3 + $0x50] sm:$0xf]
        %v536 = vld [vmem:[%s3 + $0x54] sm:$0xf]
        %v537 = vld [vmem:[%s3 + $0x58] sm:$0xf]
        %v538 = vld [vmem:[%s3 + $0x5c] sm:$0xf]
        %v539 = vld [vmem:[%s3 + $0x60] sm:$0xf]
        %v540 = vld [vmem:[%s3 + $0x64] sm:$0xf]
        %v541 = vld [vmem:[%s3 + $0x68] sm:$0xf]
        %v542 = vld [vmem:[%s3 + $0x6c] sm:$0xf]
        %v543 = vld [vmem:[%s3 + $0x70] sm:$0xf]
        %v544 = vld [vmem:[%s3 + $0x74] sm:$0xf]
        %v545 = vld [vmem:[%s3 + $0x78] sm:$0xf]
        %v546 = vld [vmem:[%s3 + $0x7c] sm:$0xf]
        %v547 = vpack.c.bf16 %v511, %v511
        %v548 = vpack.c.bf16 %v512, %v512
        %v549 = vld [vmem:[%s4] sm:$0x1]
        %v551 = vlaneseq
        %v552 = vshrl.u32 %v551, 7
        %v553 = vsub.s32 0, %v552
        %v554 = vrot.slane %v549, %v553
        %v588 = vunpack.c.l.b16 %v515
        %v589 = vunpack.c.l.b16 %v516
        %v590 = vunpack.c.l.b16 %v517
        %v591 = vunpack.c.l.b16 %v518
        %v592 = vunpack.c.l.b16 %v519
        %v593 = vunpack.c.l.b16 %v520
        %v594 = vunpack.c.l.b16 %v521
        %v595 = vunpack.c.l.b16 %v522
        %v596 = vunpack.c.l.b16 %v523
        %v597 = vunpack.c.l.b16 %v524
        %v598 = vunpack.c.l.b16 %v525
        %v599 = vunpack.c.l.b16 %v526
        %v600 = vunpack.c.l.b16 %v527
        %v601 = vunpack.c.l.b16 %v528
        %v602 = vunpack.c.l.b16 %v529
        %v603 = vunpack.c.l.b16 %v530
        %v604 = vunpack.c.l.b16 %v531
        %v605 = vunpack.c.l.b16 %v532
        %v606 = vunpack.c.l.b16 %v533
        %v607 = vunpack.c.l.b16 %v534
        %v608 = vunpack.c.l.b16 %v535
        %v609 = vunpack.c.l.b16 %v536
        %v610 = vunpack.c.l.b16 %v537
        %v611 = vunpack.c.l.b16 %v538
        %v612 = vunpack.c.l.b16 %v539
        %v613 = vunpack.c.l.b16 %v540
        %v614 = vunpack.c.l.b16 %v541
        %v615 = vunpack.c.l.b16 %v542
        %v616 = vunpack.c.l.b16 %v543
        %v617 = vunpack.c.l.b16 %v544
        %v618 = vunpack.c.l.b16 %v545
        %v619 = vunpack.c.l.b16 %v546
        %v620 = vpack.c.b16 %v589, %v588
        %v621 = vpack.c.b16 %v591, %v590
        %v622 = vpack.c.b16 %v593, %v592
        %v623 = vpack.c.b16 %v595, %v594
        %v624 = vpack.c.b16 %v597, %v596
        %v625 = vpack.c.b16 %v599, %v598
        %v626 = vpack.c.b16 %v601, %v600
        %v627 = vpack.c.b16 %v603, %v602
        %v628 = vpack.c.b16 %v605, %v604
        %v629 = vpack.c.b16 %v607, %v606
        %v630 = vpack.c.b16 %v609, %v608
        %v631 = vpack.c.b16 %v611, %v610
        %v632 = vpack.c.b16 %v613, %v612
        %v633 = vpack.c.b16 %v615, %v614
        %v634 = vpack.c.b16 %v617, %v616
        %v635 = vpack.c.b16 %v619, %v618
        %652 = vmatprep.subr.bf16.mxu0 0
        %653 = vmatpush1.bf16.msra.mxu0 %v620
        %654 = vmatprep.subr.bf16.mxu0 0
        %655 = vmatpush1.bf16.msra.mxu0 %v621
        %656 = vmatprep.subr.bf16.mxu0 0
        %657 = vmatpush1.bf16.msra.mxu0 %v622
        %658 = vmatprep.subr.bf16.mxu0 0
        %659 = vmatpush1.bf16.msra.mxu0 %v623
        %660 = vmatprep.subr.bf16.mxu0 0
        %661 = vmatpush1.bf16.msra.mxu0 %v624
        %662 = vmatprep.subr.bf16.mxu0 0
        %663 = vmatpush1.bf16.msra.mxu0 %v625
        %664 = vmatprep.subr.bf16.mxu0 0
        %665 = vmatpush1.bf16.msra.mxu0 %v626
        %666 = vmatprep.subr.bf16.mxu0 0
        %667 = vmatpush1.bf16.msra.mxu0 %v627
        %668 = vmatprep.subr.bf16.mxu0 0
        %669 = vmatpush1.bf16.msra.mxu0 %v628
        %670 = vmatprep.subr.bf16.mxu0 0
        %671 = vmatpush1.bf16.msra.mxu0 %v629
        %672 = vmatprep.subr.bf16.mxu0 0
        %673 = vmatpush1.bf16.msra.mxu0 %v630
        %674 = vmatprep.subr.bf16.mxu0 0
        %675 = vmatpush1.bf16.msra.mxu0 %v631
        %676 = vmatprep.subr.bf16.mxu0 0
        %677 = vmatpush1.bf16.msra.mxu0 %v632
        %678 = vmatprep.subr.bf16.mxu0 0
        %679 = vmatpush1.bf16.msra.mxu0 %v633
        %680 = vmatprep.subr.bf16.mxu0 0
        %681 = vmatpush1.bf16.msra.mxu0 %v634
        %682 = vmatprep.subr.bf16.mxu0 0
        %683 = vmatpush1.bf16.msra.mxu0 %v635
        %684 = vmatprep.mubr.bf16.mxu0 %v548
        %685 = vmatmul.mubr.bf16.gmra.mrb[0].mxu0 %v547
        %v686 = vpop.f32.mrb[0].mxu0
        %v687 = vadd.f32 %v554, %v686
        %v688 = vpop.f32.mrb[0].mxu0
        %v689 = vpop.f32.mrb[0].mxu0
        %v690 = vpop.f32.mrb[0].mxu0
        %691 = vdwg.mxu0
        %v692 = vmul.f32 %v687, 0.5
        %v693 = vtanh.pop %v692
        %v694 = vadd.f32 %v693, 1.0
        %v695 = vmul.f32 %v694, %v510
        %v696 = vld [vmem:[%s5] sm:$0xff]
        %v697 = vld [vmem:[%s5 + $0x8] sm:$0xff]
        %v698 = vld [vmem:[%s5 + $0x10] sm:$0xff]
        %v699 = vld [vmem:[%s5 + $0x18] sm:$0xff]
        %v700 = vld [vmem:[%s5 + $0x20] sm:$0xff]
        %v701 = vld [vmem:[%s5 + $0x28] sm:$0xff]
        %v702 = vld [vmem:[%s5 + $0x30] sm:$0xff]
        %v703 = vld [vmem:[%s5 + $0x38] sm:$0xff]
        %v704 = vld [vmem:[%s5 + $0x40] sm:$0xff]
        %v705 = vld [vmem:[%s5 + $0x48] sm:$0xff]
        %v706 = vld [vmem:[%s5 + $0x50] sm:$0xff]
        %v707 = vld [vmem:[%s5 + $0x58] sm:$0xff]
        %v708 = vld [vmem:[%s5 + $0x60] sm:$0xff]
        %v709 = vld [vmem:[%s5 + $0x68] sm:$0xff]
        %v710 = vld [vmem:[%s5 + $0x70] sm:$0xff]
        %v711 = vld [vmem:[%s5 + $0x78] sm:$0xff]
        %v712 = vpack.c.bf16 %v695, %v695
        %v713 = vld [vmem:[%s6] sm:$0x3]
        %v715 = vlaneseq
        %v716 = vshrl.u32 %v715, 7
        %v717 = vsub.s32 0, %v716
        %v718 = vrot.slane %v713, %v717
        %v719 = vlaneseq
        %v720 = vshrl.u32 %v719, 7
        %v721 = vsub.s32 1, %v720
        %v722 = vrot.slane %v713, %v721
        %v741 = vunpack.c.l.b16 %v696
        %v742 = vunpack.c.h.b16 %v696
        %v743 = vunpack.c.l.b16 %v697
        %v744 = vunpack.c.h.b16 %v697
        %v745 = vunpack.c.l.b16 %v698
        %v746 = vunpack.c.h.b16 %v698
        %v747 = vunpack.c.l.b16 %v699
        %v748 = vunpack.c.h.b16 %v699
        %v749 = vunpack.c.l.b16 %v700
        %v750 = vunpack.c.h.b16 %v700
        %v751 = vunpack.c.l.b16 %v701
        %v752 = vunpack.c.h.b16 %v701
        %v753 = vunpack.c.l.b16 %v702
        %v754 = vunpack.c.h.b16 %v702
        %v755 = vunpack.c.l.b16 %v703
        %v756 = vunpack.c.h.b16 %v703
        %v757 = vunpack.c.l.b16 %v704
        %v758 = vunpack.c.h.b16 %v704
        %v759 = vunpack.c.l.b16 %v705
        %v760 = vunpack.c.h.b16 %v705
        %v761 = vunpack.c.l.b16 %v706
        %v762 = vunpack.c.h.b16 %v706
        %v763 = vunpack.c.l.b16 %v707
        %v764 = vunpack.c.h.b16 %v707
        %v765 = vunpack.c.l.b16 %v708
        %v766 = vunpack.c.h.b16 %v708
        %v767 = vunpack.c.l.b16 %v709
        %v768 = vunpack.c.h.b16 %v709
        %v769 = vunpack.c.l.b16 %v710
        %v770 = vunpack.c.h.b16 %v710
        %v771 = vunpack.c.l.b16 %v711
        %v772 = vunpack.c.h.b16 %v711
        %v773 = vpack.c.b16 %v743, %v741
        %v774 = vpack.c.b16 %v744, %v742
        %v775 = vpack.c.b16 %v747, %v745
        %v776 = vpack.c.b16 %v748, %v746
        %v777 = vpack.c.b16 %v751, %v749
        %v778 = vpack.c.b16 %v752, %v750
        %v779 = vpack.c.b16 %v755, %v753
        %v780 = vpack.c.b16 %v756, %v754
        %v781 = vpack.c.b16 %v759, %v757
        %v782 = vpack.c.b16 %v760, %v758
        %v783 = vpack.c.b16 %v763, %v761
        %v784 = vpack.c.b16 %v764, %v762
        %v785 = vpack.c.b16 %v767, %v765
        %v786 = vpack.c.b16 %v768, %v766
        %v787 = vpack.c.b16 %v771, %v769
        %v788 = vpack.c.b16 %v772, %v770
        %805 = vmatprep.subr.bf16.mxu0 %v774
        %806 = vmatpush1.bf16.msra.mxu0 %v773
        %807 = vmatprep.subr.bf16.mxu0 %v776
        %808 = vmatpush1.bf16.msra.mxu0 %v775
        %809 = vmatprep.subr.bf16.mxu0 %v778
        %810 = vmatpush1.bf16.msra.mxu0 %v777
        %811 = vmatprep.subr.bf16.mxu0 %v780
        %812 = vmatpush1.bf16.msra.mxu0 %v779
        %813 = vmatprep.subr.bf16.mxu0 %v782
        %814 = vmatpush1.bf16.msra.mxu0 %v781
        %815 = vmatprep.subr.bf16.mxu0 %v784
        %816 = vmatpush1.bf16.msra.mxu0 %v783
        %817 = vmatprep.subr.bf16.mxu0 %v786
        %818 = vmatpush1.bf16.msra.mxu0 %v785
        %819 = vmatprep.subr.bf16.mxu0 %v788
        %820 = vmatpush1.bf16.msra.mxu0 %v787
        %821 = vmatprep.subr.bf16.mxu0 0
        %822 = vmatpush1.bf16.msra.mxu0 0
        %823 = vmatprep.subr.bf16.mxu0 0
        %824 = vmatpush1.bf16.msra.mxu0 0
        %825 = vmatprep.subr.bf16.mxu0 0
        %826 = vmatpush1.bf16.msra.mxu0 0
        %827 = vmatprep.subr.bf16.mxu0 0
        %828 = vmatpush1.bf16.msra.mxu0 0
        %829 = vmatprep.subr.bf16.mxu0 0
        %830 = vmatpush1.bf16.msra.mxu0 0
        %831 = vmatprep.subr.bf16.mxu0 0
        %832 = vmatpush1.bf16.msra.mxu0 0
        %833 = vmatprep.subr.bf16.mxu0 0
        %834 = vmatpush1.bf16.msra.mxu0 0
        %835 = vmatprep.subr.bf16.mxu0 0
        %836 = vmatpush1.bf16.msra.mxu0 0
        %837 = vmatprep.mubr.bf16.mxu0 0
        %838 = vmatmul.mubr.bf16.gmra.mrb[0].mxu0 %v712
        %v839 = vpop.f32.mrb[0].mxu0
        %v840 = vadd.f32 %v718, %v839
        %v841 = vpop.f32.mrb[0].mxu0
        %v842 = vadd.f32 %v722, %v841
        %v843 = vpop.f32.mrb[0].mxu0
        %v844 = vpop.f32.mrb[0].mxu0
        %845 = vdwg.mxu0
        %v846 = vmul.f32 %v840, 0.5
        %v847 = vmul.f32 %v842, 0.5
        %v848 = vtanh.pop %v846
        %v849 = vtanh.pop %v847
        %v850 = vadd.f32 %v848, 1.0
        %v851 = vadd.f32 %v849, 1.0
        %v852 = vmul.f32 %v850, %v511
        %v853 = vmul.f32 %v851, %v512
        %s854 = scalar_lea.vmem %s3, 128
        %v855 = vld [vmem:[%s854] sm:$0xf]
        %v856 = vld [vmem:[%s854 + $0x4] sm:$0xf]
        %v857 = vld [vmem:[%s854 + $0x8] sm:$0xf]
        %v858 = vld [vmem:[%s854 + $0xc] sm:$0xf]
        %v859 = vld [vmem:[%s854 + $0x10] sm:$0xf]
        %v860 = vld [vmem:[%s854 + $0x14] sm:$0xf]
        %v861 = vld [vmem:[%s854 + $0x18] sm:$0xf]
        %v862 = vld [vmem:[%s854 + $0x1c] sm:$0xf]
        %v863 = vld [vmem:[%s854 + $0x20] sm:$0xf]
        %v864 = vld [vmem:[%s854 + $0x24] sm:$0xf]
        %v865 = vld [vmem:[%s854 + $0x28] sm:$0xf]
        %v866 = vld [vmem:[%s854 + $0x2c] sm:$0xf]
        %v867 = vld [vmem:[%s854 + $0x30] sm:$0xf]
        %v868 = vld [vmem:[%s854 + $0x34] sm:$0xf]
        %v869 = vld [vmem:[%s854 + $0x38] sm:$0xf]
        %v870 = vld [vmem:[%s854 + $0x3c] sm:$0xf]
        %v871 = vld [vmem:[%s854 + $0x40] sm:$0xf]
        %v872 = vld [vmem:[%s854 + $0x44] sm:$0xf]
        %v873 = vld [vmem:[%s854 + $0x48] sm:$0xf]
        %v874 = vld [vmem:[%s854 + $0x4c] sm:$0xf]
        %v875 = vld [vmem:[%s854 + $0x50] sm:$0xf]
        %v876 = vld [vmem:[%s854 + $0x54] sm:$0xf]
        %v877 = vld [vmem:[%s854 + $0x58] sm:$0xf]
        %v878 = vld [vmem:[%s854 + $0x5c] sm:$0xf]
        %v879 = vld [vmem:[%s854 + $0x60] sm:$0xf]
        %v880 = vld [vmem:[%s854 + $0x64] sm:$0xf]
        %v881 = vld [vmem:[%s854 + $0x68] sm:$0xf]
        %v882 = vld [vmem:[%s854 + $0x6c] sm:$0xf]
        %v883 = vld [vmem:[%s854 + $0x70] sm:$0xf]
        %v884 = vld [vmem:[%s854 + $0x74] sm:$0xf]
        %v885 = vld [vmem:[%s854 + $0x78] sm:$0xf]
        %v886 = vld [vmem:[%s854 + $0x7c] sm:$0xf]
        %v887 = vpack.c.bf16 %v852, %v852
        %v888 = vpack.c.bf16 %v853, %v853
        %s889 = scalar_lea.vmem %s4, 1
        %v890 = vld [vmem:[%s889] sm:$0x1]
        %v892 = vlaneseq
        %v893 = vshrl.u32 %v892, 7
        %v894 = vsub.s32 0, %v893
        %v895 = vrot.slane %v890, %v894
        %v929 = vunpack.c.l.b16 %v855
        %v930 = vunpack.c.l.b16 %v856
        %v931 = vunpack.c.l.b16 %v857
        %v932 = vunpack.c.l.b16 %v858
        %v933 = vunpack.c.l.b16 %v859
        %v934 = vunpack.c.l.b16 %v860
        %v935 = vunpack.c.l.b16 %v861
        %v936 = vunpack.c.l.b16 %v862
        %v937 = vunpack.c.l.b16 %v863
        %v938 = vunpack.c.l.b16 %v864
        %v939 = vunpack.c.l.b16 %v865
        %v940 = vunpack.c.l.b16 %v866
        %v941 = vunpack.c.l.b16 %v867
        %v942 = vunpack.c.l.b16 %v868
        %v943 = vunpack.c.l.b16 %v869
        %v944 = vunpack.c.l.b16 %v870
        %v945 = vunpack.c.l.b16 %v871
        %v946 = vunpack.c.l.b16 %v872
        %v947 = vunpack.c.l.b16 %v873
        %v948 = vunpack.c.l.b16 %v874
        %v949 = vunpack.c.l.b16 %v875
        %v950 = vunpack.c.l.b16 %v876
        %v951 = vunpack.c.l.b16 %v877
        %v952 = vunpack.c.l.b16 %v878
        %v953 = vunpack.c.l.b16 %v879
        %v954 = vunpack.c.l.b16 %v880
        %v955 = vunpack.c.l.b16 %v881
        %v956 = vunpack.c.l.b16 %v882
        %v957 = vunpack.c.l.b16 %v883
        %v958 = vunpack.c.l.b16 %v884
        %v959 = vunpack.c.l.b16 %v885
        %v960 = vunpack.c.l.b16 %v886
        %v961 = vpack.c.b16 %v930, %v929
        %v962 = vpack.c.b16 %v932, %v931
        %v963 = vpack.c.b16 %v934, %v933
        %v964 = vpack.c.b16 %v936, %v935
        %v965 = vpack.c.b16 %v938, %v937
        %v966 = vpack.c.b16 %v940, %v939
        %v967 = vpack.c.b16 %v942, %v941
        %v968 = vpack.c.b16 %v944, %v943
        %v969 = vpack.c.b16 %v946, %v945
        %v970 = vpack.c.b16 %v948, %v947
        %v971 = vpack.c.b16 %v950, %v949
        %v972 = vpack.c.b16 %v952, %v951
        %v973 = vpack.c.b16 %v954, %v953
        %v974 = vpack.c.b16 %v956, %v955
        %v975 = vpack.c.b16 %v958, %v957
        %v976 = vpack.c.b16 %v960, %v959
        %993 = vmatprep.subr.bf16.mxu0 0
        %994 = vmatpush1.bf16.msra.mxu0 %v961
        %995 = vmatprep.subr.bf16.mxu0 0
        %996 = vmatpush1.bf16.msra.mxu0 %v962
        %997 = vmatprep.subr.bf16.mxu0 0
        %998 = vmatpush1.bf16.msra.mxu0 %v963
        %999 = vmatprep.subr.bf16.mxu0 0
        %1000 = vmatpush1.bf16.msra.mxu0 %v964
        %1001 = vmatprep.subr.bf16.mxu0 0
        %1002 = vmatpush1.bf16.msra.mxu0 %v965
        %1003 = vmatprep.subr.bf16.mxu0 0
        %1004 = vmatpush1.bf16.msra.mxu0 %v966
        %1005 = vmatprep.subr.bf16.mxu0 0
        %1006 = vmatpush1.bf16.msra.mxu0 %v967
        %1007 = vmatprep.subr.bf16.mxu0 0
        %1008 = vmatpush1.bf16.msra.mxu0 %v968
        %1009 = vmatprep.subr.bf16.mxu0 0
        %1010 = vmatpush1.bf16.msra.mxu0 %v969
        %1011 = vmatprep.subr.bf16.mxu0 0
        %1012 = vmatpush1.bf16.msra.mxu0 %v970
        %1013 = vmatprep.subr.bf16.mxu0 0
        %1014 = vmatpush1.bf16.msra.mxu0 %v971
        %1015 = vmatprep.subr.bf16.mxu0 0
        %1016 = vmatpush1.bf16.msra.mxu0 %v972
        %1017 = vmatprep.subr.bf16.mxu0 0
        %1018 = vmatpush1.bf16.msra.mxu0 %v973
        %1019 = vmatprep.subr.bf16.mxu0 0
        %1020 = vmatpush1.bf16.msra.mxu0 %v974
        %1021 = vmatprep.subr.bf16.mxu0 0
        %1022 = vmatpush1.bf16.msra.mxu0 %v975
        %1023 = vmatprep.subr.bf16.mxu0 0
        %1024 = vmatpush1.bf16.msra.mxu0 %v976
        %1025 = vmatprep.mubr.bf16.mxu0 %v888
        %1026 = vmatmul.mubr.bf16.gmra.mrb[0].mxu0 %v887
        %v1027 = vpop.f32.mrb[0].mxu0
        %v1028 = vadd.f32 %v895, %v1027
        %v1029 = vpop.f32.mrb[0].mxu0
        %v1030 = vpop.f32.mrb[0].mxu0
        %v1031 = vpop.f32.mrb[0].mxu0
        %1032 = vdwg.mxu0
        %v1033 = vmul.f32 %v1028, 0.5
        %v1034 = vtanh.pop %v1033
        %v1035 = vadd.f32 %v1034, 1.0
        %v1036 = vmul.f32 %v1035, %v695
        %s1037 = scalar_lea.vmem %s5, 128
        %v1038 = vld [vmem:[%s1037] sm:$0xff]
        %v1039 = vld [vmem:[%s1037 + $0x8] sm:$0xff]
        %v1040 = vld [vmem:[%s1037 + $0x10] sm:$0xff]
        %v1041 = vld [vmem:[%s1037 + $0x18] sm:$0xff]
        %v1042 = vld [vmem:[%s1037 + $0x20] sm:$0xff]
        %v1043 = vld [vmem:[%s1037 + $0x28] sm:$0xff]
        %v1044 = vld [vmem:[%s1037 + $0x30] sm:$0xff]
        %v1045 = vld [vmem:[%s1037 + $0x38] sm:$0xff]
        %v1046 = vld [vmem:[%s1037 + $0x40] sm:$0xff]
        %v1047 = vld [vmem:[%s1037 + $0x48] sm:$0xff]
        %v1048 = vld [vmem:[%s1037 + $0x50] sm:$0xff]
        %v1049 = vld [vmem:[%s1037 + $0x58] sm:$0xff]
        %v1050 = vld [vmem:[%s1037 + $0x60] sm:$0xff]
        %v1051 = vld [vmem:[%s1037 + $0x68] sm:$0xff]
        %v1052 = vld [vmem:[%s1037 + $0x70] sm:$0xff]
        %v1053 = vld [vmem:[%s1037 + $0x78] sm:$0xff]
        %v1054 = vpack.c.bf16 %v1036, %v1036
        %s1055 = scalar_lea.vmem %s6, 2
        %v1056 = vld [vmem:[%s1055] sm:$0x3]
        %v1058 = vlaneseq
        %v1059 = vshrl.u32 %v1058, 7
        %v1060 = vsub.s32 0, %v1059
        %v1061 = vrot.slane %v1056, %v1060
        %v1062 = vlaneseq
        %v1063 = vshrl.u32 %v1062, 7
        %v1064 = vsub.s32 1, %v1063
        %v1065 = vrot.slane %v1056, %v1064
        %v1084 = vunpack.c.l.b16 %v1038
        %v1085 = vunpack.c.h.b16 %v1038
        %v1086 = vunpack.c.l.b16 %v1039
        %v1087 = vunpack.c.h.b16 %v1039
        %v1088 = vunpack.c.l.b16 %v1040
        %v1089 = vunpack.c.h.b16 %v1040
        %v1090 = vunpack.c.l.b16 %v1041
        %v1091 = vunpack.c.h.b16 %v1041
        %v1092 = vunpack.c.l.b16 %v1042
        %v1093 = vunpack.c.h.b16 %v1042
        %v1094 = vunpack.c.l.b16 %v1043
        %v1095 = vunpack.c.h.b16 %v1043
        %v1096 = vunpack.c.l.b16 %v1044
        %v1097 = vunpack.c.h.b16 %v1044
        %v1098 = vunpack.c.l.b16 %v1045
        %v1099 = vunpack.c.h.b16 %v1045
        %v1100 = vunpack.c.l.b16 %v1046
        %v1101 = vunpack.c.h.b16 %v1046
        %v1102 = vunpack.c.l.b16 %v1047
        %v1103 = vunpack.c.h.b16 %v1047
        %v1104 = vunpack.c.l.b16 %v1048
        %v1105 = vunpack.c.h.b16 %v1048
        %v1106 = vunpack.c.l.b16 %v1049
        %v1107 = vunpack.c.h.b16 %v1049
        %v1108 = vunpack.c.l.b16 %v1050
        %v1109 = vunpack.c.h.b16 %v1050
        %v1110 = vunpack.c.l.b16 %v1051
        %v1111 = vunpack.c.h.b16 %v1051
        %v1112 = vunpack.c.l.b16 %v1052
        %v1113 = vunpack.c.h.b16 %v1052
        %v1114 = vunpack.c.l.b16 %v1053
        %v1115 = vunpack.c.h.b16 %v1053
        %v1116 = vpack.c.b16 %v1086, %v1084
        %v1117 = vpack.c.b16 %v1087, %v1085
        %v1118 = vpack.c.b16 %v1090, %v1088
        %v1119 = vpack.c.b16 %v1091, %v1089
        %v1120 = vpack.c.b16 %v1094, %v1092
        %v1121 = vpack.c.b16 %v1095, %v1093
        %v1122 = vpack.c.b16 %v1098, %v1096
        %v1123 = vpack.c.b16 %v1099, %v1097
        %v1124 = vpack.c.b16 %v1102, %v1100
        %v1125 = vpack.c.b16 %v1103, %v1101
        %v1126 = vpack.c.b16 %v1106, %v1104
        %v1127 = vpack.c.b16 %v1107, %v1105
        %v1128 = vpack.c.b16 %v1110, %v1108
        %v1129 = vpack.c.b16 %v1111, %v1109
        %v1130 = vpack.c.b16 %v1114, %v1112
        %v1131 = vpack.c.b16 %v1115, %v1113
        %1148 = vmatprep.subr.bf16.mxu0 %v1117
        %1149 = vmatpush1.bf16.msra.mxu0 %v1116
        %1150 = vmatprep.subr.bf16.mxu0 %v1119
        %1151 = vmatpush1.bf16.msra.mxu0 %v1118
        %1152 = vmatprep.subr.bf16.mxu0 %v1121
        %1153 = vmatpush1.bf16.msra.mxu0 %v1120
        %1154 = vmatprep.subr.bf16.mxu0 %v1123
        %1155 = vmatpush1.bf16.msra.mxu0 %v1122
        %1156 = vmatprep.subr.bf16.mxu0 %v1125
        %1157 = vmatpush1.bf16.msra.mxu0 %v1124
        %1158 = vmatprep.subr.bf16.mxu0 %v1127
        %1159 = vmatpush1.bf16.msra.mxu0 %v1126
        %1160 = vmatprep.subr.bf16.mxu0 %v1129
        %1161 = vmatpush1.bf16.msra.mxu0 %v1128
        %1162 = vmatprep.subr.bf16.mxu0 %v1131
        %1163 = vmatpush1.bf16.msra.mxu0 %v1130
        %1164 = vmatprep.subr.bf16.mxu0 0
        %1165 = vmatpush1.bf16.msra.mxu0 0
        %1166 = vmatprep.subr.bf16.mxu0 0
        %1167 = vmatpush1.bf16.msra.mxu0 0
        %1168 = vmatprep.subr.bf16.mxu0 0
        %1169 = vmatpush1.bf16.msra.mxu0 0
        %1170 = vmatprep.subr.bf16.mxu0 0
        %1171 = vmatpush1.bf16.msra.mxu0 0
        %1172 = vmatprep.subr.bf16.mxu0 0
        %1173 = vmatpush1.bf16.msra.mxu0 0
        %1174 = vmatprep.subr.bf16.mxu0 0
        %1175 = vmatpush1.bf16.msra.mxu0 0
        %1176 = vmatprep.subr.bf16.mxu0 0
        %1177 = vmatpush1.bf16.msra.mxu0 0
        %1178 = vmatprep.subr.bf16.mxu0 0
        %1179 = vmatpush1.bf16.msra.mxu0 0
        %1180 = vmatprep.mubr.bf16.mxu0 0
        %1181 = vmatmul.mubr.bf16.gmra.mrb[0].mxu0 %v1054
        %v1182 = vpop.f32.mrb[0].mxu0
        %v1183 = vadd.f32 %v1061, %v1182
        %v1184 = vpop.f32.mrb[0].mxu0
        %v1185 = vadd.f32 %v1065, %v1184
        %v1186 = vpop.f32.mrb[0].mxu0
        %v1187 = vpop.f32.mrb[0].mxu0
        %1188 = vdwg.mxu0
        %v1189 = vmul.f32 %v1183, 0.5
        %v1190 = vmul.f32 %v1185, 0.5
        %v1191 = vtanh.pop %v1189
        %v1192 = vtanh.pop %v1190
        %v1193 = vadd.f32 %v1191, 1.0
        %v1194 = vadd.f32 %v1192, 1.0
        %v1195 = vmul.f32 %v1193, %v852
        %v1196 = vmul.f32 %v1194, %v853
        %v1197 = vld [vmem:[#allocation4] sm:$0xff]
        %v1198 = vld [vmem:[#allocation4 + $0x8] sm:$0xff]
        %v1199 = vld [vmem:[#allocation4 + $0x10] sm:$0xff]
        %v1200 = vld [vmem:[#allocation4 + $0x18] sm:$0xff]
        %v1201 = vld [vmem:[#allocation4 + $0x20] sm:$0xff]
        %v1202 = vld [vmem:[#allocation4 + $0x28] sm:$0xff]
        %v1203 = vld [vmem:[#allocation4 + $0x30] sm:$0xff]
        %v1204 = vld [vmem:[#allocation4 + $0x38] sm:$0xff]
        %v1205 = vld [vmem:[#allocation4 + $0x40] sm:$0xff]
        %v1206 = vld [vmem:[#allocation4 + $0x48] sm:$0xff]
        %v1207 = vld [vmem:[#allocation4 + $0x50] sm:$0xff]
        %v1208 = vld [vmem:[#allocation4 + $0x58] sm:$0xff]
        %v1209 = vld [vmem:[#allocation4 + $0x60] sm:$0xff]
        %v1210 = vld [vmem:[#allocation4 + $0x68] sm:$0xff]
        %v1211 = vld [vmem:[#allocation4 + $0x70] sm:$0xff]
        %v1212 = vld [vmem:[#allocation4 + $0x78] sm:$0xff]
        %v1213 = vld [vmem:[#allocation4 + $0x80] sm:$0xff]
        %v1214 = vld [vmem:[#allocation4 + $0x88] sm:$0xff]
        %v1215 = vld [vmem:[#allocation4 + $0x90] sm:$0xff]
        %v1216 = vld [vmem:[#allocation4 + $0x98] sm:$0xff]
        %v1217 = vld [vmem:[#allocation4 + $0xa0] sm:$0xff]
        %v1218 = vld [vmem:[#allocation4 + $0xa8] sm:$0xff]
        %v1219 = vld [vmem:[#allocation4 + $0xb0] sm:$0xff]
        %v1220 = vld [vmem:[#allocation4 + $0xb8] sm:$0xff]
        %v1221 = vld [vmem:[#allocation4 + $0xc0] sm:$0xff]
        %v1222 = vld [vmem:[#allocation4 + $0xc8] sm:$0xff]
        %v1223 = vld [vmem:[#allocation4 + $0xd0] sm:$0xff]
        %v1224 = vld [vmem:[#allocation4 + $0xd8] sm:$0xff]
        %v1225 = vld [vmem:[#allocation4 + $0xe0] sm:$0xff]
        %v1226 = vld [vmem:[#allocation4 + $0xe8] sm:$0xff]
        %v1227 = vld [vmem:[#allocation4 + $0xf0] sm:$0xff]
        %v1228 = vld [vmem:[#allocation4 + $0xf8] sm:$0xff]
        %v1229 = vld [vmem:[#allocation4 + $0x100] sm:$0xff]
        %v1230 = vld [vmem:[#allocation4 + $0x108] sm:$0xff]
        %v1231 = vld [vmem:[#allocation4 + $0x110] sm:$0xff]
        %v1232 = vld [vmem:[#allocation4 + $0x118] sm:$0xff]
        %v1233 = vld [vmem:[#allocation4 + $0x120] sm:$0xff]
        %v1234 = vld [vmem:[#allocation4 + $0x128] sm:$0xff]
        %v1235 = vld [vmem:[#allocation4 + $0x130] sm:$0xff]
        %v1236 = vld [vmem:[#allocation4 + $0x138] sm:$0xff]
        %v1237 = vld [vmem:[#allocation4 + $0x140] sm:$0xff]
        %v1238 = vld [vmem:[#allocation4 + $0x148] sm:$0xff]
        %v1239 = vld [vmem:[#allocation4 + $0x150] sm:$0xff]
        %v1240 = vld [vmem:[#allocation4 + $0x158] sm:$0xff]
        %v1241 = vld [vmem:[#allocation4 + $0x160] sm:$0xff]
        %v1242 = vld [vmem:[#allocation4 + $0x168] sm:$0xff]
        %v1243 = vld [vmem:[#allocation4 + $0x170] sm:$0xff]
        %v1244 = vld [vmem:[#allocation4 + $0x178] sm:$0xff]
        %v1245 = vld [vmem:[#allocation4 + $0x180] sm:$0xff]
        %v1246 = vld [vmem:[#allocation4 + $0x188] sm:$0xff]
        %v1247 = vld [vmem:[#allocation4 + $0x190] sm:$0xff]
        %v1248 = vld [vmem:[#allocation4 + $0x198] sm:$0xff]
        %v1249 = vld [vmem:[#allocation4 + $0x1a0] sm:$0xff]
        %v1250 = vld [vmem:[#allocation4 + $0x1a8] sm:$0xff]
        %v1251 = vld [vmem:[#allocation4 + $0x1b0] sm:$0xff]
        %v1252 = vld [vmem:[#allocation4 + $0x1b8] sm:$0xff]
        %v1253 = vld [vmem:[#allocation4 + $0x1c0] sm:$0xff]
        %v1254 = vld [vmem:[#allocation4 + $0x1c8] sm:$0xff]
        %v1255 = vld [vmem:[#allocation4 + $0x1d0] sm:$0xff]
        %v1256 = vld [vmem:[#allocation4 + $0x1d8] sm:$0xff]
        %v1257 = vld [vmem:[#allocation4 + $0x1e0] sm:$0xff]
        %v1258 = vld [vmem:[#allocation4 + $0x1e8] sm:$0xff]
        %v1259 = vld [vmem:[#allocation4 + $0x1f0] sm:$0xff]
        %v1260 = vld [vmem:[#allocation4 + $0x1f8] sm:$0xff]
        %v1261 = vld [vmem:[#allocation4 + $0x200] sm:$0xff]
        %v1262 = vld [vmem:[#allocation4 + $0x208] sm:$0xff]
        %v1263 = vld [vmem:[#allocation4 + $0x210] sm:$0xff]
        %v1264 = vld [vmem:[#allocation4 + $0x218] sm:$0xff]
        %v1265 = vld [vmem:[#allocation4 + $0x220] sm:$0xff]
        %v1266 = vld [vmem:[#allocation4 + $0x228] sm:$0xff]
        %v1267 = vld [vmem:[#allocation4 + $0x230] sm:$0xff]
        %v1268 = vld [vmem:[#allocation4 + $0x238] sm:$0xff]
        %v1269 = vld [vmem:[#allocation4 + $0x240] sm:$0xff]
        %v1270 = vld [vmem:[#allocation4 + $0x248] sm:$0xff]
        %v1271 = vld [vmem:[#allocation4 + $0x250] sm:$0xff]
        %v1272 = vld [vmem:[#allocation4 + $0x258] sm:$0xff]
        %v1273 = vld [vmem:[#allocation4 + $0x260] sm:$0xff]
        %v1274 = vld [vmem:[#allocation4 + $0x268] sm:$0xff]
        %v1275 = vld [vmem:[#allocation4 + $0x270] sm:$0xff]
        %v1276 = vld [vmem:[#allocation4 + $0x278] sm:$0xff]
        %v1277 = vld [vmem:[#allocation4 + $0x280] sm:$0xff]
        %v1278 = vld [vmem:[#allocation4 + $0x288] sm:$0xff]
        %v1279 = vld [vmem:[#allocation4 + $0x290] sm:$0xff]
        %v1280 = vld [vmem:[#allocation4 + $0x298] sm:$0xff]
        %v1281 = vld [vmem:[#allocation4 + $0x2a0] sm:$0xff]
        %v1282 = vld [vmem:[#allocation4 + $0x2a8] sm:$0xff]
        %v1283 = vld [vmem:[#allocation4 + $0x2b0] sm:$0xff]
        %v1284 = vld [vmem:[#allocation4 + $0x2b8] sm:$0xff]
        %v1285 = vld [vmem:[#allocation4 + $0x2c0] sm:$0xff]
        %v1286 = vld [vmem:[#allocation4 + $0x2c8] sm:$0xff]
        %v1287 = vld [vmem:[#allocation4 + $0x2d0] sm:$0xff]
        %v1288 = vld [vmem:[#allocation4 + $0x2d8] sm:$0xff]
        %v1289 = vld [vmem:[#allocation4 + $0x2e0] sm:$0xff]
        %v1290 = vld [vmem:[#allocation4 + $0x2e8] sm:$0xff]
        %v1291 = vld [vmem:[#allocation4 + $0x2f0] sm:$0xff]
        %v1292 = vld [vmem:[#allocation4 + $0x2f8] sm:$0xff]
        %v1293 = vld [vmem:[#allocation4 + $0x300] sm:$0xff]
        %v1294 = vld [vmem:[#allocation4 + $0x308] sm:$0xff]
        %v1295 = vld [vmem:[#allocation4 + $0x310] sm:$0xff]
        %v1296 = vld [vmem:[#allocation4 + $0x318] sm:$0xff]
        %v1297 = vld [vmem:[#allocation4 + $0x320] sm:$0xff]
        %v1298 = vld [vmem:[#allocation4 + $0x328] sm:$0xff]
        %v1299 = vld [vmem:[#allocation4 + $0x330] sm:$0xff]
        %v1300 = vld [vmem:[#allocation4 + $0x338] sm:$0xff]
        %v1301 = vld [vmem:[#allocation4 + $0x340] sm:$0xff]
        %v1302 = vld [vmem:[#allocation4 + $0x348] sm:$0xff]
        %v1303 = vld [vmem:[#allocation4 + $0x350] sm:$0xff]
        %v1304 = vld [vmem:[#allocation4 + $0x358] sm:$0xff]
        %v1305 = vld [vmem:[#allocation4 + $0x360] sm:$0xff]
        %v1306 = vld [vmem:[#allocation4 + $0x368] sm:$0xff]
        %v1307 = vld [vmem:[#allocation4 + $0x370] sm:$0xff]
        %v1308 = vld [vmem:[#allocation4 + $0x378] sm:$0xff]
        %v1309 = vld [vmem:[#allocation4 + $0x380] sm:$0xff]
        %v1310 = vld [vmem:[#allocation4 + $0x388] sm:$0xff]
        %v1311 = vld [vmem:[#allocation4 + $0x390] sm:$0xff]
        %v1312 = vld [vmem:[#allocation4 + $0x398] sm:$0xff]
        %v1313 = vld [vmem:[#allocation4 + $0x3a0] sm:$0xff]
        %v1314 = vld [vmem:[#allocation4 + $0x3a8] sm:$0xff]
        %v1315 = vld [vmem:[#allocation4 + $0x3b0] sm:$0xff]
        %v1316 = vld [vmem:[#allocation4 + $0x3b8] sm:$0xff]
        %v1317 = vld [vmem:[#allocation4 + $0x3c0] sm:$0xff]
        %v1318 = vld [vmem:[#allocation4 + $0x3c8] sm:$0xff]
        %v1319 = vld [vmem:[#allocation4 + $0x3d0] sm:$0xff]
        %v1320 = vld [vmem:[#allocation4 + $0x3d8] sm:$0xff]
        %v1321 = vld [vmem:[#allocation4 + $0x3e0] sm:$0xff]
        %v1322 = vld [vmem:[#allocation4 + $0x3e8] sm:$0xff]
        %v1323 = vld [vmem:[#allocation4 + $0x3f0] sm:$0xff]
        %v1324 = vld [vmem:[#allocation4 + $0x3f8] sm:$0xff]
        %v1325 = vld [vmem:[#allocation4 + $0x400] sm:$0xff]
        %v1326 = vld [vmem:[#allocation4 + $0x408] sm:$0xff]
        %v1327 = vld [vmem:[#allocation4 + $0x410] sm:$0xff]
        %v1328 = vld [vmem:[#allocation4 + $0x418] sm:$0xff]
        %v1329 = vld [vmem:[#allocation4 + $0x420] sm:$0xff]
        %v1330 = vld [vmem:[#allocation4 + $0x428] sm:$0xff]
        %v1331 = vld [vmem:[#allocation4 + $0x430] sm:$0xff]
        %v1332 = vld [vmem:[#allocation4 + $0x438] sm:$0xff]
        %v1333 = vld [vmem:[#allocation4 + $0x440] sm:$0xff]
        %v1334 = vld [vmem:[#allocation4 + $0x448] sm:$0xff]
        %v1335 = vld [vmem:[#allocation4 + $0x450] sm:$0xff]
        %v1336 = vld [vmem:[#allocation4 + $0x458] sm:$0xff]
        %v1337 = vld [vmem:[#allocation4 + $0x460] sm:$0xff]
        %v1338 = vld [vmem:[#allocation4 + $0x468] sm:$0xff]
        %v1339 = vld [vmem:[#allocation4 + $0x470] sm:$0xff]
        %v1340 = vld [vmem:[#allocation4 + $0x478] sm:$0xff]
        %v1341 = vld [vmem:[#allocation4 + $0x480] sm:$0xff]
        %v1342 = vld [vmem:[#allocation4 + $0x488] sm:$0xff]
        %v1343 = vld [vmem:[#allocation4 + $0x490] sm:$0xff]
        %v1344 = vld [vmem:[#allocation4 + $0x498] sm:$0xff]
        %v1345 = vld [vmem:[#allocation4 + $0x4a0] sm:$0xff]
        %v1346 = vld [vmem:[#allocation4 + $0x4a8] sm:$0xff]
        %v1347 = vld [vmem:[#allocation4 + $0x4b0] sm:$0xff]
        %v1348 = vld [vmem:[#allocation4 + $0x4b8] sm:$0xff]
        %v1349 = vld [vmem:[#allocation4 + $0x4c0] sm:$0xff]
        %v1350 = vld [vmem:[#allocation4 + $0x4c8] sm:$0xff]
        %v1351 = vld [vmem:[#allocation4 + $0x4d0] sm:$0xff]
        %v1352 = vld [vmem:[#allocation4 + $0x4d8] sm:$0xff]
        %v1353 = vld [vmem:[#allocation4 + $0x4e0] sm:$0xff]
        %v1354 = vld [vmem:[#allocation4 + $0x4e8] sm:$0xff]
        %v1355 = vld [vmem:[#allocation4 + $0x4f0] sm:$0xff]
        %v1356 = vld [vmem:[#allocation4 + $0x4f8] sm:$0xff]
        %v1357 = vld [vmem:[#allocation4 + $0x500] sm:$0xff]
        %v1358 = vld [vmem:[#allocation4 + $0x508] sm:$0xff]
        %v1359 = vld [vmem:[#allocation4 + $0x510] sm:$0xff]
        %v1360 = vld [vmem:[#allocation4 + $0x518] sm:$0xff]
        %v1361 = vld [vmem:[#allocation4 + $0x520] sm:$0xff]
        %v1362 = vld [vmem:[#allocation4 + $0x528] sm:$0xff]
        %v1363 = vld [vmem:[#allocation4 + $0x530] sm:$0xff]
        %v1364 = vld [vmem:[#allocation4 + $0x538] sm:$0xff]
        %v1365 = vld [vmem:[#allocation4 + $0x540] sm:$0xff]
        %v1366 = vld [vmem:[#allocation4 + $0x548] sm:$0xff]
        %v1367 = vld [vmem:[#allocation4 + $0x550] sm:$0xff]
        %v1368 = vld [vmem:[#allocation4 + $0x558] sm:$0xff]
        %v1369 = vld [vmem:[#allocation4 + $0x560] sm:$0xff]
        %v1370 = vld [vmem:[#allocation4 + $0x568] sm:$0xff]
        %v1371 = vld [vmem:[#allocation4 + $0x570] sm:$0xff]
        %v1372 = vld [vmem:[#allocation4 + $0x578] sm:$0xff]
        %v1373 = vld [vmem:[#allocation4 + $0x580] sm:$0xff]
        %v1374 = vld [vmem:[#allocation4 + $0x588] sm:$0xff]
        %v1375 = vld [vmem:[#allocation4 + $0x590] sm:$0xff]
        %v1376 = vld [vmem:[#allocation4 + $0x598] sm:$0xff]
        %v1377 = vld [vmem:[#allocation4 + $0x5a0] sm:$0xff]
        %v1378 = vld [vmem:[#allocation4 + $0x5a8] sm:$0xff]
        %v1379 = vld [vmem:[#allocation4 + $0x5b0] sm:$0xff]
        %v1380 = vld [vmem:[#allocation4 + $0x5b8] sm:$0xff]
        %v1381 = vld [vmem:[#allocation4 + $0x5c0] sm:$0xff]
        %v1382 = vld [vmem:[#allocation4 + $0x5c8] sm:$0xff]
        %v1383 = vld [vmem:[#allocation4 + $0x5d0] sm:$0xff]
        %v1384 = vld [vmem:[#allocation4 + $0x5d8] sm:$0xff]
        %v1385 = vld [vmem:[#allocation4 + $0x5e0] sm:$0xff]
        %v1386 = vld [vmem:[#allocation4 + $0x5e8] sm:$0xff]
        %v1387 = vld [vmem:[#allocation4 + $0x5f0] sm:$0xff]
        %v1388 = vld [vmem:[#allocation4 + $0x5f8] sm:$0xff]
        %v1389 = vpack.c.bf16 %v1195, %v1195
        %v1390 = vpack.c.bf16 %v1196, %v1196
        %v1391 = vld [vmem:[%s8] sm:$0xff]
        %v1393 = vlaneseq
        %v1394 = vshrl.u32 %v1393, 7
        %v1395 = vsub.s32 0, %v1394
        %v1396 = vrot.slane %v1391, %v1395
        %v1397 = vlaneseq
        %v1398 = vshrl.u32 %v1397, 7
        %v1399 = vsub.s32 1, %v1398
        %v1400 = vrot.slane %v1391, %v1399
        %v1401 = vlaneseq
        %v1402 = vshrl.u32 %v1401, 7
        %v1403 = vsub.s32 2, %v1402
        %v1404 = vrot.slane %v1391, %v1403
        %v1405 = vlaneseq
        %v1406 = vshrl.u32 %v1405, 7
        %v1407 = vsub.s32 3, %v1406
        %v1408 = vrot.slane %v1391, %v1407
        %v1409 = vlaneseq
        %v1410 = vshrl.u32 %v1409, 7
        %v1411 = vsub.s32 4, %v1410
        %v1412 = vrot.slane %v1391, %v1411
        %v1413 = vlaneseq
        %v1414 = vshrl.u32 %v1413, 7
        %v1415 = vsub.s32 5, %v1414
        %v1416 = vrot.slane %v1391, %v1415
        %v1417 = vlaneseq
        %v1418 = vshrl.u32 %v1417, 7
        %v1419 = vsub.s32 6, %v1418
        %v1420 = vrot.slane %v1391, %v1419
        %v1421 = vlaneseq
        %v1422 = vshrl.u32 %v1421, 7
        %v1423 = vsub.s32 7, %v1422
        %v1424 = vrot.slane %v1391, %v1423
        %v1625 = vunpack.c.l.b16 %v1197
        %v1626 = vunpack.c.h.b16 %v1197
        %v1627 = vunpack.c.l.b16 %v1198
        %v1628 = vunpack.c.h.b16 %v1198
        %v1629 = vunpack.c.l.b16 %v1199
        %v1630 = vunpack.c.h.b16 %v1199
        %v1631 = vunpack.c.l.b16 %v1200
        %v1632 = vunpack.c.h.b16 %v1200
        %v1633 = vunpack.c.l.b16 %v1201
        %v1634 = vunpack.c.h.b16 %v1201
        %v1635 = vunpack.c.l.b16 %v1202
        %v1636 = vunpack.c.h.b16 %v1202
        %v1637 = vunpack.c.l.b16 %v1203
        %v1638 = vunpack.c.h.b16 %v1203
        %v1639 = vunpack.c.l.b16 %v1204
        %v1640 = vunpack.c.h.b16 %v1204
        %v1641 = vunpack.c.l.b16 %v1205
        %v1642 = vunpack.c.h.b16 %v1205
        %v1643 = vunpack.c.l.b16 %v1206
        %v1644 = vunpack.c.h.b16 %v1206
        %v1645 = vunpack.c.l.b16 %v1207
        %v1646 = vunpack.c.h.b16 %v1207
        %v1647 = vunpack.c.l.b16 %v1208
        %v1648 = vunpack.c.h.b16 %v1208
        %v1649 = vunpack.c.l.b16 %v1209
        %v1650 = vunpack.c.h.b16 %v1209
        %v1651 = vunpack.c.l.b16 %v1210
        %v1652 = vunpack.c.h.b16 %v1210
        %v1653 = vunpack.c.l.b16 %v1211
        %v1654 = vunpack.c.h.b16 %v1211
        %v1655 = vunpack.c.l.b16 %v1212
        %v1656 = vunpack.c.h.b16 %v1212
        %v1657 = vunpack.c.l.b16 %v1213
        %v1658 = vunpack.c.h.b16 %v1213
        %v1659 = vunpack.c.l.b16 %v1214
        %v1660 = vunpack.c.h.b16 %v1214
        %v1661 = vunpack.c.l.b16 %v1215
        %v1662 = vunpack.c.h.b16 %v1215
        %v1663 = vunpack.c.l.b16 %v1216
        %v1664 = vunpack.c.h.b16 %v1216
        %v1665 = vunpack.c.l.b16 %v1217
        %v1666 = vunpack.c.h.b16 %v1217
        %v1667 = vunpack.c.l.b16 %v1218
        %v1668 = vunpack.c.h.b16 %v1218
        %v1669 = vunpack.c.l.b16 %v1219
        %v1670 = vunpack.c.h.b16 %v1219
        %v1671 = vunpack.c.l.b16 %v1220
        %v1672 = vunpack.c.h.b16 %v1220
        %v1673 = vunpack.c.l.b16 %v1221
        %v1674 = vunpack.c.h.b16 %v1221
        %v1675 = vunpack.c.l.b16 %v1222
        %v1676 = vunpack.c.h.b16 %v1222
        %v1677 = vunpack.c.l.b16 %v1223
        %v1678 = vunpack.c.h.b16 %v1223
        %v1679 = vunpack.c.l.b16 %v1224
        %v1680 = vunpack.c.h.b16 %v1224
        %v1681 = vunpack.c.l.b16 %v1225
        %v1682 = vunpack.c.h.b16 %v1225
        %v1683 = vunpack.c.l.b16 %v1226
        %v1684 = vunpack.c.h.b16 %v1226
        %v1685 = vunpack.c.l.b16 %v1227
        %v1686 = vunpack.c.h.b16 %v1227
        %v1687 = vunpack.c.l.b16 %v1228
        %v1688 = vunpack.c.h.b16 %v1228
        %v1689 = vunpack.c.l.b16 %v1229
        %v1690 = vunpack.c.h.b16 %v1229
        %v1691 = vunpack.c.l.b16 %v1230
        %v1692 = vunpack.c.h.b16 %v1230
        %v1693 = vunpack.c.l.b16 %v1231
        %v1694 = vunpack.c.h.b16 %v1231
        %v1695 = vunpack.c.l.b16 %v1232
        %v1696 = vunpack.c.h.b16 %v1232
        %v1697 = vunpack.c.l.b16 %v1233
        %v1698 = vunpack.c.h.b16 %v1233
        %v1699 = vunpack.c.l.b16 %v1234
        %v1700 = vunpack.c.h.b16 %v1234
        %v1701 = vunpack.c.l.b16 %v1235
        %v1702 = vunpack.c.h.b16 %v1235
        %v1703 = vunpack.c.l.b16 %v1236
        %v1704 = vunpack.c.h.b16 %v1236
        %v1705 = vunpack.c.l.b16 %v1237
        %v1706 = vunpack.c.h.b16 %v1237
        %v1707 = vunpack.c.l.b16 %v1238
        %v1708 = vunpack.c.h.b16 %v1238
        %v1709 = vunpack.c.l.b16 %v1239
        %v1710 = vunpack.c.h.b16 %v1239
        %v1711 = vunpack.c.l.b16 %v1240
        %v1712 = vunpack.c.h.b16 %v1240
        %v1713 = vunpack.c.l.b16 %v1241
        %v1714 = vunpack.c.h.b16 %v1241
        %v1715 = vunpack.c.l.b16 %v1242
        %v1716 = vunpack.c.h.b16 %v1242
        %v1717 = vunpack.c.l.b16 %v1243
        %v1718 = vunpack.c.h.b16 %v1243
        %v1719 = vunpack.c.l.b16 %v1244
        %v1720 = vunpack.c.h.b16 %v1244
        %v1721 = vunpack.c.l.b16 %v1245
        %v1722 = vunpack.c.h.b16 %v1245
        %v1723 = vunpack.c.l.b16 %v1246
        %v1724 = vunpack.c.h.b16 %v1246
        %v1725 = vunpack.c.l.b16 %v1247
        %v1726 = vunpack.c.h.b16 %v1247
        %v1727 = vunpack.c.l.b16 %v1248
        %v1728 = vunpack.c.h.b16 %v1248
        %v1729 = vunpack.c.l.b16 %v1249
        %v1730 = vunpack.c.h.b16 %v1249
        %v1731 = vunpack.c.l.b16 %v1250
        %v1732 = vunpack.c.h.b16 %v1250
        %v1733 = vunpack.c.l.b16 %v1251
        %v1734 = vunpack.c.h.b16 %v1251
        %v1735 = vunpack.c.l.b16 %v1252
        %v1736 = vunpack.c.h.b16 %v1252
        %v1737 = vunpack.c.l.b16 %v1253
        %v1738 = vunpack.c.h.b16 %v1253
        %v1739 = vunpack.c.l.b16 %v1254
        %v1740 = vunpack.c.h.b16 %v1254
        %v1741 = vunpack.c.l.b16 %v1255
        %v1742 = vunpack.c.h.b16 %v1255
        %v1743 = vunpack.c.l.b16 %v1256
        %v1744 = vunpack.c.h.b16 %v1256
        %v1745 = vunpack.c.l.b16 %v1257
        %v1746 = vunpack.c.h.b16 %v1257
        %v1747 = vunpack.c.l.b16 %v1258
        %v1748 = vunpack.c.h.b16 %v1258
        %v1749 = vunpack.c.l.b16 %v1259
        %v1750 = vunpack.c.h.b16 %v1259
        %v1751 = vunpack.c.l.b16 %v1260
        %v1752 = vunpack.c.h.b16 %v1260
        %v1753 = vunpack.c.l.b16 %v1261
        %v1754 = vunpack.c.h.b16 %v1261
        %v1755 = vunpack.c.l.b16 %v1262
        %v1756 = vunpack.c.h.b16 %v1262
        %v1757 = vunpack.c.l.b16 %v1263
        %v1758 = vunpack.c.h.b16 %v1263
        %v1759 = vunpack.c.l.b16 %v1264
        %v1760 = vunpack.c.h.b16 %v1264
        %v1761 = vunpack.c.l.b16 %v1265
        %v1762 = vunpack.c.h.b16 %v1265
        %v1763 = vunpack.c.l.b16 %v1266
        %v1764 = vunpack.c.h.b16 %v1266
        %v1765 = vunpack.c.l.b16 %v1267
        %v1766 = vunpack.c.h.b16 %v1267
        %v1767 = vunpack.c.l.b16 %v1268
        %v1768 = vunpack.c.h.b16 %v1268
        %v1769 = vunpack.c.l.b16 %v1269
        %v1770 = vunpack.c.h.b16 %v1269
        %v1771 = vunpack.c.l.b16 %v1270
        %v1772 = vunpack.c.h.b16 %v1270
        %v1773 = vunpack.c.l.b16 %v1271
        %v1774 = vunpack.c.h.b16 %v1271
        %v1775 = vunpack.c.l.b16 %v1272
        %v1776 = vunpack.c.h.b16 %v1272
        %v1777 = vunpack.c.l.b16 %v1273
        %v1778 = vunpack.c.h.b16 %v1273
        %v1779 = vunpack.c.l.b16 %v1274
        %v1780 = vunpack.c.h.b16 %v1274
        %v1781 = vunpack.c.l.b16 %v1275
        %v1782 = vunpack.c.h.b16 %v1275
        %v1783 = vunpack.c.l.b16 %v1276
        %v1784 = vunpack.c.h.b16 %v1276
        %v1785 = vunpack.c.l.b16 %v1277
        %v1786 = vunpack.c.h.b16 %v1277
        %v1787 = vunpack.c.l.b16 %v1278
        %v1788 = vunpack.c.h.b16 %v1278
        %v1789 = vunpack.c.l.b16 %v1279
        %v1790 = vunpack.c.h.b16 %v1279
        %v1791 = vunpack.c.l.b16 %v1280
        %v1792 = vunpack.c.h.b16 %v1280
        %v1793 = vunpack.c.l.b16 %v1281
        %v1794 = vunpack.c.h.b16 %v1281
        %v1795 = vunpack.c.l.b16 %v1282
        %v1796 = vunpack.c.h.b16 %v1282
        %v1797 = vunpack.c.l.b16 %v1283
        %v1798 = vunpack.c.h.b16 %v1283
        %v1799 = vunpack.c.l.b16 %v1284
        %v1800 = vunpack.c.h.b16 %v1284
        %v1801 = vunpack.c.l.b16 %v1285
        %v1802 = vunpack.c.h.b16 %v1285
        %v1803 = vunpack.c.l.b16 %v1286
        %v1804 = vunpack.c.h.b16 %v1286
        %v1805 = vunpack.c.l.b16 %v1287
        %v1806 = vunpack.c.h.b16 %v1287
        %v1807 = vunpack.c.l.b16 %v1288
        %v1808 = vunpack.c.h.b16 %v1288
        %v1809 = vunpack.c.l.b16 %v1289
        %v1810 = vunpack.c.h.b16 %v1289
        %v1811 = vunpack.c.l.b16 %v1290
        %v1812 = vunpack.c.h.b16 %v1290
        %v1813 = vunpack.c.l.b16 %v1291
        %v1814 = vunpack.c.h.b16 %v1291
        %v1815 = vunpack.c.l.b16 %v1292
        %v1816 = vunpack.c.h.b16 %v1292
        %v1817 = vunpack.c.l.b16 %v1293
        %v1818 = vunpack.c.h.b16 %v1293
        %v1819 = vunpack.c.l.b16 %v1294
        %v1820 = vunpack.c.h.b16 %v1294
        %v1821 = vunpack.c.l.b16 %v1295
        %v1822 = vunpack.c.h.b16 %v1295
        %v1823 = vunpack.c.l.b16 %v1296
        %v1824 = vunpack.c.h.b16 %v1296
        %v1825 = vunpack.c.l.b16 %v1297
        %v1826 = vunpack.c.h.b16 %v1297
        %v1827 = vunpack.c.l.b16 %v1298
        %v1828 = vunpack.c.h.b16 %v1298
        %v1829 = vunpack.c.l.b16 %v1299
        %v1830 = vunpack.c.h.b16 %v1299
        %v1831 = vunpack.c.l.b16 %v1300
        %v1832 = vunpack.c.h.b16 %v1300
        %v1833 = vunpack.c.l.b16 %v1301
        %v1834 = vunpack.c.h.b16 %v1301
        %v1835 = vunpack.c.l.b16 %v1302
        %v1836 = vunpack.c.h.b16 %v1302
        %v1837 = vunpack.c.l.b16 %v1303
        %v1838 = vunpack.c.h.b16 %v1303
        %v1839 = vunpack.c.l.b16 %v1304
        %v1840 = vunpack.c.h.b16 %v1304
        %v1841 = vunpack.c.l.b16 %v1305
        %v1842 = vunpack.c.h.b16 %v1305
        %v1843 = vunpack.c.l.b16 %v1306
        %v1844 = vunpack.c.h.b16 %v1306
        %v1845 = vunpack.c.l.b16 %v1307
        %v1846 = vunpack.c.h.b16 %v1307
        %v1847 = vunpack.c.l.b16 %v1308
        %v1848 = vunpack.c.h.b16 %v1308
        %v1849 = vunpack.c.l.b16 %v1309
        %v1850 = vunpack.c.h.b16 %v1309
        %v1851 = vunpack.c.l.b16 %v1310
        %v1852 = vunpack.c.h.b16 %v1310
        %v1853 = vunpack.c.l.b16 %v1311
        %v1854 = vunpack.c.h.b16 %v1311
        %v1855 = vunpack.c.l.b16 %v1312
        %v1856 = vunpack.c.h.b16 %v1312
        %v1857 = vunpack.c.l.b16 %v1313
        %v1858 = vunpack.c.h.b16 %v1313
        %v1859 = vunpack.c.l.b16 %v1314
        %v1860 = vunpack.c.h.b16 %v1314
        %v1861 = vunpack.c.l.b16 %v1315
        %v1862 = vunpack.c.h.b16 %v1315
        %v1863 = vunpack.c.l.b16 %v1316
        %v1864 = vunpack.c.h.b16 %v1316
        %v1865 = vunpack.c.l.b16 %v1317
        %v1866 = vunpack.c.h.b16 %v1317
        %v1867 = vunpack.c.l.b16 %v1318
        %v1868 = vunpack.c.h.b16 %v1318
        %v1869 = vunpack.c.l.b16 %v1319
        %v1870 = vunpack.c.h.b16 %v1319
        %v1871 = vunpack.c.l.b16 %v1320
        %v1872 = vunpack.c.h.b16 %v1320
        %v1873 = vunpack.c.l.b16 %v1321
        %v1874 = vunpack.c.h.b16 %v1321
        %v1875 = vunpack.c.l.b16 %v1322
        %v1876 = vunpack.c.h.b16 %v1322
        %v1877 = vunpack.c.l.b16 %v1323
        %v1878 = vunpack.c.h.b16 %v1323
        %v1879 = vunpack.c.l.b16 %v1324
        %v1880 = vunpack.c.h.b16 %v1324
        %v1881 = vunpack.c.l.b16 %v1325
        %v1882 = vunpack.c.h.b16 %v1325
        %v1883 = vunpack.c.l.b16 %v1326
        %v1884 = vunpack.c.h.b16 %v1326
        %v1885 = vunpack.c.l.b16 %v1327
        %v1886 = vunpack.c.h.b16 %v1327
        %v1887 = vunpack.c.l.b16 %v1328
        %v1888 = vunpack.c.h.b16 %v1328
        %v1889 = vunpack.c.l.b16 %v1329
        %v1890 = vunpack.c.h.b16 %v1329
        %v1891 = vunpack.c.l.b16 %v1330
        %v1892 = vunpack.c.h.b16 %v1330
        %v1893 = vunpack.c.l.b16 %v1331
        %v1894 = vunpack.c.h.b16 %v1331
        %v1895 = vunpack.c.l.b16 %v1332
        %v1896 = vunpack.c.h.b16 %v1332
        %v1897 = vunpack.c.l.b16 %v1333
        %v1898 = vunpack.c.h.b16 %v1333
        %v1899 = vunpack.c.l.b16 %v1334
        %v1900 = vunpack.c.h.b16 %v1334
        %v1901 = vunpack.c.l.b16 %v1335
        %v1902 = vunpack.c.h.b16 %v1335
        %v1903 = vunpack.c.l.b16 %v1336
        %v1904 = vunpack.c.h.b16 %v1336
        %v1905 = vunpack.c.l.b16 %v1337
        %v1906 = vunpack.c.h.b16 %v1337
        %v1907 = vunpack.c.l.b16 %v1338
        %v1908 = vunpack.c.h.b16 %v1338
        %v1909 = vunpack.c.l.b16 %v1339
        %v1910 = vunpack.c.h.b16 %v1339
        %v1911 = vunpack.c.l.b16 %v1340
        %v1912 = vunpack.c.h.b16 %v1340
        %v1913 = vunpack.c.l.b16 %v1341
        %v1914 = vunpack.c.h.b16 %v1341
        %v1915 = vunpack.c.l.b16 %v1342
        %v1916 = vunpack.c.h.b16 %v1342
        %v1917 = vunpack.c.l.b16 %v1343
        %v1918 = vunpack.c.h.b16 %v1343
        %v1919 = vunpack.c.l.b16 %v1344
        %v1920 = vunpack.c.h.b16 %v1344
        %v1921 = vunpack.c.l.b16 %v1345
        %v1922 = vunpack.c.h.b16 %v1345
        %v1923 = vunpack.c.l.b16 %v1346
        %v1924 = vunpack.c.h.b16 %v1346
        %v1925 = vunpack.c.l.b16 %v1347
        %v1926 = vunpack.c.h.b16 %v1347
        %v1927 = vunpack.c.l.b16 %v1348
        %v1928 = vunpack.c.h.b16 %v1348
        %v1929 = vunpack.c.l.b16 %v1349
        %v1930 = vunpack.c.h.b16 %v1349
        %v1931 = vunpack.c.l.b16 %v1350
        %v1932 = vunpack.c.h.b16 %v1350
        %v1933 = vunpack.c.l.b16 %v1351
        %v1934 = vunpack.c.h.b16 %v1351
        %v1935 = vunpack.c.l.b16 %v1352
        %v1936 = vunpack.c.h.b16 %v1352
        %v1937 = vunpack.c.l.b16 %v1353
        %v1938 = vunpack.c.h.b16 %v1353
        %v1939 = vunpack.c.l.b16 %v1354
        %v1940 = vunpack.c.h.b16 %v1354
        %v1941 = vunpack.c.l.b16 %v1355
        %v1942 = vunpack.c.h.b16 %v1355
        %v1943 = vunpack.c.l.b16 %v1356
        %v1944 = vunpack.c.h.b16 %v1356
        %v1945 = vunpack.c.l.b16 %v1357
        %v1946 = vunpack.c.h.b16 %v1357
        %v1947 = vunpack.c.l.b16 %v1358
        %v1948 = vunpack.c.h.b16 %v1358
        %v1949 = vunpack.c.l.b16 %v1359
        %v1950 = vunpack.c.h.b16 %v1359
        %v1951 = vunpack.c.l.b16 %v1360
        %v1952 = vunpack.c.h.b16 %v1360
        %v1953 = vunpack.c.l.b16 %v1361
        %v1954 = vunpack.c.h.b16 %v1361
        %v1955 = vunpack.c.l.b16 %v1362
        %v1956 = vunpack.c.h.b16 %v1362
        %v1957 = vunpack.c.l.b16 %v1363
        %v1958 = vunpack.c.h.b16 %v1363
        %v1959 = vunpack.c.l.b16 %v1364
        %v1960 = vunpack.c.h.b16 %v1364
        %v1961 = vunpack.c.l.b16 %v1365
        %v1962 = vunpack.c.h.b16 %v1365
        %v1963 = vunpack.c.l.b16 %v1366
        %v1964 = vunpack.c.h.b16 %v1366
        %v1965 = vunpack.c.l.b16 %v1367
        %v1966 = vunpack.c.h.b16 %v1367
        %v1967 = vunpack.c.l.b16 %v1368
        %v1968 = vunpack.c.h.b16 %v1368
        %v1969 = vunpack.c.l.b16 %v1369
        %v1970 = vunpack.c.h.b16 %v1369
        %v1971 = vunpack.c.l.b16 %v1370
        %v1972 = vunpack.c.h.b16 %v1370
        %v1973 = vunpack.c.l.b16 %v1371
        %v1974 = vunpack.c.h.b16 %v1371
        %v1975 = vunpack.c.l.b16 %v1372
        %v1976 = vunpack.c.h.b16 %v1372
        %v1977 = vunpack.c.l.b16 %v1373
        %v1978 = vunpack.c.h.b16 %v1373
        %v1979 = vunpack.c.l.b16 %v1374
        %v1980 = vunpack.c.h.b16 %v1374
        %v1981 = vunpack.c.l.b16 %v1375
        %v1982 = vunpack.c.h.b16 %v1375
        %v1983 = vunpack.c.l.b16 %v1376
        %v1984 = vunpack.c.h.b16 %v1376
        %v1985 = vunpack.c.l.b16 %v1377
        %v1986 = vunpack.c.h.b16 %v1377
        %v1987 = vunpack.c.l.b16 %v1378
        %v1988 = vunpack.c.h.b16 %v1378
        %v1989 = vunpack.c.l.b16 %v1379
        %v1990 = vunpack.c.h.b16 %v1379
        %v1991 = vunpack.c.l.b16 %v1380
        %v1992 = vunpack.c.h.b16 %v1380
        %v1993 = vunpack.c.l.b16 %v1381
        %v1994 = vunpack.c.h.b16 %v1381
        %v1995 = vunpack.c.l.b16 %v1382
        %v1996 = vunpack.c.h.b16 %v1382
        %v1997 = vunpack.c.l.b16 %v1383
        %v1998 = vunpack.c.h.b16 %v1383
        %v1999 = vunpack.c.l.b16 %v1384
        %v2000 = vunpack.c.h.b16 %v1384
        %v2001 = vunpack.c.l.b16 %v1385
        %v2002 = vunpack.c.h.b16 %v1385
        %v2003 = vunpack.c.l.b16 %v1386
        %v2004 = vunpack.c.h.b16 %v1386
        %v2005 = vunpack.c.l.b16 %v1387
        %v2006 = vunpack.c.h.b16 %v1387
        %v2007 = vunpack.c.l.b16 %v1388
        %v2008 = vunpack.c.h.b16 %v1388
        %v2009 = vpack.c.b16 %v1633, %v1625
        %v2010 = vpack.c.b16 %v1634, %v1626
        %v2011 = vpack.c.b16 %v1635, %v1627
        %v2012 = vpack.c.b16 %v1636, %v1628
        %v2013 = vpack.c.b16 %v1637, %v1629
        %v2014 = vpack.c.b16 %v1638, %v1630
        %v2015 = vpack.c.b16 %v1639, %v1631
        %v2016 = vpack.c.b16 %v1640, %v1632
        %v2017 = vpack.c.b16 %v1649, %v1641
        %v2018 = vpack.c.b16 %v1650, %v1642
        %v2019 = vpack.c.b16 %v1651, %v1643
        %v2020 = vpack.c.b16 %v1652, %v1644
        %v2021 = vpack.c.b16 %v1653, %v1645
        %v2022 = vpack.c.b16 %v1654, %v1646
        %v2023 = vpack.c.b16 %v1655, %v1647
        %v2024 = vpack.c.b16 %v1656, %v1648
        %v2025 = vpack.c.b16 %v1665, %v1657
        %v2026 = vpack.c.b16 %v1666, %v1658
        %v2027 = vpack.c.b16 %v1667, %v1659
        %v2028 = vpack.c.b16 %v1668, %v1660
        %v2029 = vpack.c.b16 %v1669, %v1661
        %v2030 = vpack.c.b16 %v1670, %v1662
        %v2031 = vpack.c.b16 %v1671, %v1663
        %v2032 = vpack.c.b16 %v1672, %v1664
        %v2033 = vpack.c.b16 %v1681, %v1673
        %v2034 = vpack.c.b16 %v1682, %v1674
        %v2035 = vpack.c.b16 %v1683, %v1675
        %v2036 = vpack.c.b16 %v1684, %v1676
        %v2037 = vpack.c.b16 %v1685, %v1677
        %v2038 = vpack.c.b16 %v1686, %v1678
        %v2039 = vpack.c.b16 %v1687, %v1679
        %v2040 = vpack.c.b16 %v1688, %v1680
        %v2041 = vpack.c.b16 %v1697, %v1689
        %v2042 = vpack.c.b16 %v1698, %v1690
        %v2043 = vpack.c.b16 %v1699, %v1691
        %v2044 = vpack.c.b16 %v1700, %v1692
        %v2045 = vpack.c.b16 %v1701, %v1693
        %v2046 = vpack.c.b16 %v1702, %v1694
        %v2047 = vpack.c.b16 %v1703, %v1695
        %v2048 = vpack.c.b16 %v1704, %v1696
        %v2049 = vpack.c.b16 %v1713, %v1705
        %v2050 = vpack.c.b16 %v1714, %v1706
        %v2051 = vpack.c.b16 %v1715, %v1707
        %v2052 = vpack.c.b16 %v1716, %v1708
        %v2053 = vpack.c.b16 %v1717, %v1709
        %v2054 = vpack.c.b16 %v1718, %v1710
        %v2055 = vpack.c.b16 %v1719, %v1711
        %v2056 = vpack.c.b16 %v1720, %v1712
        %v2057 = vpack.c.b16 %v1729, %v1721
        %v2058 = vpack.c.b16 %v1730, %v1722
        %v2059 = vpack.c.b16 %v1731, %v1723
        %v2060 = vpack.c.b16 %v1732, %v1724
        %v2061 = vpack.c.b16 %v1733, %v1725
        %v2062 = vpack.c.b16 %v1734, %v1726
        %v2063 = vpack.c.b16 %v1735, %v1727
        %v2064 = vpack.c.b16 %v1736, %v1728
        %v2065 = vpack.c.b16 %v1745, %v1737
        %v2066 = vpack.c.b16 %v1746, %v1738
        %v2067 = vpack.c.b16 %v1747, %v1739
        %v2068 = vpack.c.b16 %v1748, %v1740
        %v2069 = vpack.c.b16 %v1749, %v1741
        %v2070 = vpack.c.b16 %v1750, %v1742
        %v2071 = vpack.c.b16 %v1751, %v1743
        %v2072 = vpack.c.b16 %v1752, %v1744
        %v2073 = vpack.c.b16 %v1761, %v1753
        %v2074 = vpack.c.b16 %v1762, %v1754
        %v2075 = vpack.c.b16 %v1763, %v1755
        %v2076 = vpack.c.b16 %v1764, %v1756
        %v2077 = vpack.c.b16 %v1765, %v1757
        %v2078 = vpack.c.b16 %v1766, %v1758
        %v2079 = vpack.c.b16 %v1767, %v1759
        %v2080 = vpack.c.b16 %v1768, %v1760
        %v2081 = vpack.c.b16 %v1777, %v1769
        %v2082 = vpack.c.b16 %v1778, %v1770
        %v2083 = vpack.c.b16 %v1779, %v1771
        %v2084 = vpack.c.b16 %v1780, %v1772
        %v2085 = vpack.c.b16 %v1781, %v1773
        %v2086 = vpack.c.b16 %v1782, %v1774
        %v2087 = vpack.c.b16 %v1783, %v1775
        %v2088 = vpack.c.b16 %v1784, %v1776
        %v2089 = vpack.c.b16 %v1793, %v1785
        %v2090 = vpack.c.b16 %v1794, %v1786
        %v2091 = vpack.c.b16 %v1795, %v1787
        %v2092 = vpack.c.b16 %v1796, %v1788
        %v2093 = vpack.c.b16 %v1797, %v1789
        %v2094 = vpack.c.b16 %v1798, %v1790
        %v2095 = vpack.c.b16 %v1799, %v1791
        %v2096 = vpack.c.b16 %v1800, %v1792
        %v2097 = vpack.c.b16 %v1809, %v1801
        %v2098 = vpack.c.b16 %v1810, %v1802
        %v2099 = vpack.c.b16 %v1811, %v1803
        %v2100 = vpack.c.b16 %v1812, %v1804
        %v2101 = vpack.c.b16 %v1813, %v1805
        %v2102 = vpack.c.b16 %v1814, %v1806
        %v2103 = vpack.c.b16 %v1815, %v1807
        %v2104 = vpack.c.b16 %v1816, %v1808
        %v2105 = vpack.c.b16 %v1825, %v1817
        %v2106 = vpack.c.b16 %v1826, %v1818
        %v2107 = vpack.c.b16 %v1827, %v1819
        %v2108 = vpack.c.b16 %v1828, %v1820
        %v2109 = vpack.c.b16 %v1829, %v1821
        %v2110 = vpack.c.b16 %v1830, %v1822
        %v2111 = vpack.c.b16 %v1831, %v1823
        %v2112 = vpack.c.b16 %v1832, %v1824
        %v2113 = vpack.c.b16 %v1841, %v1833
        %v2114 = vpack.c.b16 %v1842, %v1834
        %v2115 = vpack.c.b16 %v1843, %v1835
        %v2116 = vpack.c.b16 %v1844, %v1836
        %v2117 = vpack.c.b16 %v1845, %v1837
        %v2118 = vpack.c.b16 %v1846, %v1838
        %v2119 = vpack.c.b16 %v1847, %v1839
        %v2120 = vpack.c.b16 %v1848, %v1840
        %v2121 = vpack.c.b16 %v1857, %v1849
        %v2122 = vpack.c.b16 %v1858, %v1850
        %v2123 = vpack.c.b16 %v1859, %v1851
        %v2124 = vpack.c.b16 %v1860, %v1852
        %v2125 = vpack.c.b16 %v1861, %v1853
        %v2126 = vpack.c.b16 %v1862, %v1854
        %v2127 = vpack.c.b16 %v1863, %v1855
        %v2128 = vpack.c.b16 %v1864, %v1856
        %v2129 = vpack.c.b16 %v1873, %v1865
        %v2130 = vpack.c.b16 %v1874, %v1866
        %v2131 = vpack.c.b16 %v1875, %v1867
        %v2132 = vpack.c.b16 %v1876, %v1868
        %v2133 = vpack.c.b16 %v1877, %v1869
        %v2134 = vpack.c.b16 %v1878, %v1870
        %v2135 = vpack.c.b16 %v1879, %v1871
        %v2136 = vpack.c.b16 %v1880, %v1872
        %v2137 = vpack.c.b16 %v1889, %v1881
        %v2138 = vpack.c.b16 %v1890, %v1882
        %v2139 = vpack.c.b16 %v1891, %v1883
        %v2140 = vpack.c.b16 %v1892, %v1884
        %v2141 = vpack.c.b16 %v1893, %v1885
        %v2142 = vpack.c.b16 %v1894, %v1886
        %v2143 = vpack.c.b16 %v1895, %v1887
        %v2144 = vpack.c.b16 %v1896, %v1888
        %v2145 = vpack.c.b16 %v1905, %v1897
        %v2146 = vpack.c.b16 %v1906, %v1898
        %v2147 = vpack.c.b16 %v1907, %v1899
        %v2148 = vpack.c.b16 %v1908, %v1900
        %v2149 = vpack.c.b16 %v1909, %v1901
        %v2150 = vpack.c.b16 %v1910, %v1902
        %v2151 = vpack.c.b16 %v1911, %v1903
        %v2152 = vpack.c.b16 %v1912, %v1904
        %v2153 = vpack.c.b16 %v1921, %v1913
        %v2154 = vpack.c.b16 %v1922, %v1914
        %v2155 = vpack.c.b16 %v1923, %v1915
        %v2156 = vpack.c.b16 %v1924, %v1916
        %v2157 = vpack.c.b16 %v1925, %v1917
        %v2158 = vpack.c.b16 %v1926, %v1918
        %v2159 = vpack.c.b16 %v1927, %v1919
        %v2160 = vpack.c.b16 %v1928, %v1920
        %v2161 = vpack.c.b16 %v1937, %v1929
        %v2162 = vpack.c.b16 %v1938, %v1930
        %v2163 = vpack.c.b16 %v1939, %v1931
        %v2164 = vpack.c.b16 %v1940, %v1932
        %v2165 = vpack.c.b16 %v1941, %v1933
        %v2166 = vpack.c.b16 %v1942, %v1934
        %v2167 = vpack.c.b16 %v1943, %v1935
        %v2168 = vpack.c.b16 %v1944, %v1936
        %v2169 = vpack.c.b16 %v1953, %v1945
        %v2170 = vpack.c.b16 %v1954, %v1946
        %v2171 = vpack.c.b16 %v1955, %v1947
        %v2172 = vpack.c.b16 %v1956, %v1948
        %v2173 = vpack.c.b16 %v1957, %v1949
        %v2174 = vpack.c.b16 %v1958, %v1950
        %v2175 = vpack.c.b16 %v1959, %v1951
        %v2176 = vpack.c.b16 %v1960, %v1952
        %v2177 = vpack.c.b16 %v1969, %v1961
        %v2178 = vpack.c.b16 %v1970, %v1962
        %v2179 = vpack.c.b16 %v1971, %v1963
        %v2180 = vpack.c.b16 %v1972, %v1964
        %v2181 = vpack.c.b16 %v1973, %v1965
        %v2182 = vpack.c.b16 %v1974, %v1966
        %v2183 = vpack.c.b16 %v1975, %v1967
        %v2184 = vpack.c.b16 %v1976, %v1968
        %v2185 = vpack.c.b16 %v1985, %v1977
        %v2186 = vpack.c.b16 %v1986, %v1978
        %v2187 = vpack.c.b16 %v1987, %v1979
        %v2188 = vpack.c.b16 %v1988, %v1980
        %v2189 = vpack.c.b16 %v1989, %v1981
        %v2190 = vpack.c.b16 %v1990, %v1982
        %v2191 = vpack.c.b16 %v1991, %v1983
        %v2192 = vpack.c.b16 %v1992, %v1984
        %v2193 = vpack.c.b16 %v2001, %v1993
        %v2194 = vpack.c.b16 %v2002, %v1994
        %v2195 = vpack.c.b16 %v2003, %v1995
        %v2196 = vpack.c.b16 %v2004, %v1996
        %v2197 = vpack.c.b16 %v2005, %v1997
        %v2198 = vpack.c.b16 %v2006, %v1998
        %v2199 = vpack.c.b16 %v2007, %v1999
        %v2200 = vpack.c.b16 %v2008, %v2000
        %2393 = vmatprep.subr.bf16.mxu0 %v2010
        %2394 = vmatpush1.bf16.msra.mxu0 %v2009
        %2395 = vmatprep.subr.bf16.mxu0 %v2018
        %2396 = vmatpush1.bf16.msra.mxu0 %v2017
        %2397 = vmatprep.subr.bf16.mxu0 %v2026
        %2398 = vmatpush1.bf16.msra.mxu0 %v2025
        %2399 = vmatprep.subr.bf16.mxu0 %v2034
        %2400 = vmatpush1.bf16.msra.mxu0 %v2033
        %2401 = vmatprep.subr.bf16.mxu0 %v2042
        %2402 = vmatpush1.bf16.msra.mxu0 %v2041
        %2403 = vmatprep.subr.bf16.mxu0 %v2050
        %2404 = vmatpush1.bf16.msra.mxu0 %v2049
        %2405 = vmatprep.subr.bf16.mxu0 %v2058
        %2406 = vmatpush1.bf16.msra.mxu0 %v2057
        %2407 = vmatprep.subr.bf16.mxu0 %v2066
        %2408 = vmatpush1.bf16.msra.mxu0 %v2065
        %2409 = vmatprep.subr.bf16.mxu0 %v2074
        %2410 = vmatpush1.bf16.msra.mxu0 %v2073
        %2411 = vmatprep.subr.bf16.mxu0 %v2082
        %2412 = vmatpush1.bf16.msra.mxu0 %v2081
        %2413 = vmatprep.subr.bf16.mxu0 %v2090
        %2414 = vmatpush1.bf16.msra.mxu0 %v2089
        %2415 = vmatprep.subr.bf16.mxu0 %v2098
        %2416 = vmatpush1.bf16.msra.mxu0 %v2097
        %2417 = vmatprep.subr.bf16.mxu0 %v2106
        %2418 = vmatpush1.bf16.msra.mxu0 %v2105
        %2419 = vmatprep.subr.bf16.mxu0 %v2114
        %2420 = vmatpush1.bf16.msra.mxu0 %v2113
        %2421 = vmatprep.subr.bf16.mxu0 %v2122
        %2422 = vmatpush1.bf16.msra.mxu0 %v2121
        %2423 = vmatprep.subr.bf16.mxu0 %v2130
        %2424 = vmatpush1.bf16.msra.mxu0 %v2129
        %2425 = vmatprep.mubr.bf16.mxu0 %v1389
        %2426 = vmatmul.mubr.bf16.gmra.mrb[0].mxu0 %v1054
        %v2427 = vpop.f32.mrb[0].mxu0
        %v2428 = vadd.f32 %v1396, %v2427
        %v2429 = vpop.f32.mrb[0].mxu0
        %v2430 = vadd.f32 %v1400, %v2429
        %v2431 = vpop.f32.mrb[0].mxu0
        %v2432 = vpop.f32.mrb[0].mxu0
        %2433 = vdwg.mxu0
        %2434 = vmatprep.subr.bf16.mxu0 %v2138
        %2435 = vmatpush1.bf16.msra.mxu0 %v2137
        %2436 = vmatprep.subr.bf16.mxu0 %v2146
        %2437 = vmatpush1.bf16.msra.mxu0 %v2145
        %2438 = vmatprep.subr.bf16.mxu0 %v2154
        %2439 = vmatpush1.bf16.msra.mxu0 %v2153
        %2440 = vmatprep.subr.bf16.mxu0 %v2162
        %2441 = vmatpush1.bf16.msra.mxu0 %v2161
        %2442 = vmatprep.subr.bf16.mxu0 %v2170
        %2443 = vmatpush1.bf16.msra.mxu0 %v2169
        %2444 = vmatprep.subr.bf16.mxu0 %v2178
        %2445 = vmatpush1.bf16.msra.mxu0 %v2177
        %2446 = vmatprep.subr.bf16.mxu0 %v2186
        %2447 = vmatpush1.bf16.msra.mxu0 %v2185
        %2448 = vmatprep.subr.bf16.mxu0 %v2194
        %2449 = vmatpush1.bf16.msra.mxu0 %v2193
        %2450 = vmatprep.subr.bf16.mxu0 0
        %2451 = vmatpush1.bf16.msra.mxu0 0
        %2452 = vmatprep.subr.bf16.mxu0 0
        %2453 = vmatpush1.bf16.msra.mxu0 0
        %2454 = vmatprep.subr.bf16.mxu0 0
        %2455 = vmatpush1.bf16.msra.mxu0 0
        %2456 = vmatprep.subr.bf16.mxu0 0
        %2457 = vmatpush1.bf16.msra.mxu0 0
        %2458 = vmatprep.subr.bf16.mxu0 0
        %2459 = vmatpush1.bf16.msra.mxu0 0
        %2460 = vmatprep.subr.bf16.mxu0 0
        %2461 = vmatpush1.bf16.msra.mxu0 0
        %2462 = vmatprep.subr.bf16.mxu0 0
        %2463 = vmatpush1.bf16.msra.mxu0 0
        %2464 = vmatprep.subr.bf16.mxu0 0
        %2465 = vmatpush1.bf16.msra.mxu0 0
        %2466 = vmatprep.mubr.bf16.mxu0 0
        %2467 = vmatmul.mubr.bf16.gmra.mrb[0].mxu0 %v1390
        %v2468 = vpop.f32.mrb[0].mxu0
        %v2469 = vadd.f32 %v2428, %v2468
        %v2470 = vpop.f32.mrb[0].mxu0
        %v2471 = vadd.f32 %v2430, %v2470
        %v2472 = vpop.f32.mrb[0].mxu0
        %v2473 = vpop.f32.mrb[0].mxu0
        %2474 = vdwg.mxu0
        %2475 = vmatprep.subr.bf16.mxu0 %v2012
        %2476 = vmatpush1.bf16.msra.mxu0 %v2011
        %2477 = vmatprep.subr.bf16.mxu0 %v2020
        %2478 = vmatpush1.bf16.msra.mxu0 %v2019
        %2479 = vmatprep.subr.bf16.mxu0 %v2028
        %2480 = vmatpush1.bf16.msra.mxu0 %v2027
        %2481 = vmatprep.subr.bf16.mxu0 %v2036
        %2482 = vmatpush1.bf16.msra.mxu0 %v2035
        %2483 = vmatprep.subr.bf16.mxu0 %v2044
        %2484 = vmatpush1.bf16.msra.mxu0 %v2043
        %2485 = vmatprep.subr.bf16.mxu0 %v2052
        %2486 = vmatpush1.bf16.msra.mxu0 %v2051
        %2487 = vmatprep.subr.bf16.mxu0 %v2060
        %2488 = vmatpush1.bf16.msra.mxu0 %v2059
        %2489 = vmatprep.subr.bf16.mxu0 %v2068
        %2490 = vmatpush1.bf16.msra.mxu0 %v2067
        %2491 = vmatprep.subr.bf16.mxu0 %v2076
        %2492 = vmatpush1.bf16.msra.mxu0 %v2075
        %2493 = vmatprep.subr.bf16.mxu0 %v2084
        %2494 = vmatpush1.bf16.msra.mxu0 %v2083
        %2495 = vmatprep.subr.bf16.mxu0 %v2092
        %2496 = vmatpush1.bf16.msra.mxu0 %v2091
        %2497 = vmatprep.subr.bf16.mxu0 %v2100
        %2498 = vmatpush1.bf16.msra.mxu0 %v2099
        %2499 = vmatprep.subr.bf16.mxu0 %v2108
        %2500 = vmatpush1.bf16.msra.mxu0 %v2107
        %2501 = vmatprep.subr.bf16.mxu0 %v2116
        %2502 = vmatpush1.bf16.msra.mxu0 %v2115
        %2503 = vmatprep.subr.bf16.mxu0 %v2124
        %2504 = vmatpush1.bf16.msra.mxu0 %v2123
        %2505 = vmatprep.subr.bf16.mxu0 %v2132
        %2506 = vmatpush1.bf16.msra.mxu0 %v2131
        %2507 = vmatprep.mubr.bf16.mxu0 %v1389
        %2508 = vmatmul.mubr.bf16.gmra.mrb[0].mxu0 %v1054
        %v2509 = vpop.f32.mrb[0].mxu0
        %v2510 = vadd.f32 %v1404, %v2509
        %v2511 = vpop.f32.mrb[0].mxu0
        %v2512 = vadd.f32 %v1408, %v2511
        %v2513 = vpop.f32.mrb[0].mxu0
        %v2514 = vpop.f32.mrb[0].mxu0
        %2515 = vdwg.mxu0
        %2516 = vmatprep.subr.bf16.mxu0 %v2140
        %2517 = vmatpush1.bf16.msra.mxu0 %v2139
        %2518 = vmatprep.subr.bf16.mxu0 %v2148
        %2519 = vmatpush1.bf16.msra.mxu0 %v2147
        %2520 = vmatprep.subr.bf16.mxu0 %v2156
        %2521 = vmatpush1.bf16.msra.mxu0 %v2155
        %2522 = vmatprep.subr.bf16.mxu0 %v2164
        %2523 = vmatpush1.bf16.msra.mxu0 %v2163
        %2524 = vmatprep.subr.bf16.mxu0 %v2172
        %2525 = vmatpush1.bf16.msra.mxu0 %v2171
        %2526 = vmatprep.subr.bf16.mxu0 %v2180
        %2527 = vmatpush1.bf16.msra.mxu0 %v2179
        %2528 = vmatprep.subr.bf16.mxu0 %v2188
        %2529 = vmatpush1.bf16.msra.mxu0 %v2187
        %2530 = vmatprep.subr.bf16.mxu0 %v2196
        %2531 = vmatpush1.bf16.msra.mxu0 %v2195
        %2532 = vmatprep.subr.bf16.mxu0 0
        %2533 = vmatpush1.bf16.msra.mxu0 0
        %2534 = vmatprep.subr.bf16.mxu0 0
        %2535 = vmatpush1.bf16.msra.mxu0 0
        %2536 = vmatprep.subr.bf16.mxu0 0
        %2537 = vmatpush1.bf16.msra.mxu0 0
        %2538 = vmatprep.subr.bf16.mxu0 0
        %2539 = vmatpush1.bf16.msra.mxu0 0
        %2540 = vmatprep.subr.bf16.mxu0 0
        %2541 = vmatpush1.bf16.msra.mxu0 0
        %2542 = vmatprep.subr.bf16.mxu0 0
        %2543 = vmatpush1.bf16.msra.mxu0 0
        %2544 = vmatprep.subr.bf16.mxu0 0
        %2545 = vmatpush1.bf16.msra.mxu0 0
        %2546 = vmatprep.subr.bf16.mxu0 0
        %2547 = vmatpush1.bf16.msra.mxu0 0
        %2548 = vmatprep.mubr.bf16.mxu0 0
        %2549 = vmatmul.mubr.bf16.gmra.mrb[0].mxu0 %v1390
        %v2550 = vpop.f32.mrb[0].mxu0
        %v2551 = vadd.f32 %v2510, %v2550
        %v2552 = vpop.f32.mrb[0].mxu0
        %v2553 = vadd.f32 %v2512, %v2552
        %v2554 = vpop.f32.mrb[0].mxu0
        %v2555 = vpop.f32.mrb[0].mxu0
        %2556 = vdwg.mxu0
        %2557 = vmatprep.subr.bf16.mxu0 %v2014
        %2558 = vmatpush1.bf16.msra.mxu0 %v2013
        %2559 = vmatprep.subr.bf16.mxu0 %v2022
        %2560 = vmatpush1.bf16.msra.mxu0 %v2021
        %2561 = vmatprep.subr.bf16.mxu0 %v2030
        %2562 = vmatpush1.bf16.msra.mxu0 %v2029
        %2563 = vmatprep.subr.bf16.mxu0 %v2038
        %2564 = vmatpush1.bf16.msra.mxu0 %v2037
        %2565 = vmatprep.subr.bf16.mxu0 %v2046
        %2566 = vmatpush1.bf16.msra.mxu0 %v2045
        %2567 = vmatprep.subr.bf16.mxu0 %v2054
        %2568 = vmatpush1.bf16.msra.mxu0 %v2053
        %2569 = vmatprep.subr.bf16.mxu0 %v2062
        %2570 = vmatpush1.bf16.msra.mxu0 %v2061
        %2571 = vmatprep.subr.bf16.mxu0 %v2070
        %2572 = vmatpush1.bf16.msra.mxu0 %v2069
        %2573 = vmatprep.subr.bf16.mxu0 %v2078
        %2574 = vmatpush1.bf16.msra.mxu0 %v2077
        %2575 = vmatprep.subr.bf16.mxu0 %v2086
        %2576 = vmatpush1.bf16.msra.mxu0 %v2085
        %2577 = vmatprep.subr.bf16.mxu0 %v2094
        %2578 = vmatpush1.bf16.msra.mxu0 %v2093
        %2579 = vmatprep.subr.bf16.mxu0 %v2102
        %2580 = vmatpush1.bf16.msra.mxu0 %v2101
        %2581 = vmatprep.subr.bf16.mxu0 %v2110
        %2582 = vmatpush1.bf16.msra.mxu0 %v2109
        %2583 = vmatprep.subr.bf16.mxu0 %v2118
        %2584 = vmatpush1.bf16.msra.mxu0 %v2117
        %2585 = vmatprep.subr.bf16.mxu0 %v2126
        %2586 = vmatpush1.bf16.msra.mxu0 %v2125
        %2587 = vmatprep.subr.bf16.mxu0 %v2134
        %2588 = vmatpush1.bf16.msra.mxu0 %v2133
        %2589 = vmatprep.mubr.bf16.mxu0 %v1389
        %2590 = vmatmul.mubr.bf16.gmra.mrb[0].mxu0 %v1054
        %v2591 = vpop.f32.mrb[0].mxu0
        %v2592 = vadd.f32 %v1412, %v2591
        %v2593 = vpop.f32.mrb[0].mxu0
        %v2594 = vadd.f32 %v1416, %v2593
        %v2595 = vpop.f32.mrb[0].mxu0
        %v2596 = vpop.f32.mrb[0].mxu0
        %2597 = vdwg.mxu0
        %2598 = vmatprep.subr.bf16.mxu0 %v2142
        %2599 = vmatpush1.bf16.msra.mxu0 %v2141
        %2600 = vmatprep.subr.bf16.mxu0 %v2150
        %2601 = vmatpush1.bf16.msra.mxu0 %v2149
        %2602 = vmatprep.subr.bf16.mxu0 %v2158
        %2603 = vmatpush1.bf16.msra.mxu0 %v2157
        %2604 = vmatprep.subr.bf16.mxu0 %v2166
        %2605 = vmatpush1.bf16.msra.mxu0 %v2165
        %2606 = vmatprep.subr.bf16.mxu0 %v2174
        %2607 = vmatpush1.bf16.msra.mxu0 %v2173
        %2608 = vmatprep.subr.bf16.mxu0 %v2182
        %2609 = vmatpush1.bf16.msra.mxu0 %v2181
        %2610 = vmatprep.subr.bf16.mxu0 %v2190
        %2611 = vmatpush1.bf16.msra.mxu0 %v2189
        %2612 = vmatprep.subr.bf16.mxu0 %v2198
        %2613 = vmatpush1.bf16.msra.mxu0 %v2197
        %2614 = vmatprep.subr.bf16.mxu0 0
        %2615 = vmatpush1.bf16.msra.mxu0 0
        %2616 = vmatprep.subr.bf16.mxu0 0
        %2617 = vmatpush1.bf16.msra.mxu0 0
        %2618 = vmatprep.subr.bf16.mxu0 0
        %2619 = vmatpush1.bf16.msra.mxu0 0
        %2620 = vmatprep.subr.bf16.mxu0 0
        %2621 = vmatpush1.bf16.msra.mxu0 0
        %2622 = vmatprep.subr.bf16.mxu0 0
        %2623 = vmatpush1.bf16.msra.mxu0 0
        %2624 = vmatprep.subr.bf16.mxu0 0
        %2625 = vmatpush1.bf16.msra.mxu0 0
        %2626 = vmatprep.subr.bf16.mxu0 0
        %2627 = vmatpush1.bf16.msra.mxu0 0
        %2628 = vmatprep.subr.bf16.mxu0 0
        %2629 = vmatpush1.bf16.msra.mxu0 0
        %2630 = vmatprep.mubr.bf16.mxu0 0
        %2631 = vmatmul.mubr.bf16.gmra.mrb[0].mxu0 %v1390
        %v2632 = vpop.f32.mrb[0].mxu0
        %v2633 = vadd.f32 %v2592, %v2632
        %v2634 = vpop.f32.mrb[0].mxu0
        %v2635 = vadd.f32 %v2594, %v2634
        %v2636 = vpop.f32.mrb[0].mxu0
        %v2637 = vpop.f32.mrb[0].mxu0
        %2638 = vdwg.mxu0
        %2639 = vmatprep.subr.bf16.mxu0 %v2016
        %2640 = vmatpush1.bf16.msra.mxu0 %v2015
        %2641 = vmatprep.subr.bf16.mxu0 %v2024
        %2642 = vmatpush1.bf16.msra.mxu0 %v2023
        %2643 = vmatprep.subr.bf16.mxu0 %v2032
        %2644 = vmatpush1.bf16.msra.mxu0 %v2031
        %2645 = vmatprep.subr.bf16.mxu0 %v2040
        %2646 = vmatpush1.bf16.msra.mxu0 %v2039
        %2647 = vmatprep.subr.bf16.mxu0 %v2048
        %2648 = vmatpush1.bf16.msra.mxu0 %v2047
        %2649 = vmatprep.subr.bf16.mxu0 %v2056
        %2650 = vmatpush1.bf16.msra.mxu0 %v2055
        %2651 = vmatprep.subr.bf16.mxu0 %v2064
        %2652 = vmatpush1.bf16.msra.mxu0 %v2063
        %2653 = vmatprep.subr.bf16.mxu0 %v2072
        %2654 = vmatpush1.bf16.msra.mxu0 %v2071
        %2655 = vmatprep.subr.bf16.mxu0 %v2080
        %2656 = vmatpush1.bf16.msra.mxu0 %v2079
        %2657 = vmatprep.subr.bf16.mxu0 %v2088
        %2658 = vmatpush1.bf16.msra.mxu0 %v2087
        %2659 = vmatprep.subr.bf16.mxu0 %v2096
        %2660 = vmatpush1.bf16.msra.mxu0 %v2095
        %2661 = vmatprep.subr.bf16.mxu0 %v2104
        %2662 = vmatpush1.bf16.msra.mxu0 %v2103
        %2663 = vmatprep.subr.bf16.mxu0 %v2112
        %2664 = vmatpush1.bf16.msra.mxu0 %v2111
        %2665 = vmatprep.subr.bf16.mxu0 %v2120
        %2666 = vmatpush1.bf16.msra.mxu0 %v2119
        %2667 = vmatprep.subr.bf16.mxu0 %v2128
        %2668 = vmatpush1.bf16.msra.mxu0 %v2127
        %2669 = vmatprep.subr.bf16.mxu0 %v2136
        %2670 = vmatpush1.bf16.msra.mxu0 %v2135
        %2671 = vmatprep.mubr.bf16.mxu0 %v1389
        %2672 = vmatmul.mubr.bf16.gmra.mrb[0].mxu0 %v1054
        %v2673 = vpop.f32.mrb[0].mxu0
        %v2674 = vadd.f32 %v1420, %v2673
        %v2675 = vpop.f32.mrb[0].mxu0
        %v2676 = vadd.f32 %v1424, %v2675
        %v2677 = vpop.f32.mrb[0].mxu0
        %v2678 = vpop.f32.mrb[0].mxu0
        %2679 = vdwg.mxu0
        %2680 = vmatprep.subr.bf16.mxu0 %v2144
        %2681 = vmatpush1.bf16.msra.mxu0 %v2143
        %2682 = vmatprep.subr.bf16.mxu0 %v2152
        %2683 = vmatpush1.bf16.msra.mxu0 %v2151
        %2684 = vmatprep.subr.bf16.mxu0 %v2160
        %2685 = vmatpush1.bf16.msra.mxu0 %v2159
        %2686 = vmatprep.subr.bf16.mxu0 %v2168
        %2687 = vmatpush1.bf16.msra.mxu0 %v2167
        %2688 = vmatprep.subr.bf16.mxu0 %v2176
        %2689 = vmatpush1.bf16.msra.mxu0 %v2175
        %2690 = vmatprep.subr.bf16.mxu0 %v2184
        %2691 = vmatpush1.bf16.msra.mxu0 %v2183
        %2692 = vmatprep.subr.bf16.mxu0 %v2192
        %2693 = vmatpush1.bf16.msra.mxu0 %v2191
        %2694 = vmatprep.subr.bf16.mxu0 %v2200
        %2695 = vmatpush1.bf16.msra.mxu0 %v2199
        %2696 = vmatprep.subr.bf16.mxu0 0
        %2697 = vmatpush1.bf16.msra.mxu0 0
        %2698 = vmatprep.subr.bf16.mxu0 0
        %2699 = vmatpush1.bf16.msra.mxu0 0
        %2700 = vmatprep.subr.bf16.mxu0 0
        %2701 = vmatpush1.bf16.msra.mxu0 0
        %2702 = vmatprep.subr.bf16.mxu0 0
        %2703 = vmatpush1.bf16.msra.mxu0 0
        %2704 = vmatprep.subr.bf16.mxu0 0
        %2705 = vmatpush1.bf16.msra.mxu0 0
        %2706 = vmatprep.subr.bf16.mxu0 0
        %2707 = vmatpush1.bf16.msra.mxu0 0
        %2708 = vmatprep.subr.bf16.mxu0 0
        %2709 = vmatpush1.bf16.msra.mxu0 0
        %2710 = vmatprep.subr.bf16.mxu0 0
        %2711 = vmatpush1.bf16.msra.mxu0 0
        %2712 = vmatprep.mubr.bf16.mxu0 0
        %2713 = vmatmul.mubr.bf16.gmra.mrb[0].mxu0 %v1390
        %v2714 = vpop.f32.mrb[0].mxu0
        %v2715 = vadd.f32 %v2674, %v2714
        %v2716 = vpop.f32.mrb[0].mxu0
        %v2717 = vadd.f32 %v2676, %v2716
        %v2718 = vpop.f32.mrb[0].mxu0
        %v2719 = vpop.f32.mrb[0].mxu0
        %2720 = vdwg.mxu0
        %v2721 = vmul.f32 %v2469, 0.5
        %v2722 = vmul.f32 %v2471, 0.5
        %v2723 = vtanh.pop %v2721
        %v2724 = vtanh.pop %v2722
        %v2725 = vadd.f32 %v2723, 1.0
        %v2726 = vadd.f32 %v2724, 1.0
        %v2727 = vmul.f32 %v2725, 0.5
        %v2728 = vmul.f32 %v2726, 0.5
        %v2729 = vmul.f32 %v2551, 0.5
        %v2730 = vmul.f32 %v2553, 0.5
        %v2731 = vtanh.pop %v2729
        %v2732 = vtanh.pop %v2730
        %v2733 = vadd.f32 %v2731, 1.0
        %v2734 = vadd.f32 %v2732, 1.0
        %v2735 = vmul.f32 %v2733, 0.5
        %v2736 = vmul.f32 %v2734, 0.5
        %v2737 = vtanh.pop %v2633
        %v2738 = vtanh.pop %v2635
        %v2739 = vmul.f32 %v2715, 0.5
        %v2740 = vmul.f32 %v2717, 0.5
        %v2741 = vtanh.pop %v2739
        %v2742 = vtanh.pop %v2740
        %v2743 = vadd.f32 %v2741, 1.0
        %v2744 = vadd.f32 %v2742, 1.0
        %v2745 = vmul.f32 %v2743, 0.5
        %v2746 = vmul.f32 %v2744, 0.5
        %v2747 = vmul.f32 %v2735, %v513
        %v2748 = vmul.f32 %v2736, %v514
        %v2749 = vmul.f32 %v2727, %v2737
        %v2750 = vmul.f32 %v2728, %v2738
        %v2751 = vadd.f32 %v2747, %v2749
        %v2752 = vadd.f32 %v2748, %v2750
        %v2753 = vtanh.pop %v2751
        %v2754 = vtanh.pop %v2752
        %v2755 = vmul.f32 %v2745, %v2753
        %v2756 = vmul.f32 %v2746, %v2754
        %2757 = vst [vmem:[#allocation2] sm:$0xff] %v2755
        %2758 = vst [vmem:[#allocation2 + $0x8] sm:$0xff] %v2756
        %2759 = vst [vmem:[#allocation3] sm:$0xff] %v2751
        %2760 = vst [vmem:[#allocation3 + $0x8] sm:$0xff] %v2752
        %v2761 = vpack.c.bf16 %v2755, %v2755
        %v2762 = vpack.c.bf16 %v2756, %v2756
        %v2765 = vunpack.c.l.b16 %v2761
        %v2766 = vunpack.c.l.b16 %v2762
        %v2767 = vpack.c.b16 %v2766, %v2765
        %2769 = vst [vmem:[%s495] sm:$0xff] %v2767
        %p2770 = scmp.eq.s32.totalorder %s35, 7
        // Predicated region
        $region65: #{mogrifier_lstm_forward.2} parent=55 // pred_check
          %p2771 = pneg %p2770
        $region66: #{mogrifier_lstm_forward.2} parent=55 // pred_check_branch
          %2773 = sbr.rel (%p2771) target = $region68
        $region67: #{mogrifier_lstm_forward.2} parent=55 // pred_region
          %2774 = vst [vmem:[%s461] sm:$0xff] %v2755
          %2775 = vst [vmem:[%s461 + $0x8] sm:$0xff] %v2756
          %2776 = vst [vmem:[%s468] sm:$0xff] %v2751
          %2777 = vst [vmem:[%s468 + $0x8] sm:$0xff] %v2752
        $region68: #{mogrifier_lstm_forward.2} parent=55 // pred_fallthru
          _
        %p2778 = scmp.lt.s32.totalorder %s35, 7
        %s2779 = scalar_select %p2778, %s35, 7
        %p2780 = scmp.lt.s32.totalorder %s34, 1
        %s2781 = scalar_select %p2780, %s34, 1
        %s2782 = smul.addr %s2781, 2
        %s2783 = smul.addr %s2779, 4
        %s2784 = sadd.s32 %s2782, %s2783
        %s2785 = smul.addr %s2784, 4
        %s2786 = scalar_lea.vmem %s9, %s2785
        %s2787 = sand.u32 %s284, 1
        %s2788 = scalar_lea.sflag [#allocation6], %s2787
        %s2789 = sand.u32 %s284, 1
        %s2790 = smul.addr %s2789, 16
        %s2791 = scalar_lea.vmem [#allocation7], %s2790
        %s2792 = sand.u32 %s310, 1
        %s2793 = scalar_lea.sflag [#allocation9], %s2792
        %s2794 = sand.u32 %s310, 1
        %s2795 = smul.addr %s2794, 16
        %s2796 = scalar_lea.vmem [#allocation8], %s2795
        // Predicated region
        $region69: #{mogrifier_lstm_forward.2} parent=55 // pred_check
          %p2797 = pneg %p268
        $region70: #{mogrifier_lstm_forward.2} parent=55 // pred_check_branch
          %2799 = sbr.rel (%p2797) target = $region72
        $region71: #{mogrifier_lstm_forward.2} parent=55 // pred_region
          _
        $region72: #{mogrifier_lstm_forward.2} parent=55 // pred_fallthru
          _
        // Predicated region
        $region73: #{mogrifier_lstm_forward.2} parent=55 // pred_check
          %p2800 = pneg %p294
        $region74: #{mogrifier_lstm_forward.2} parent=55 // pred_check_branch
          %2802 = sbr.rel (%p2800) target = $region76
        $region75: #{mogrifier_lstm_forward.2} parent=55 // pred_region
          %s2804 = ssub.s32 256, 256
          %2805 = vsyncadd %s2788, %s2804
          %s2806 = smul.addr %s34, 2
          %s2807 = smul.addr %s2806, 128
          %s2808 = scalar_lea.hbm %s10, %s2807
          %s2810 = sshll.u32 %s2791, 4
          %s2811 = int_to_ptr.vmem [resolvable:$true] %s2810
          %2813 = dma.vmem_to_hbm [thread:$0]  %s2811, 256, %s2808, %s2788
        $region76: #{mogrifier_lstm_forward.2} parent=55 // pred_fallthru
          _
        // Predicated region
        $region77: #{mogrifier_lstm_forward.2} parent=55 // pred_check
          %p2814 = pneg %p320
        $region78: #{mogrifier_lstm_forward.2} parent=55 // pred_check_branch
          %2816 = sbr.rel (%p2814) target = $region80
        $region79: #{mogrifier_lstm_forward.2} parent=55 // pred_region
          %s2818 = ssub.s32 256, 256
          %2819 = vsyncadd %s2793, %s2818
          %s2820 = smul.addr %s34, 2
          %s2821 = smul.addr %s2820, 128
          %s2822 = scalar_lea.hbm %s11, %s2821
          %s2824 = sshll.u32 %s2796, 4
          %s2825 = int_to_ptr.vmem [resolvable:$true] %s2824
          %2827 = dma.vmem_to_hbm [thread:$0]  %s2825, 256, %s2822, %s2793
        $region80: #{mogrifier_lstm_forward.2} parent=55 // pred_fallthru
          _
      $region56: #{mogrifier_lstm_forward.2} parent=5 // pred_fallthru
        _
      %p2828 = scmp.le.s32.totalorder 2, %s25
      // Predicated region
      $region81: #{mogrifier_lstm_forward.2} parent=5 // pred_check
        %p2829 = pneg %p2828
      $region82: #{mogrifier_lstm_forward.2} parent=5 // pred_check_branch
        %2831 = sbr.rel (%p2829) target = $region84
      $region83: #{mogrifier_lstm_forward.2} parent=5 // pred_region
        %s2832 = ssub.s32 %s25, 2
        // Predicated region
        $region85: #{mogrifier_lstm_forward.2} parent=83 // pred_check
          %p2833 = pneg %p274
        $region86: #{mogrifier_lstm_forward.2} parent=83 // pred_check_branch
          %2835 = sbr.rel (%p2833) target = $region88
        $region87: #{mogrifier_lstm_forward.2} parent=83 // pred_region
          %p2836 = scmp.lt.s32.totalorder %s37, 7
          %s2837 = scalar_select %p2836, %s37, 7
          %p2838 = scmp.lt.s32.totalorder %s36, 1
          %s2839 = scalar_select %p2838, %s36, 1
          %s2840 = smul.addr %s2839, 2
          %s2841 = smul.addr %s2837, 4
          %s2842 = sadd.s32 %s2840, %s2841
          %s2843 = smul.addr %s2842, 4
          %s2844 = scalar_lea.vmem %s9, %s2843
        $region88: #{mogrifier_lstm_forward.2} parent=83 // pred_fallthru
          _
        // Predicated region
        $region89: #{mogrifier_lstm_forward.2} parent=83 // pred_check
          %p2845 = pneg %p300
        $region90: #{mogrifier_lstm_forward.2} parent=83 // pred_check_branch
          %2847 = sbr.rel (%p2845) target = $region92
        $region91: #{mogrifier_lstm_forward.2} parent=83 // pred_region
          %s2848 = sand.u32 %s285, 1
          %s2849 = scalar_lea.sflag [#allocation6], %s2848
          %s2850 = sand.u32 %s285, 1
          %s2851 = smul.addr %s2850, 16
          %s2852 = scalar_lea.vmem [#allocation7], %s2851
          %2853 = dma.done %s2849, 256
        $region92: #{mogrifier_lstm_forward.2} parent=83 // pred_fallthru
          _
        // Predicated region
        $region93: #{mogrifier_lstm_forward.2} parent=83 // pred_check
          %p2854 = pneg %p326
        $region94: #{mogrifier_lstm_forward.2} parent=83 // pred_check_branch
          %2856 = sbr.rel (%p2854) target = $region96
        $region95: #{mogrifier_lstm_forward.2} parent=83 // pred_region
          %s2857 = sand.u32 %s311, 1
          %s2858 = scalar_lea.sflag [#allocation9], %s2857
          %s2859 = sand.u32 %s311, 1
          %s2860 = smul.addr %s2859, 16
          %s2861 = scalar_lea.vmem [#allocation8], %s2860
          %2862 = dma.done %s2858, 256
        $region96: #{mogrifier_lstm_forward.2} parent=83 // pred_fallthru
          _
      $region84: #{mogrifier_lstm_forward.2} parent=5 // pred_fallthru
        _
    $region6: #{mogrifier_lstm_forward.2} parent=1 // loop_footer
      %s29 = sadd.s32 1, %s25
    $region7: #{mogrifier_lstm_forward.2} parent=1 // loop_footer_branch
      %24 = sbr.rel target = $region3
    $region8: #{mogrifier_lstm_forward.2} parent=1 // loop_exit
      _
    %2863 = vsyncpa [#allocation5], 1
    %s2864 = scalar_lea.sflag [#allocation5], 1
    %2865 = vsyncpa %s2864, 1
    %2866 = vsyncpa [#allocation6], 1
    %s2867 = scalar_lea.sflag [#allocation6], 1
    %2868 = vsyncpa %s2867, 1
    %2869 = vsyncpa [#allocation9], 1
    %s2870 = scalar_lea.sflag [#allocation9], 1
    %2871 = vsyncpa %s2870, 1

</llo_original>
